<compile_context>
chip_gen: v7x
topology: tpu7x:2x2x1
jax: 0.10.0
libtpu: 0.0.40
codegen_flags: <defaults>
</compile_context>

<pallas_src>
import functools

import jax
import jax.numpy as jnp
from jax.experimental import pallas as pl
from jax.experimental.pallas import tpu as pltpu

BERT_SIZE = 256
HIDDEN = 128
FFN = 2048
NUM_CLASSES = 2
LN_EPS = 1e-5


def _round_up(n, m):
    return ((n + m - 1) // m) * m


def _gelu(x):
    # F.gelu default = exact (erf) gelu; keep exact to match PyTorch numerics.
    return 0.5 * x * (1.0 + jax.lax.erf(x * 0.7071067811865476))


def _layernorm(v, gamma, beta):
    mu = jnp.mean(v, axis=-1, keepdims=True)
    var = jnp.mean((v - mu) ** 2, axis=-1, keepdims=True)
    return (v - mu) * jax.lax.rsqrt(var + LN_EPS) * gamma + beta


def clf_kernel(
    x_ref,
    w1_ref, b1_ref,                      # linear1: bert -> hidden   (w bf16)
    wa_ref, ba_ref,                      # folded attention (Wv@Wo, bv@Wo+bo)
    g1_ref, be1_ref,                     # transformer norm1
    wf1_ref, bf1_ref, wf2_ref, bf2_ref,  # transformer feed-forward
    g2_ref, be2_ref,                     # transformer norm2
    w2_ref, b2_ref,                      # linear2: hidden -> 64
    w3_ref, b3_ref,                      # linear3: 64 -> 2
    out_ref,
):
    # MXU operands in bf16, accumulation + all element-wise math in f32.
    x = x_ref[...].astype(jnp.bfloat16)

    # x = gelu(linear1(x))
    h = _gelu(jnp.dot(x, w1_ref[...], preferred_element_type=jnp.float32)
              + b1_ref[...])

    def encoder_layer(h):
        # Self-attention with seq_len == 1: softmax over a single key is 1,
        # so MHA(h) == out_proj(v_proj(h)) == h @ (Wv @ Wo) + (bv @ Wo + bo).
        hb = h.astype(jnp.bfloat16)
        attn = jnp.dot(hb, wa_ref[...], preferred_element_type=jnp.float32) + ba_ref[...]
        h = _layernorm(h + attn, g1_ref[...], be1_ref[...])
        # feed-forward: relu activation (nn.TransformerEncoderLayer default)
        hb = h.astype(jnp.bfloat16)
        ff = jnp.maximum(
            jnp.dot(hb, wf1_ref[...], preferred_element_type=jnp.float32) + bf1_ref[...],
            0.0)
        ff = jnp.dot(ff.astype(jnp.bfloat16), wf2_ref[...],
                     preferred_element_type=jnp.float32) + bf2_ref[...]
        h = _layernorm(h + ff, g2_ref[...], be2_ref[...])
        return h

    # self.trans_encoder(x) applied twice (shared weights)
    h = encoder_layer(h)
    h = encoder_layer(h)

    # gelu(linear2(h)) ; linear3
    y = _gelu(jnp.dot(h.astype(jnp.bfloat16), w2_ref[...],
                      preferred_element_type=jnp.float32) + b2_ref[...])
    out_ref[...] = (jnp.dot(y.astype(jnp.bfloat16), w3_ref[...],
                            preferred_element_type=jnp.float32)
                    + b3_ref[...]).astype(out_ref.dtype)


@functools.partial(jax.jit, static_argnames=("tile_n",))
def clf_forward(x, params, tile_n=256):
    # x: (N, 1, bert_size) -> squeeze seq axis explicitly -> (N, bert_size)
    # (jnp.squeeze without axis would also drop the batch dim when N == 1)
    x2 = jnp.squeeze(x, axis=1)
    n_rows = x2.shape[0]

    # Effective row tile: at most tile_n, at least 8, and aim for >= 2 grid
    # steps so both v7x TensorCores get work on small batches.
    tile = max(8, min(tile_n, _round_up(-(-n_rows // 2), 8)))
    padded = _round_up(n_rows, tile)
    if padded != n_rows:
        x2 = jnp.pad(x2, ((0, padded - n_rows), (0, 0)))

    f32 = jnp.float32
    bf16 = jnp.bfloat16

    # Fold attention V-proj + out-proj (exact for seq_len == 1).
    w_attn = jnp.dot(params["wv"].astype(f32), params["wo"].astype(f32))
    b_attn = jnp.dot(params["bv"].astype(f32), params["wo"].astype(f32)) \
        + params["bo"].astype(f32)

    param_list = [
        params["w1"].astype(bf16), params["b1"],
        w_attn.astype(bf16), b_attn,
        params["g1"], params["be1"],
        params["wf1"].astype(bf16), params["bf1"],
        params["wf2"].astype(bf16), params["bf2"],
        params["g2"], params["be2"],
        params["w2"].astype(bf16), params["b2"],
        params["w3"].astype(bf16), params["b3"],
    ]

    # Weights are small (~1.2 MB in bf16): keep every parameter fully resident
    # (block = full array, constant index_map); only the row axis is tiled.
    weight_specs = [
        pl.BlockSpec(p.shape, lambda i: (0, 0)) for p in param_list
    ]

    grid = (padded // tile,)
    out = pl.pallas_call(
        clf_kernel,
        out_shape=jax.ShapeDtypeStruct((padded, NUM_CLASSES), jnp.float32),
        grid_spec=pltpu.PrefetchScalarGridSpec(
            num_scalar_prefetch=0,
            grid=grid,
            in_specs=[pl.BlockSpec((tile, BERT_SIZE), lambda i: (i, 0))]
            + weight_specs,
            out_specs=pl.BlockSpec((tile, NUM_CLASSES), lambda i: (i, 0)),
        ),
        compiler_params=pltpu.CompilerParams(
            dimension_semantics=("parallel",),
            vmem_limit_bytes=48 * 1024 * 1024,
        ),
    )(x2, *param_list)
    return out[:n_rows]


def init_params(key):
    """Deterministic synthetic parameters (shapes from CLF_Model.__init__)."""
    ks = jax.random.split(key, 12)
    scale = 0.02

    def w(k, shape):
        return (scale * jax.random.normal(k, shape)).astype(jnp.float32)

    params = {
        # linear1: bert_size -> hidden
        "w1": w(ks[0], (BERT_SIZE, HIDDEN)),
        "b1": w(ks[1], (1, HIDDEN)),
        # MHA (only V-proj slice + out-proj matter for seq_len == 1)
        "wv": w(ks[2], (HIDDEN, HIDDEN)),
        "bv": w(ks[3], (1, HIDDEN)),
        "wo": w(ks[4], (HIDDEN, HIDDEN)),
        "bo": w(ks[5], (1, HIDDEN)),
        # layernorm 1 / 2 (default init: gamma=1, beta=0)
        "g1": jnp.ones((1, HIDDEN), jnp.float32),
        "be1": jnp.zeros((1, HIDDEN), jnp.float32),
        "g2": jnp.ones((1, HIDDEN), jnp.float32),
        "be2": jnp.zeros((1, HIDDEN), jnp.float32),
        # transformer feed-forward: hidden -> 2048 -> hidden
        "wf1": w(ks[6], (HIDDEN, FFN)),
        "bf1": w(ks[7], (1, FFN)),
        "wf2": w(ks[8], (FFN, HIDDEN)),
        "bf2": w(ks[9], (1, HIDDEN)),
        # linear2: hidden -> 64, linear3: 64 -> 2
        "w2": w(ks[10], (HIDDEN, 64)),
        "b2": jnp.zeros((1, 64), jnp.float32),
        "w3": w(ks[11], (64, NUM_CLASSES)),
        "b3": jnp.zeros((1, NUM_CLASSES), jnp.float32),
    }
    return params
    # TODO(synk): dropout layers inside TransformerEncoderLayer are treated as
    # identity (eval-mode); train-mode stochastic dropout is not implemented.


if __name__ == "__main__":
    key = jax.random.PRNGKey(0)
    k_x, k_p = jax.random.split(key)

    N = 16  # number of token rows (transformer batch after unsqueeze(0))
    x = jax.random.normal(k_x, (N, 1, BERT_SIZE), dtype=jnp.float32)
    params = init_params(k_p)

    out = clf_forward(x, params)
    out = jax.block_until_ready(out)
    assert out.shape == (N, NUM_CLASSES)
    assert jnp.all(jnp.isfinite(out))
    print("KERNEL_OK")
</pallas_src>

<mosaic_0001>
module attributes {stable_mosaic.version = 11 : i64} {
  func.func @clf_kernel(%arg0: i32, %arg1: memref<8x256xf32, #tpu.memory_space<vmem>>, %arg2: memref<256x128xbf16, #tpu.memory_space<vmem>>, %arg3: memref<1x128xf32, #tpu.memory_space<vmem>>, %arg4: memref<128x128xbf16, #tpu.memory_space<vmem>>, %arg5: memref<1x128xf32, #tpu.memory_space<vmem>>, %arg6: memref<1x128xf32, #tpu.memory_space<vmem>>, %arg7: memref<1x128xf32, #tpu.memory_space<vmem>>, %arg8: memref<128x2048xbf16, #tpu.memory_space<vmem>>, %arg9: memref<1x2048xf32, #tpu.memory_space<vmem>>, %arg10: memref<2048x128xbf16, #tpu.memory_space<vmem>>, %arg11: memref<1x128xf32, #tpu.memory_space<vmem>>, %arg12: memref<1x128xf32, #tpu.memory_space<vmem>>, %arg13: memref<1x128xf32, #tpu.memory_space<vmem>>, %arg14: memref<128x64xbf16, #tpu.memory_space<vmem>>, %arg15: memref<1x64xf32, #tpu.memory_space<vmem>>, %arg16: memref<64x2xbf16, #tpu.memory_space<vmem>>, %arg17: memref<1x2xf32, #tpu.memory_space<vmem>>, %arg18: memref<8x2xf32, #tpu.memory_space<vmem>>) attributes {dimension_semantics = [#tpu.dimension_semantics<parallel>], iteration_bounds = array<i64: 2>, scalar_prefetch = 0 : i64, scratch_operands = 0 : i64, tpu.core_type = #tpu.core_type<tc>, window_params = [{transform_indices = @transform_0, window_bounds = array<i64: 8, 256>}, {pipeline_mode = #tpu.pipeline_mode<synchronous>, transform_indices = @transform_1, window_bounds = array<i64: 256, 128>}, {pipeline_mode = #tpu.pipeline_mode<synchronous>, transform_indices = @transform_2, window_bounds = array<i64: 1, 128>}, {pipeline_mode = #tpu.pipeline_mode<synchronous>, transform_indices = @transform_3, window_bounds = array<i64: 128, 128>}, {pipeline_mode = #tpu.pipeline_mode<synchronous>, transform_indices = @transform_4, window_bounds = array<i64: 1, 128>}, {pipeline_mode = #tpu.pipeline_mode<synchronous>, transform_indices = @transform_5, window_bounds = array<i64: 1, 128>}, {pipeline_mode = #tpu.pipeline_mode<synchronous>, transform_indices = @transform_6, window_bounds = array<i64: 1, 128>}, {pipeline_mode = #tpu.pipeline_mode<synchronous>, transform_indices = @transform_7, window_bounds = array<i64: 128, 2048>}, {pipeline_mode = #tpu.pipeline_mode<synchronous>, transform_indices = @transform_8, window_bounds = array<i64: 1, 2048>}, {pipeline_mode = #tpu.pipeline_mode<synchronous>, transform_indices = @transform_9, window_bounds = array<i64: 2048, 128>}, {pipeline_mode = #tpu.pipeline_mode<synchronous>, transform_indices = @transform_10, window_bounds = array<i64: 1, 128>}, {pipeline_mode = #tpu.pipeline_mode<synchronous>, transform_indices = @transform_11, window_bounds = array<i64: 1, 128>}, {pipeline_mode = #tpu.pipeline_mode<synchronous>, transform_indices = @transform_12, window_bounds = array<i64: 1, 128>}, {pipeline_mode = #tpu.pipeline_mode<synchronous>, transform_indices = @transform_13, window_bounds = array<i64: 128, 64>}, {pipeline_mode = #tpu.pipeline_mode<synchronous>, transform_indices = @transform_14, window_bounds = array<i64: 1, 64>}, {pipeline_mode = #tpu.pipeline_mode<synchronous>, transform_indices = @transform_15, window_bounds = array<i64: 64, 2>}, {pipeline_mode = #tpu.pipeline_mode<synchronous>, transform_indices = @transform_16, window_bounds = array<i64: 1, 2>}, {transform_indices = @transform_17, window_bounds = array<i64: 8, 2>}]} {
    %c0 = arith.constant 0 : index
    %c0_0 = arith.constant 0 : index
    %0 = vector.load %arg1[%c0, %c0_0] : memref<8x256xf32, #tpu.memory_space<vmem>>, vector<8x256xf32>
    %1 = arith.truncf %0 : vector<8x256xf32> to vector<8x256xbf16>
    %c0_1 = arith.constant 0 : index
    %c0_2 = arith.constant 0 : index
    %2 = vector.load %arg2[%c0_1, %c0_2] : memref<256x128xbf16, #tpu.memory_space<vmem>>, vector<256x128xbf16>
    %cst = arith.constant dense<0.000000e+00> : vector<8x128xf32>
    %3 = tpu.matmul %1, %2, %cst {dimension_numbers = #tpu.dot_dimension_numbers<[1], [0], [0], [1], [0, 0, 1, 1], [], []>} : vector<8x256xbf16>, vector<256x128xbf16>, vector<8x128xf32> -> vector<8x128xf32>
    %c0_3 = arith.constant 0 : index
    %c0_4 = arith.constant 0 : index
    %4 = vector.load %arg3[%c0_3, %c0_4] : memref<1x128xf32, #tpu.memory_space<vmem>>, vector<1x128xf32>
    %5 = vector.broadcast %4 : vector<1x128xf32> to vector<8x128xf32>
    %6 = arith.addf %3, %5 : vector<8x128xf32>
    %cst_5 = arith.constant 5.000000e-01 : f32
    %7 = vector.broadcast %cst_5 : f32 to vector<8x128xf32>
    %8 = arith.mulf %7, %6 : vector<8x128xf32>
    %cst_6 = arith.constant 0.707106769 : f32
    %9 = vector.broadcast %cst_6 : f32 to vector<8x128xf32>
    %10 = arith.mulf %6, %9 : vector<8x128xf32>
    %11 = math.erf %10 : vector<8x128xf32>
    %cst_7 = arith.constant 1.000000e+00 : f32
    %12 = vector.broadcast %cst_7 : f32 to vector<8x128xf32>
    %13 = arith.addf %12, %11 : vector<8x128xf32>
    %14 = arith.mulf %8, %13 : vector<8x128xf32>
    %15 = arith.truncf %14 : vector<8x128xf32> to vector<8x128xbf16>
    %c0_8 = arith.constant 0 : index
    %c0_9 = arith.constant 0 : index
    %16 = vector.load %arg4[%c0_8, %c0_9] : memref<128x128xbf16, #tpu.memory_space<vmem>>, vector<128x128xbf16>
    %cst_10 = arith.constant dense<0.000000e+00> : vector<8x128xf32>
    %17 = tpu.matmul %15, %16, %cst_10 {dimension_numbers = #tpu.dot_dimension_numbers<[1], [0], [0], [1], [0, 0, 1, 1], [], []>} : vector<8x128xbf16>, vector<128x128xbf16>, vector<8x128xf32> -> vector<8x128xf32>
    %c0_11 = arith.constant 0 : index
    %c0_12 = arith.constant 0 : index
    %18 = vector.load %arg5[%c0_11, %c0_12] : memref<1x128xf32, #tpu.memory_space<vmem>>, vector<1x128xf32>
    %19 = vector.broadcast %18 : vector<1x128xf32> to vector<8x128xf32>
    %20 = arith.addf %17, %19 : vector<8x128xf32>
    %21 = arith.addf %14, %20 : vector<8x128xf32>
    %c0_13 = arith.constant 0 : index
    %c0_14 = arith.constant 0 : index
    %22 = vector.load %arg6[%c0_13, %c0_14] : memref<1x128xf32, #tpu.memory_space<vmem>>, vector<1x128xf32>
    %c0_15 = arith.constant 0 : index
    %c0_16 = arith.constant 0 : index
    %23 = vector.load %arg7[%c0_15, %c0_16] : memref<1x128xf32, #tpu.memory_space<vmem>>, vector<1x128xf32>
    %cst_17 = arith.constant dense<0.000000e+00> : vector<8xf32>
    %24 = vector.multi_reduction <add>, %21, %cst_17 [1] : vector<8x128xf32> to vector<8xf32>
    %25 = vector.shape_cast %24 : vector<8xf32> to vector<8x1xf32>
    %cst_18 = arith.constant 1.280000e+02 : f32
    %26 = vector.broadcast %cst_18 : f32 to vector<8x1xf32>
    %27 = arith.divf %25, %26 : vector<8x1xf32>
    %28 = vector.broadcast %27 : vector<8x1xf32> to vector<8x128xf32>
    %29 = arith.subf %21, %28 : vector<8x128xf32>
    %30 = arith.mulf %29, %29 : vector<8x128xf32>
    %cst_19 = arith.constant dense<0.000000e+00> : vector<8xf32>
    %31 = vector.multi_reduction <add>, %30, %cst_19 [1] : vector<8x128xf32> to vector<8xf32>
    %32 = vector.shape_cast %31 : vector<8xf32> to vector<8x1xf32>
    %cst_20 = arith.constant 1.280000e+02 : f32
    %33 = vector.broadcast %cst_20 : f32 to vector<8x1xf32>
    %34 = arith.divf %32, %33 : vector<8x1xf32>
    %35 = vector.broadcast %27 : vector<8x1xf32> to vector<8x128xf32>
    %36 = arith.subf %21, %35 : vector<8x128xf32>
    %cst_21 = arith.constant 9.99999974E-6 : f32
    %37 = vector.broadcast %cst_21 : f32 to vector<8x1xf32>
    %38 = arith.addf %34, %37 : vector<8x1xf32>
    %39 = math.rsqrt %38 : vector<8x1xf32>
    %40 = vector.broadcast %39 : vector<8x1xf32> to vector<8x128xf32>
    %41 = arith.mulf %36, %40 : vector<8x128xf32>
    %42 = vector.broadcast %22 : vector<1x128xf32> to vector<8x128xf32>
    %43 = arith.mulf %41, %42 : vector<8x128xf32>
    %44 = vector.broadcast %23 : vector<1x128xf32> to vector<8x128xf32>
    %45 = arith.addf %43, %44 : vector<8x128xf32>
    %46 = arith.truncf %45 : vector<8x128xf32> to vector<8x128xbf16>
    %c0_22 = arith.constant 0 : index
    %c0_23 = arith.constant 0 : index
    %47 = vector.load %arg8[%c0_22, %c0_23] : memref<128x2048xbf16, #tpu.memory_space<vmem>>, vector<128x2048xbf16>
    %cst_24 = arith.constant dense<0.000000e+00> : vector<8x2048xf32>
    %48 = tpu.matmul %46, %47, %cst_24 {dimension_numbers = #tpu.dot_dimension_numbers<[1], [0], [0], [1], [0, 0, 1, 1], [], []>} : vector<8x128xbf16>, vector<128x2048xbf16>, vector<8x2048xf32> -> vector<8x2048xf32>
    %c0_25 = arith.constant 0 : index
    %c0_26 = arith.constant 0 : index
    %49 = vector.load %arg9[%c0_25, %c0_26] : memref<1x2048xf32, #tpu.memory_space<vmem>>, vector<1x2048xf32>
    %50 = vector.broadcast %49 : vector<1x2048xf32> to vector<8x2048xf32>
    %51 = arith.addf %48, %50 : vector<8x2048xf32>
    %cst_27 = arith.constant 0.000000e+00 : f32
    %52 = vector.broadcast %cst_27 : f32 to vector<8x2048xf32>
    %53 = arith.maximumf %51, %52 : vector<8x2048xf32>
    %54 = arith.truncf %53 : vector<8x2048xf32> to vector<8x2048xbf16>
    %c0_28 = arith.constant 0 : index
    %c0_29 = arith.constant 0 : index
    %55 = vector.load %arg10[%c0_28, %c0_29] : memref<2048x128xbf16, #tpu.memory_space<vmem>>, vector<2048x128xbf16>
    %cst_30 = arith.constant dense<0.000000e+00> : vector<8x128xf32>
    %56 = tpu.matmul %54, %55, %cst_30 {dimension_numbers = #tpu.dot_dimension_numbers<[1], [0], [0], [1], [0, 0, 1, 1], [], []>} : vector<8x2048xbf16>, vector<2048x128xbf16>, vector<8x128xf32> -> vector<8x128xf32>
    %c0_31 = arith.constant 0 : index
    %c0_32 = arith.constant 0 : index
    %57 = vector.load %arg11[%c0_31, %c0_32] : memref<1x128xf32, #tpu.memory_space<vmem>>, vector<1x128xf32>
    %58 = vector.broadcast %57 : vector<1x128xf32> to vector<8x128xf32>
    %59 = arith.addf %56, %58 : vector<8x128xf32>
    %60 = arith.addf %45, %59 : vector<8x128xf32>
    %c0_33 = arith.constant 0 : index
    %c0_34 = arith.constant 0 : index
    %61 = vector.load %arg12[%c0_33, %c0_34] : memref<1x128xf32, #tpu.memory_space<vmem>>, vector<1x128xf32>
    %c0_35 = arith.constant 0 : index
    %c0_36 = arith.constant 0 : index
    %62 = vector.load %arg13[%c0_35, %c0_36] : memref<1x128xf32, #tpu.memory_space<vmem>>, vector<1x128xf32>
    %cst_37 = arith.constant dense<0.000000e+00> : vector<8xf32>
    %63 = vector.multi_reduction <add>, %60, %cst_37 [1] : vector<8x128xf32> to vector<8xf32>
    %64 = vector.shape_cast %63 : vector<8xf32> to vector<8x1xf32>
    %cst_38 = arith.constant 1.280000e+02 : f32
    %65 = vector.broadcast %cst_38 : f32 to vector<8x1xf32>
    %66 = arith.divf %64, %65 : vector<8x1xf32>
    %67 = vector.broadcast %66 : vector<8x1xf32> to vector<8x128xf32>
    %68 = arith.subf %60, %67 : vector<8x128xf32>
    %69 = arith.mulf %68, %68 : vector<8x128xf32>
    %cst_39 = arith.constant dense<0.000000e+00> : vector<8xf32>
    %70 = vector.multi_reduction <add>, %69, %cst_39 [1] : vector<8x128xf32> to vector<8xf32>
    %71 = vector.shape_cast %70 : vector<8xf32> to vector<8x1xf32>
    %cst_40 = arith.constant 1.280000e+02 : f32
    %72 = vector.broadcast %cst_40 : f32 to vector<8x1xf32>
    %73 = arith.divf %71, %72 : vector<8x1xf32>
    %74 = vector.broadcast %66 : vector<8x1xf32> to vector<8x128xf32>
    %75 = arith.subf %60, %74 : vector<8x128xf32>
    %cst_41 = arith.constant 9.99999974E-6 : f32
    %76 = vector.broadcast %cst_41 : f32 to vector<8x1xf32>
    %77 = arith.addf %73, %76 : vector<8x1xf32>
    %78 = math.rsqrt %77 : vector<8x1xf32>
    %79 = vector.broadcast %78 : vector<8x1xf32> to vector<8x128xf32>
    %80 = arith.mulf %75, %79 : vector<8x128xf32>
    %81 = vector.broadcast %61 : vector<1x128xf32> to vector<8x128xf32>
    %82 = arith.mulf %80, %81 : vector<8x128xf32>
    %83 = vector.broadcast %62 : vector<1x128xf32> to vector<8x128xf32>
    %84 = arith.addf %82, %83 : vector<8x128xf32>
    %85 = arith.truncf %84 : vector<8x128xf32> to vector<8x128xbf16>
    %c0_42 = arith.constant 0 : index
    %c0_43 = arith.constant 0 : index
    %86 = vector.load %arg4[%c0_42, %c0_43] : memref<128x128xbf16, #tpu.memory_space<vmem>>, vector<128x128xbf16>
    %cst_44 = arith.constant dense<0.000000e+00> : vector<8x128xf32>
    %87 = tpu.matmul %85, %86, %cst_44 {dimension_numbers = #tpu.dot_dimension_numbers<[1], [0], [0], [1], [0, 0, 1, 1], [], []>} : vector<8x128xbf16>, vector<128x128xbf16>, vector<8x128xf32> -> vector<8x128xf32>
    %c0_45 = arith.constant 0 : index
    %c0_46 = arith.constant 0 : index
    %88 = vector.load %arg5[%c0_45, %c0_46] : memref<1x128xf32, #tpu.memory_space<vmem>>, vector<1x128xf32>
    %89 = vector.broadcast %88 : vector<1x128xf32> to vector<8x128xf32>
    %90 = arith.addf %87, %89 : vector<8x128xf32>
    %91 = arith.addf %84, %90 : vector<8x128xf32>
    %c0_47 = arith.constant 0 : index
    %c0_48 = arith.constant 0 : index
    %92 = vector.load %arg6[%c0_47, %c0_48] : memref<1x128xf32, #tpu.memory_space<vmem>>, vector<1x128xf32>
    %c0_49 = arith.constant 0 : index
    %c0_50 = arith.constant 0 : index
    %93 = vector.load %arg7[%c0_49, %c0_50] : memref<1x128xf32, #tpu.memory_space<vmem>>, vector<1x128xf32>
    %cst_51 = arith.constant dense<0.000000e+00> : vector<8xf32>
    %94 = vector.multi_reduction <add>, %91, %cst_51 [1] : vector<8x128xf32> to vector<8xf32>
    %95 = vector.shape_cast %94 : vector<8xf32> to vector<8x1xf32>
    %cst_52 = arith.constant 1.280000e+02 : f32
    %96 = vector.broadcast %cst_52 : f32 to vector<8x1xf32>
    %97 = arith.divf %95, %96 : vector<8x1xf32>
    %98 = vector.broadcast %97 : vector<8x1xf32> to vector<8x128xf32>
    %99 = arith.subf %91, %98 : vector<8x128xf32>
    %100 = arith.mulf %99, %99 : vector<8x128xf32>
    %cst_53 = arith.constant dense<0.000000e+00> : vector<8xf32>
    %101 = vector.multi_reduction <add>, %100, %cst_53 [1] : vector<8x128xf32> to vector<8xf32>
    %102 = vector.shape_cast %101 : vector<8xf32> to vector<8x1xf32>
    %cst_54 = arith.constant 1.280000e+02 : f32
    %103 = vector.broadcast %cst_54 : f32 to vector<8x1xf32>
    %104 = arith.divf %102, %103 : vector<8x1xf32>
    %105 = vector.broadcast %97 : vector<8x1xf32> to vector<8x128xf32>
    %106 = arith.subf %91, %105 : vector<8x128xf32>
    %cst_55 = arith.constant 9.99999974E-6 : f32
    %107 = vector.broadcast %cst_55 : f32 to vector<8x1xf32>
    %108 = arith.addf %104, %107 : vector<8x1xf32>
    %109 = math.rsqrt %108 : vector<8x1xf32>
    %110 = vector.broadcast %109 : vector<8x1xf32> to vector<8x128xf32>
    %111 = arith.mulf %106, %110 : vector<8x128xf32>
    %112 = vector.broadcast %92 : vector<1x128xf32> to vector<8x128xf32>
    %113 = arith.mulf %111, %112 : vector<8x128xf32>
    %114 = vector.broadcast %93 : vector<1x128xf32> to vector<8x128xf32>
    %115 = arith.addf %113, %114 : vector<8x128xf32>
    %116 = arith.truncf %115 : vector<8x128xf32> to vector<8x128xbf16>
    %c0_56 = arith.constant 0 : index
    %c0_57 = arith.constant 0 : index
    %117 = vector.load %arg8[%c0_56, %c0_57] : memref<128x2048xbf16, #tpu.memory_space<vmem>>, vector<128x2048xbf16>
    %cst_58 = arith.constant dense<0.000000e+00> : vector<8x2048xf32>
    %118 = tpu.matmul %116, %117, %cst_58 {dimension_numbers = #tpu.dot_dimension_numbers<[1], [0], [0], [1], [0, 0, 1, 1], [], []>} : vector<8x128xbf16>, vector<128x2048xbf16>, vector<8x2048xf32> -> vector<8x2048xf32>
    %c0_59 = arith.constant 0 : index
    %c0_60 = arith.constant 0 : index
    %119 = vector.load %arg9[%c0_59, %c0_60] : memref<1x2048xf32, #tpu.memory_space<vmem>>, vector<1x2048xf32>
    %120 = vector.broadcast %119 : vector<1x2048xf32> to vector<8x2048xf32>
    %121 = arith.addf %118, %120 : vector<8x2048xf32>
    %cst_61 = arith.constant 0.000000e+00 : f32
    %122 = vector.broadcast %cst_61 : f32 to vector<8x2048xf32>
    %123 = arith.maximumf %121, %122 : vector<8x2048xf32>
    %124 = arith.truncf %123 : vector<8x2048xf32> to vector<8x2048xbf16>
    %c0_62 = arith.constant 0 : index
    %c0_63 = arith.constant 0 : index
    %125 = vector.load %arg10[%c0_62, %c0_63] : memref<2048x128xbf16, #tpu.memory_space<vmem>>, vector<2048x128xbf16>
    %cst_64 = arith.constant dense<0.000000e+00> : vector<8x128xf32>
    %126 = tpu.matmul %124, %125, %cst_64 {dimension_numbers = #tpu.dot_dimension_numbers<[1], [0], [0], [1], [0, 0, 1, 1], [], []>} : vector<8x2048xbf16>, vector<2048x128xbf16>, vector<8x128xf32> -> vector<8x128xf32>
    %c0_65 = arith.constant 0 : index
    %c0_66 = arith.constant 0 : index
    %127 = vector.load %arg11[%c0_65, %c0_66] : memref<1x128xf32, #tpu.memory_space<vmem>>, vector<1x128xf32>
    %128 = vector.broadcast %127 : vector<1x128xf32> to vector<8x128xf32>
    %129 = arith.addf %126, %128 : vector<8x128xf32>
    %130 = arith.addf %115, %129 : vector<8x128xf32>
    %c0_67 = arith.constant 0 : index
    %c0_68 = arith.constant 0 : index
    %131 = vector.load %arg12[%c0_67, %c0_68] : memref<1x128xf32, #tpu.memory_space<vmem>>, vector<1x128xf32>
    %c0_69 = arith.constant 0 : index
    %c0_70 = arith.constant 0 : index
    %132 = vector.load %arg13[%c0_69, %c0_70] : memref<1x128xf32, #tpu.memory_space<vmem>>, vector<1x128xf32>
    %cst_71 = arith.constant dense<0.000000e+00> : vector<8xf32>
    %133 = vector.multi_reduction <add>, %130, %cst_71 [1] : vector<8x128xf32> to vector<8xf32>
    %134 = vector.shape_cast %133 : vector<8xf32> to vector<8x1xf32>
    %cst_72 = arith.constant 1.280000e+02 : f32
    %135 = vector.broadcast %cst_72 : f32 to vector<8x1xf32>
    %136 = arith.divf %134, %135 : vector<8x1xf32>
    %137 = vector.broadcast %136 : vector<8x1xf32> to vector<8x128xf32>
    %138 = arith.subf %130, %137 : vector<8x128xf32>
    %139 = arith.mulf %138, %138 : vector<8x128xf32>
    %cst_73 = arith.constant dense<0.000000e+00> : vector<8xf32>
    %140 = vector.multi_reduction <add>, %139, %cst_73 [1] : vector<8x128xf32> to vector<8xf32>
    %141 = vector.shape_cast %140 : vector<8xf32> to vector<8x1xf32>
    %cst_74 = arith.constant 1.280000e+02 : f32
    %142 = vector.broadcast %cst_74 : f32 to vector<8x1xf32>
    %143 = arith.divf %141, %142 : vector<8x1xf32>
    %144 = vector.broadcast %136 : vector<8x1xf32> to vector<8x128xf32>
    %145 = arith.subf %130, %144 : vector<8x128xf32>
    %cst_75 = arith.constant 9.99999974E-6 : f32
    %146 = vector.broadcast %cst_75 : f32 to vector<8x1xf32>
    %147 = arith.addf %143, %146 : vector<8x1xf32>
    %148 = math.rsqrt %147 : vector<8x1xf32>
    %149 = vector.broadcast %148 : vector<8x1xf32> to vector<8x128xf32>
    %150 = arith.mulf %145, %149 : vector<8x128xf32>
    %151 = vector.broadcast %131 : vector<1x128xf32> to vector<8x128xf32>
    %152 = arith.mulf %150, %151 : vector<8x128xf32>
    %153 = vector.broadcast %132 : vector<1x128xf32> to vector<8x128xf32>
    %154 = arith.addf %152, %153 : vector<8x128xf32>
    %155 = arith.truncf %154 : vector<8x128xf32> to vector<8x128xbf16>
    %c0_76 = arith.constant 0 : index
    %c0_77 = arith.constant 0 : index
    %156 = vector.load %arg14[%c0_76, %c0_77] : memref<128x64xbf16, #tpu.memory_space<vmem>>, vector<128x64xbf16>
    %cst_78 = arith.constant dense<0.000000e+00> : vector<8x64xf32>
    %157 = tpu.matmul %155, %156, %cst_78 {dimension_numbers = #tpu.dot_dimension_numbers<[1], [0], [0], [1], [0, 0, 1, 1], [], []>} : vector<8x128xbf16>, vector<128x64xbf16>, vector<8x64xf32> -> vector<8x64xf32>
    %c0_79 = arith.constant 0 : index
    %c0_80 = arith.constant 0 : index
    %158 = vector.load %arg15[%c0_79, %c0_80] : memref<1x64xf32, #tpu.memory_space<vmem>>, vector<1x64xf32>
    %159 = vector.broadcast %158 : vector<1x64xf32> to vector<8x64xf32>
    %160 = arith.addf %157, %159 : vector<8x64xf32>
    %cst_81 = arith.constant 5.000000e-01 : f32
    %161 = vector.broadcast %cst_81 : f32 to vector<8x64xf32>
    %162 = arith.mulf %161, %160 : vector<8x64xf32>
    %cst_82 = arith.constant 0.707106769 : f32
    %163 = vector.broadcast %cst_82 : f32 to vector<8x64xf32>
    %164 = arith.mulf %160, %163 : vector<8x64xf32>
    %165 = math.erf %164 : vector<8x64xf32>
    %cst_83 = arith.constant 1.000000e+00 : f32
    %166 = vector.broadcast %cst_83 : f32 to vector<8x64xf32>
    %167 = arith.addf %166, %165 : vector<8x64xf32>
    %168 = arith.mulf %162, %167 : vector<8x64xf32>
    %169 = arith.truncf %168 : vector<8x64xf32> to vector<8x64xbf16>
    %c0_84 = arith.constant 0 : index
    %c0_85 = arith.constant 0 : index
    %170 = vector.load %arg16[%c0_84, %c0_85] : memref<64x2xbf16, #tpu.memory_space<vmem>>, vector<64x2xbf16>
    %cst_86 = arith.constant dense<0.000000e+00> : vector<8x2xf32>
    %171 = tpu.matmul %169, %170, %cst_86 {dimension_numbers = #tpu.dot_dimension_numbers<[1], [0], [0], [1], [0, 0, 1, 1], [], []>} : vector<8x64xbf16>, vector<64x2xbf16>, vector<8x2xf32> -> vector<8x2xf32>
    %c0_87 = arith.constant 0 : index
    %c0_88 = arith.constant 0 : index
    %172 = vector.load %arg17[%c0_87, %c0_88] : memref<1x2xf32, #tpu.memory_space<vmem>>, vector<1x2xf32>
    %173 = vector.broadcast %172 : vector<1x2xf32> to vector<8x2xf32>
    %174 = arith.addf %171, %173 : vector<8x2xf32>
    %c0_89 = arith.constant 0 : index
    %c0_90 = arith.constant 0 : index
    %175 = vector.load %arg18[%c0_89, %c0_90] : memref<8x2xf32, #tpu.memory_space<vmem>>, vector<8x2xf32>
    tpu.vector_store %arg18[%c0_89, %c0_90], %174 {strides = array<i32>} : memref<8x2xf32, #tpu.memory_space<vmem>>, vector<8x2xf32>,
    return
  }
  func.func @transform_0(%arg0: i32) -> (i32, i32) {
    %c0_i32 = arith.constant 0 : i32
    %c0_i32_0 = arith.constant 0 : i32
    return %arg0, %c0_i32 : i32, i32
  }
  func.func @transform_1(%arg0: i32) -> (i32, i32) {
    %c0_i32 = arith.constant 0 : i32
    %c0_i32_0 = arith.constant 0 : i32
    %c0_i32_1 = arith.constant 0 : i32
    return %c0_i32, %c0_i32_0 : i32, i32
  }
  func.func @transform_2(%arg0: i32) -> (i32, i32) {
    %c0_i32 = arith.constant 0 : i32
    %c0_i32_0 = arith.constant 0 : i32
    %c0_i32_1 = arith.constant 0 : i32
    return %c0_i32, %c0_i32_0 : i32, i32
  }
  func.func @transform_3(%arg0: i32) -> (i32, i32) {
    %c0_i32 = arith.constant 0 : i32
    %c0_i32_0 = arith.constant 0 : i32
    %c0_i32_1 = arith.constant 0 : i32
    return %c0_i32, %c0_i32_0 : i32, i32
  }
  func.func @transform_4(%arg0: i32) -> (i32, i32) {
    %c0_i32 = arith.constant 0 : i32
    %c0_i32_0 = arith.constant 0 : i32
    %c0_i32_1 = arith.constant 0 : i32
    return %c0_i32, %c0_i32_0 : i32, i32
  }
  func.func @transform_5(%arg0: i32) -> (i32, i32) {
    %c0_i32 = arith.constant 0 : i32
    %c0_i32_0 = arith.constant 0 : i32
    %c0_i32_1 = arith.constant 0 : i32
    return %c0_i32, %c0_i32_0 : i32, i32
  }
  func.func @transform_6(%arg0: i32) -> (i32, i32) {
    %c0_i32 = arith.constant 0 : i32
    %c0_i32_0 = arith.constant 0 : i32
    %c0_i32_1 = arith.constant 0 : i32
    return %c0_i32, %c0_i32_0 : i32, i32
  }
  func.func @transform_7(%arg0: i32) -> (i32, i32) {
    %c0_i32 = arith.constant 0 : i32
    %c0_i32_0 = arith.constant 0 : i32
    %c0_i32_1 = arith.constant 0 : i32
    return %c0_i32, %c0_i32_0 : i32, i32
  }
  func.func @transform_8(%arg0: i32) -> (i32, i32) {
    %c0_i32 = arith.constant 0 : i32
    %c0_i32_0 = arith.constant 0 : i32
    %c0_i32_1 = arith.constant 0 : i32
    return %c0_i32, %c0_i32_0 : i32, i32
  }
  func.func @transform_9(%arg0: i32) -> (i32, i32) {
    %c0_i32 = arith.constant 0 : i32
    %c0_i32_0 = arith.constant 0 : i32
    %c0_i32_1 = arith.constant 0 : i32
    return %c0_i32, %c0_i32_0 : i32, i32
  }
  func.func @transform_10(%arg0: i32) -> (i32, i32) {
    %c0_i32 = arith.constant 0 : i32
    %c0_i32_0 = arith.constant 0 : i32
    %c0_i32_1 = arith.constant 0 : i32
    return %c0_i32, %c0_i32_0 : i32, i32
  }
  func.func @transform_11(%arg0: i32) -> (i32, i32) {
    %c0_i32 = arith.constant 0 : i32
    %c0_i32_0 = arith.constant 0 : i32
    %c0_i32_1 = arith.constant 0 : i32
    return %c0_i32, %c0_i32_0 : i32, i32
  }
  func.func @transform_12(%arg0: i32) -> (i32, i32) {
    %c0_i32 = arith.constant 0 : i32
    %c0_i32_0 = arith.constant 0 : i32
    %c0_i32_1 = arith.constant 0 : i32
    return %c0_i32, %c0_i32_0 : i32, i32
  }
  func.func @transform_13(%arg0: i32) -> (i32, i32) {
    %c0_i32 = arith.constant 0 : i32
    %c0_i32_0 = arith.constant 0 : i32
    %c0_i32_1 = arith.constant 0 : i32
    return %c0_i32, %c0_i32_0 : i32, i32
  }
  func.func @transform_14(%arg0: i32) -> (i32, i32) {
    %c0_i32 = arith.constant 0 : i32
    %c0_i32_0 = arith.constant 0 : i32
    %c0_i32_1 = arith.constant 0 : i32
    return %c0_i32, %c0_i32_0 : i32, i32
  }
  func.func @transform_15(%arg0: i32) -> (i32, i32) {
    %c0_i32 = arith.constant 0 : i32
    %c0_i32_0 = arith.constant 0 : i32
    %c0_i32_1 = arith.constant 0 : i32
    return %c0_i32, %c0_i32_0 : i32, i32
  }
  func.func @transform_16(%arg0: i32) -> (i32, i32) {
    %c0_i32 = arith.constant 0 : i32
    %c0_i32_0 = arith.constant 0 : i32
    %c0_i32_1 = arith.constant 0 : i32
    return %c0_i32, %c0_i32_0 : i32, i32
  }
  func.func @transform_17(%arg0: i32) -> (i32, i32) {
    %c0_i32 = arith.constant 0 : i32
    %c0_i32_0 = arith.constant 0 : i32
    return %arg0, %c0_i32 : i32, i32
  }
}

</mosaic_0001>

<llo_original>
// kernel: clf_forward.1
$region0: #{clf_forward.1}
  #allocation0 [shape = 'u32[]', space=smem, size = 0x4, offset = 0x4, fixed_abs, tag = 'smem constant byte address 0x4 - core index']
  #allocation1 [shape = 'u32[144,128]{1,0:T(1,128)}', space=vmem, size = 0x12000, scoped, tag = 'internal scratch']
  %s0 = inlined_call_operand.vmem [shape: f32[16,256], index: 0, kind: input, shape index: {}]
  %s1 = inlined_call_operand.vmem [shape: bf16[256,128], index: 1, kind: input, shape index: {}]
  %s2 = inlined_call_operand.vmem [shape: f32[1,128], index: 2, kind: input, shape index: {}]
  %s3 = inlined_call_operand.vmem [shape: bf16[128,128], index: 3, kind: input, shape index: {}]
  %s4 = inlined_call_operand.vmem [shape: f32[1,128], index: 4, kind: input, shape index: {}]
  %s5 = inlined_call_operand.vmem [shape: f32[1,128], index: 5, kind: input, shape index: {}]
  %s6 = inlined_call_operand.vmem [shape: f32[1,128], index: 6, kind: input, shape index: {}]
  %s7 = inlined_call_operand.vmem [shape: bf16[128,2048], index: 7, kind: input, shape index: {}]
  %s8 = inlined_call_operand.vmem [shape: f32[1,2048], index: 8, kind: input, shape index: {}]
  %s9 = inlined_call_operand.vmem [shape: bf16[2048,128], index: 9, kind: input, shape index: {}]
  %s10 = inlined_call_operand.vmem [shape: f32[1,128], index: 10, kind: input, shape index: {}]
  %s11 = inlined_call_operand.vmem [shape: f32[1,128], index: 11, kind: input, shape index: {}]
  %s12 = inlined_call_operand.vmem [shape: f32[1,128], index: 12, kind: input, shape index: {}]
  %s13 = inlined_call_operand.vmem [shape: bf16[128,64], index: 13, kind: input, shape index: {}]
  %s14 = inlined_call_operand.vmem [shape: f32[1,64], index: 14, kind: input, shape index: {}]
  %s15 = inlined_call_operand.vmem [shape: bf16[64,2], index: 15, kind: input, shape index: {}]
  %s16 = inlined_call_operand.vmem [shape: f32[1,2], index: 16, kind: input, shape index: {}]
  %s17 = inlined_call_operand.vmem [shape: f32[16,2], index: 17, kind: output, shape index: {}]
  %s18 = sld [smem:[#allocation0]]
  $region101: #{clf_forward.1} parent=0
    _
  %s20 = ssub.s32 1, %s18
  %s21 = scalar_select 0, %s20, %s18
  loop: start=0, step=1, limit=4
  $region2: #{clf_forward.1} parent=0 // loop_pre_header
    _
  $region3: #{clf_forward.1} parent=0 // loop_header
    %s23 = sphi 0, %s27
    %p24 = scmp.ge.s32.totalorder %s23, 4
    %s33 = sphi 0, %s35
    %s36 = sphi 0, %s33
    %s37 = sphi 0, %s36
    %s53 = sphi 0, %s37
    %s57 = sphi 0, %s57
    %s59 = sphi 0, %s57
    %s60 = sphi 0, %s59
    %s74 = sphi 0, %s60
    %s78 = sphi 0, %s78
    %s80 = sphi 0, %s78
    %s81 = sphi 0, %s80
    %s95 = sphi 0, %s81
    %s99 = sphi 0, %s99
    %s101 = sphi 0, %s99
    %s102 = sphi 0, %s101
    %s116 = sphi 0, %s102
    %s120 = sphi 0, %s120
    %s122 = sphi 0, %s120
    %s123 = sphi 0, %s122
    %s137 = sphi 0, %s123
    %s141 = sphi 0, %s141
    %s143 = sphi 0, %s141
    %s144 = sphi 0, %s143
    %s158 = sphi 0, %s144
    %s162 = sphi 0, %s162
    %s164 = sphi 0, %s162
    %s165 = sphi 0, %s164
    %s179 = sphi 0, %s165
    %s183 = sphi 0, %s183
    %s185 = sphi 0, %s183
    %s186 = sphi 0, %s185
    %s200 = sphi 0, %s186
    %s204 = sphi 0, %s204
    %s206 = sphi 0, %s204
    %s207 = sphi 0, %s206
    %s221 = sphi 0, %s207
    %s225 = sphi 0, %s225
    %s227 = sphi 0, %s225
    %s228 = sphi 0, %s227
    %s242 = sphi 0, %s228
    %s246 = sphi 0, %s246
    %s248 = sphi 0, %s246
    %s249 = sphi 0, %s248
    %s263 = sphi 0, %s249
    %s267 = sphi 0, %s267
    %s269 = sphi 0, %s267
    %s270 = sphi 0, %s269
    %s284 = sphi 0, %s270
    %s288 = sphi 0, %s288
    %s290 = sphi 0, %s288
    %s291 = sphi 0, %s290
    %s305 = sphi 0, %s291
    %s309 = sphi 0, %s309
    %s311 = sphi 0, %s309
    %s312 = sphi 0, %s311
    %s326 = sphi 0, %s312
    %s330 = sphi 0, %s330
    %s332 = sphi 0, %s330
    %s333 = sphi 0, %s332
    %s347 = sphi 0, %s333
    %s351 = sphi 0, %s351
    %s353 = sphi 0, %s351
    %s354 = sphi 0, %s353
    %s368 = sphi 0, %s354
    %s372 = sphi 0, %s372
    %s374 = sphi 0, %s372
    %s375 = sphi 0, %s374
    %s389 = sphi 0, %s375
    %s395 = sphi 0, %s397
    %s398 = sphi 0, %s395
    %s399 = sphi 0, %s398
    %s415 = sphi 0, %s399
  $region4: #{clf_forward.1} parent=0 // loop_header_branch
    %26 = sbr.rel (%p24) target = $region8
  $region5: #{clf_forward.1} parent=0 // loop_body
    %s28 = ssub.s32 %s23, 1
    %s29 = ssub.s32 %s23, 2
    %s30 = sadd.s32 %s23, 1
    %s31 = ssub.s32 %s23, %s30
    %p32 = scmp.eq.s32.totalorder %s31, 0
    %s34 = sadd.s32 %s33, 1
    %s35 = scalar_select %p32, %s33, %s34
    %p38 = pneg %p32
    %p39 = scmp.eq.s32.totalorder %s23, 1
    %p40 = por %p38, %p39
    %p41 = scmp.ne.s32.totalorder %s33, %s36
    %p42 = scmp.eq.s32.totalorder %s23, 0
    %p43 = por %p41, %p42
    %p44 = scmp.ne.s32.totalorder %s33, %s36
    %p45 = scmp.eq.s32.totalorder %s28, 1
    %p46 = por %p44, %p45
    %p47 = scmp.ne.s32.totalorder %s36, %s37
    %p48 = scmp.eq.s32.totalorder %s28, 0
    %p49 = por %p47, %p48
    %p50 = scmp.ne.s32.totalorder %s36, %s37
    %p51 = scmp.eq.s32.totalorder %s29, 1
    %p52 = por %p50, %p51
    %p54 = scmp.ne.s32.totalorder %s37, %s53
    %p55 = scmp.eq.s32.totalorder %s29, 0
    %p56 = por %p54, %p55
    %s58 = sadd.s32 %s57, 1
    %p61 = scmp.eq.s32.totalorder %s23, 1
    %p62 = scmp.ne.s32.totalorder %s57, %s59
    %p63 = scmp.eq.s32.totalorder %s23, 0
    %p64 = por %p62, %p63
    %p65 = scmp.ne.s32.totalorder %s57, %s59
    %p66 = scmp.eq.s32.totalorder %s28, 1
    %p67 = por %p65, %p66
    %p68 = scmp.ne.s32.totalorder %s59, %s60
    %p69 = scmp.eq.s32.totalorder %s28, 0
    %p70 = por %p68, %p69
    %p71 = scmp.ne.s32.totalorder %s59, %s60
    %p72 = scmp.eq.s32.totalorder %s29, 1
    %p73 = por %p71, %p72
    %p75 = scmp.ne.s32.totalorder %s60, %s74
    %p76 = scmp.eq.s32.totalorder %s29, 0
    %p77 = por %p75, %p76
    %s79 = sadd.s32 %s78, 1
    %p82 = scmp.eq.s32.totalorder %s23, 1
    %p83 = scmp.ne.s32.totalorder %s78, %s80
    %p84 = scmp.eq.s32.totalorder %s23, 0
    %p85 = por %p83, %p84
    %p86 = scmp.ne.s32.totalorder %s78, %s80
    %p87 = scmp.eq.s32.totalorder %s28, 1
    %p88 = por %p86, %p87
    %p89 = scmp.ne.s32.totalorder %s80, %s81
    %p90 = scmp.eq.s32.totalorder %s28, 0
    %p91 = por %p89, %p90
    %p92 = scmp.ne.s32.totalorder %s80, %s81
    %p93 = scmp.eq.s32.totalorder %s29, 1
    %p94 = por %p92, %p93
    %p96 = scmp.ne.s32.totalorder %s81, %s95
    %p97 = scmp.eq.s32.totalorder %s29, 0
    %p98 = por %p96, %p97
    %s100 = sadd.s32 %s99, 1
    %p103 = scmp.eq.s32.totalorder %s23, 1
    %p104 = scmp.ne.s32.totalorder %s99, %s101
    %p105 = scmp.eq.s32.totalorder %s23, 0
    %p106 = por %p104, %p105
    %p107 = scmp.ne.s32.totalorder %s99, %s101
    %p108 = scmp.eq.s32.totalorder %s28, 1
    %p109 = por %p107, %p108
    %p110 = scmp.ne.s32.totalorder %s101, %s102
    %p111 = scmp.eq.s32.totalorder %s28, 0
    %p112 = por %p110, %p111
    %p113 = scmp.ne.s32.totalorder %s101, %s102
    %p114 = scmp.eq.s32.totalorder %s29, 1
    %p115 = por %p113, %p114
    %p117 = scmp.ne.s32.totalorder %s102, %s116
    %p118 = scmp.eq.s32.totalorder %s29, 0
    %p119 = por %p117, %p118
    %s121 = sadd.s32 %s120, 1
    %p124 = scmp.eq.s32.totalorder %s23, 1
    %p125 = scmp.ne.s32.totalorder %s120, %s122
    %p126 = scmp.eq.s32.totalorder %s23, 0
    %p127 = por %p125, %p126
    %p128 = scmp.ne.s32.totalorder %s120, %s122
    %p129 = scmp.eq.s32.totalorder %s28, 1
    %p130 = por %p128, %p129
    %p131 = scmp.ne.s32.totalorder %s122, %s123
    %p132 = scmp.eq.s32.totalorder %s28, 0
    %p133 = por %p131, %p132
    %p134 = scmp.ne.s32.totalorder %s122, %s123
    %p135 = scmp.eq.s32.totalorder %s29, 1
    %p136 = por %p134, %p135
    %p138 = scmp.ne.s32.totalorder %s123, %s137
    %p139 = scmp.eq.s32.totalorder %s29, 0
    %p140 = por %p138, %p139
    %s142 = sadd.s32 %s141, 1
    %p145 = scmp.eq.s32.totalorder %s23, 1
    %p146 = scmp.ne.s32.totalorder %s141, %s143
    %p147 = scmp.eq.s32.totalorder %s23, 0
    %p148 = por %p146, %p147
    %p149 = scmp.ne.s32.totalorder %s141, %s143
    %p150 = scmp.eq.s32.totalorder %s28, 1
    %p151 = por %p149, %p150
    %p152 = scmp.ne.s32.totalorder %s143, %s144
    %p153 = scmp.eq.s32.totalorder %s28, 0
    %p154 = por %p152, %p153
    %p155 = scmp.ne.s32.totalorder %s143, %s144
    %p156 = scmp.eq.s32.totalorder %s29, 1
    %p157 = por %p155, %p156
    %p159 = scmp.ne.s32.totalorder %s144, %s158
    %p160 = scmp.eq.s32.totalorder %s29, 0
    %p161 = por %p159, %p160
    %s163 = sadd.s32 %s162, 1
    %p166 = scmp.eq.s32.totalorder %s23, 1
    %p167 = scmp.ne.s32.totalorder %s162, %s164
    %p168 = scmp.eq.s32.totalorder %s23, 0
    %p169 = por %p167, %p168
    %p170 = scmp.ne.s32.totalorder %s162, %s164
    %p171 = scmp.eq.s32.totalorder %s28, 1
    %p172 = por %p170, %p171
    %p173 = scmp.ne.s32.totalorder %s164, %s165
    %p174 = scmp.eq.s32.totalorder %s28, 0
    %p175 = por %p173, %p174
    %p176 = scmp.ne.s32.totalorder %s164, %s165
    %p177 = scmp.eq.s32.totalorder %s29, 1
    %p178 = por %p176, %p177
    %p180 = scmp.ne.s32.totalorder %s165, %s179
    %p181 = scmp.eq.s32.totalorder %s29, 0
    %p182 = por %p180, %p181
    %s184 = sadd.s32 %s183, 1
    %p187 = scmp.eq.s32.totalorder %s23, 1
    %p188 = scmp.ne.s32.totalorder %s183, %s185
    %p189 = scmp.eq.s32.totalorder %s23, 0
    %p190 = por %p188, %p189
    %p191 = scmp.ne.s32.totalorder %s183, %s185
    %p192 = scmp.eq.s32.totalorder %s28, 1
    %p193 = por %p191, %p192
    %p194 = scmp.ne.s32.totalorder %s185, %s186
    %p195 = scmp.eq.s32.totalorder %s28, 0
    %p196 = por %p194, %p195
    %p197 = scmp.ne.s32.totalorder %s185, %s186
    %p198 = scmp.eq.s32.totalorder %s29, 1
    %p199 = por %p197, %p198
    %p201 = scmp.ne.s32.totalorder %s186, %s200
    %p202 = scmp.eq.s32.totalorder %s29, 0
    %p203 = por %p201, %p202
    %s205 = sadd.s32 %s204, 1
    %p208 = scmp.eq.s32.totalorder %s23, 1
    %p209 = scmp.ne.s32.totalorder %s204, %s206
    %p210 = scmp.eq.s32.totalorder %s23, 0
    %p211 = por %p209, %p210
    %p212 = scmp.ne.s32.totalorder %s204, %s206
    %p213 = scmp.eq.s32.totalorder %s28, 1
    %p214 = por %p212, %p213
    %p215 = scmp.ne.s32.totalorder %s206, %s207
    %p216 = scmp.eq.s32.totalorder %s28, 0
    %p217 = por %p215, %p216
    %p218 = scmp.ne.s32.totalorder %s206, %s207
    %p219 = scmp.eq.s32.totalorder %s29, 1
    %p220 = por %p218, %p219
    %p222 = scmp.ne.s32.totalorder %s207, %s221
    %p223 = scmp.eq.s32.totalorder %s29, 0
    %p224 = por %p222, %p223
    %s226 = sadd.s32 %s225, 1
    %p229 = scmp.eq.s32.totalorder %s23, 1
    %p230 = scmp.ne.s32.totalorder %s225, %s227
    %p231 = scmp.eq.s32.totalorder %s23, 0
    %p232 = por %p230, %p231
    %p233 = scmp.ne.s32.totalorder %s225, %s227
    %p234 = scmp.eq.s32.totalorder %s28, 1
    %p235 = por %p233, %p234
    %p236 = scmp.ne.s32.totalorder %s227, %s228
    %p237 = scmp.eq.s32.totalorder %s28, 0
    %p238 = por %p236, %p237
    %p239 = scmp.ne.s32.totalorder %s227, %s228
    %p240 = scmp.eq.s32.totalorder %s29, 1
    %p241 = por %p239, %p240
    %p243 = scmp.ne.s32.totalorder %s228, %s242
    %p244 = scmp.eq.s32.totalorder %s29, 0
    %p245 = por %p243, %p244
    %s247 = sadd.s32 %s246, 1
    %p250 = scmp.eq.s32.totalorder %s23, 1
    %p251 = scmp.ne.s32.totalorder %s246, %s248
    %p252 = scmp.eq.s32.totalorder %s23, 0
    %p253 = por %p251, %p252
    %p254 = scmp.ne.s32.totalorder %s246, %s248
    %p255 = scmp.eq.s32.totalorder %s28, 1
    %p256 = por %p254, %p255
    %p257 = scmp.ne.s32.totalorder %s248, %s249
    %p258 = scmp.eq.s32.totalorder %s28, 0
    %p259 = por %p257, %p258
    %p260 = scmp.ne.s32.totalorder %s248, %s249
    %p261 = scmp.eq.s32.totalorder %s29, 1
    %p262 = por %p260, %p261
    %p264 = scmp.ne.s32.totalorder %s249, %s263
    %p265 = scmp.eq.s32.totalorder %s29, 0
    %p266 = por %p264, %p265
    %s268 = sadd.s32 %s267, 1
    %p271 = scmp.eq.s32.totalorder %s23, 1
    %p272 = scmp.ne.s32.totalorder %s267, %s269
    %p273 = scmp.eq.s32.totalorder %s23, 0
    %p274 = por %p272, %p273
    %p275 = scmp.ne.s32.totalorder %s267, %s269
    %p276 = scmp.eq.s32.totalorder %s28, 1
    %p277 = por %p275, %p276
    %p278 = scmp.ne.s32.totalorder %s269, %s270
    %p279 = scmp.eq.s32.totalorder %s28, 0
    %p280 = por %p278, %p279
    %p281 = scmp.ne.s32.totalorder %s269, %s270
    %p282 = scmp.eq.s32.totalorder %s29, 1
    %p283 = por %p281, %p282
    %p285 = scmp.ne.s32.totalorder %s270, %s284
    %p286 = scmp.eq.s32.totalorder %s29, 0
    %p287 = por %p285, %p286
    %s289 = sadd.s32 %s288, 1
    %p292 = scmp.eq.s32.totalorder %s23, 1
    %p293 = scmp.ne.s32.totalorder %s288, %s290
    %p294 = scmp.eq.s32.totalorder %s23, 0
    %p295 = por %p293, %p294
    %p296 = scmp.ne.s32.totalorder %s288, %s290
    %p297 = scmp.eq.s32.totalorder %s28, 1
    %p298 = por %p296, %p297
    %p299 = scmp.ne.s32.totalorder %s290, %s291
    %p300 = scmp.eq.s32.totalorder %s28, 0
    %p301 = por %p299, %p300
    %p302 = scmp.ne.s32.totalorder %s290, %s291
    %p303 = scmp.eq.s32.totalorder %s29, 1
    %p304 = por %p302, %p303
    %p306 = scmp.ne.s32.totalorder %s291, %s305
    %p307 = scmp.eq.s32.totalorder %s29, 0
    %p308 = por %p306, %p307
    %s310 = sadd.s32 %s309, 1
    %p313 = scmp.eq.s32.totalorder %s23, 1
    %p314 = scmp.ne.s32.totalorder %s309, %s311
    %p315 = scmp.eq.s32.totalorder %s23, 0
    %p316 = por %p314, %p315
    %p317 = scmp.ne.s32.totalorder %s309, %s311
    %p318 = scmp.eq.s32.totalorder %s28, 1
    %p319 = por %p317, %p318
    %p320 = scmp.ne.s32.totalorder %s311, %s312
    %p321 = scmp.eq.s32.totalorder %s28, 0
    %p322 = por %p320, %p321
    %p323 = scmp.ne.s32.totalorder %s311, %s312
    %p324 = scmp.eq.s32.totalorder %s29, 1
    %p325 = por %p323, %p324
    %p327 = scmp.ne.s32.totalorder %s312, %s326
    %p328 = scmp.eq.s32.totalorder %s29, 0
    %p329 = por %p327, %p328
    %s331 = sadd.s32 %s330, 1
    %p334 = scmp.eq.s32.totalorder %s23, 1
    %p335 = scmp.ne.s32.totalorder %s330, %s332
    %p336 = scmp.eq.s32.totalorder %s23, 0
    %p337 = por %p335, %p336
    %p338 = scmp.ne.s32.totalorder %s330, %s332
    %p339 = scmp.eq.s32.totalorder %s28, 1
    %p340 = por %p338, %p339
    %p341 = scmp.ne.s32.totalorder %s332, %s333
    %p342 = scmp.eq.s32.totalorder %s28, 0
    %p343 = por %p341, %p342
    %p344 = scmp.ne.s32.totalorder %s332, %s333
    %p345 = scmp.eq.s32.totalorder %s29, 1
    %p346 = por %p344, %p345
    %p348 = scmp.ne.s32.totalorder %s333, %s347
    %p349 = scmp.eq.s32.totalorder %s29, 0
    %p350 = por %p348, %p349
    %s352 = sadd.s32 %s351, 1
    %p355 = scmp.eq.s32.totalorder %s23, 1
    %p356 = scmp.ne.s32.totalorder %s351, %s353
    %p357 = scmp.eq.s32.totalorder %s23, 0
    %p358 = por %p356, %p357
    %p359 = scmp.ne.s32.totalorder %s351, %s353
    %p360 = scmp.eq.s32.totalorder %s28, 1
    %p361 = por %p359, %p360
    %p362 = scmp.ne.s32.totalorder %s353, %s354
    %p363 = scmp.eq.s32.totalorder %s28, 0
    %p364 = por %p362, %p363
    %p365 = scmp.ne.s32.totalorder %s353, %s354
    %p366 = scmp.eq.s32.totalorder %s29, 1
    %p367 = por %p365, %p366
    %p369 = scmp.ne.s32.totalorder %s354, %s368
    %p370 = scmp.eq.s32.totalorder %s29, 0
    %p371 = por %p369, %p370
    %s373 = sadd.s32 %s372, 1
    %p376 = scmp.eq.s32.totalorder %s23, 1
    %p377 = scmp.ne.s32.totalorder %s372, %s374
    %p378 = scmp.eq.s32.totalorder %s23, 0
    %p379 = por %p377, %p378
    %p380 = scmp.ne.s32.totalorder %s372, %s374
    %p381 = scmp.eq.s32.totalorder %s28, 1
    %p382 = por %p380, %p381
    %p383 = scmp.ne.s32.totalorder %s374, %s375
    %p384 = scmp.eq.s32.totalorder %s28, 0
    %p385 = por %p383, %p384
    %p386 = scmp.ne.s32.totalorder %s374, %s375
    %p387 = scmp.eq.s32.totalorder %s29, 1
    %p388 = por %p386, %p387
    %p390 = scmp.ne.s32.totalorder %s375, %s389
    %p391 = scmp.eq.s32.totalorder %s29, 0
    %p392 = por %p390, %p391
    %s393 = ssub.s32 %s23, %s30
    %p394 = scmp.eq.s32.totalorder %s393, 0
    %s396 = sadd.s32 %s395, 1
    %s397 = scalar_select %p394, %s395, %s396
    %p400 = pneg %p394
    %p401 = scmp.eq.s32.totalorder %s23, 1
    %p402 = por %p400, %p401
    %p403 = scmp.ne.s32.totalorder %s395, %s398
    %p404 = scmp.eq.s32.totalorder %s23, 0
    %p405 = por %p403, %p404
    %p406 = scmp.ne.s32.totalorder %s395, %s398
    %p407 = scmp.eq.s32.totalorder %s28, 1
    %p408 = por %p406, %p407
    %p409 = scmp.ne.s32.totalorder %s398, %s399
    %p410 = scmp.eq.s32.totalorder %s28, 0
    %p411 = por %p409, %p410
    %p412 = scmp.ne.s32.totalorder %s398, %s399
    %p413 = scmp.eq.s32.totalorder %s29, 1
    %p414 = por %p412, %p413
    %p416 = scmp.ne.s32.totalorder %s399, %s415
    %p417 = scmp.eq.s32.totalorder %s29, 0
    %p418 = por %p416, %p417
    %p419 = scmp.le.s32.totalorder 1, %s23
    %p420 = scmp.lt.s32.totalorder %s23, 3
    %p421 = pnand %p419, %p420
    %p422 = pneg %p421
    // Predicated region
    $region9: #{clf_forward.1} parent=5 // pred_check
      _
    $region10: #{clf_forward.1} parent=5 // pred_check_branch
      %424 = sbr.rel (%p421) target = $region12
    $region11: #{clf_forward.1} parent=5 // pred_region
      %s425 = ssub.s32 %s23, 1
      // Predicated region
      $region13: #{clf_forward.1} parent=11 // pred_check
        %p426 = pneg %p70
      $region14: #{clf_forward.1} parent=11 // pred_check_branch
        %428 = sbr.rel (%p426) target = $region16
      $region15: #{clf_forward.1} parent=11 // pred_region
        _
      $region16: #{clf_forward.1} parent=11 // pred_fallthru
        _
      // Predicated region
      $region17: #{clf_forward.1} parent=11 // pred_check
        %p429 = pneg %p91
      $region18: #{clf_forward.1} parent=11 // pred_check_branch
        %431 = sbr.rel (%p429) target = $region20
      $region19: #{clf_forward.1} parent=11 // pred_region
        _
      $region20: #{clf_forward.1} parent=11 // pred_fallthru
        _
      // Predicated region
      $region21: #{clf_forward.1} parent=11 // pred_check
        %p432 = pneg %p112
      $region22: #{clf_forward.1} parent=11 // pred_check_branch
        %434 = sbr.rel (%p432) target = $region24
      $region23: #{clf_forward.1} parent=11 // pred_region
        _
      $region24: #{clf_forward.1} parent=11 // pred_fallthru
        _
      // Predicated region
      $region25: #{clf_forward.1} parent=11 // pred_check
        %p435 = pneg %p133
      $region26: #{clf_forward.1} parent=11 // pred_check_branch
        %437 = sbr.rel (%p435) target = $region28
      $region27: #{clf_forward.1} parent=11 // pred_region
        _
      $region28: #{clf_forward.1} parent=11 // pred_fallthru
        _
      // Predicated region
      $region29: #{clf_forward.1} parent=11 // pred_check
        %p438 = pneg %p154
      $region30: #{clf_forward.1} parent=11 // pred_check_branch
        %440 = sbr.rel (%p438) target = $region32
      $region31: #{clf_forward.1} parent=11 // pred_region
        _
      $region32: #{clf_forward.1} parent=11 // pred_fallthru
        _
      // Predicated region
      $region33: #{clf_forward.1} parent=11 // pred_check
        %p441 = pneg %p175
      $region34: #{clf_forward.1} parent=11 // pred_check_branch
        %443 = sbr.rel (%p441) target = $region36
      $region35: #{clf_forward.1} parent=11 // pred_region
        _
      $region36: #{clf_forward.1} parent=11 // pred_fallthru
        _
      // Predicated region
      $region37: #{clf_forward.1} parent=11 // pred_check
        %p444 = pneg %p196
      $region38: #{clf_forward.1} parent=11 // pred_check_branch
        %446 = sbr.rel (%p444) target = $region40
      $region39: #{clf_forward.1} parent=11 // pred_region
        _
      $region40: #{clf_forward.1} parent=11 // pred_fallthru
        _
      // Predicated region
      $region41: #{clf_forward.1} parent=11 // pred_check
        %p447 = pneg %p217
      $region42: #{clf_forward.1} parent=11 // pred_check_branch
        %449 = sbr.rel (%p447) target = $region44
      $region43: #{clf_forward.1} parent=11 // pred_region
        _
      $region44: #{clf_forward.1} parent=11 // pred_fallthru
        _
      // Predicated region
      $region45: #{clf_forward.1} parent=11 // pred_check
        %p450 = pneg %p238
      $region46: #{clf_forward.1} parent=11 // pred_check_branch
        %452 = sbr.rel (%p450) target = $region48
      $region47: #{clf_forward.1} parent=11 // pred_region
        _
      $region48: #{clf_forward.1} parent=11 // pred_fallthru
        _
      // Predicated region
      $region49: #{clf_forward.1} parent=11 // pred_check
        %p453 = pneg %p259
      $region50: #{clf_forward.1} parent=11 // pred_check_branch
        %455 = sbr.rel (%p453) target = $region52
      $region51: #{clf_forward.1} parent=11 // pred_region
        _
      $region52: #{clf_forward.1} parent=11 // pred_fallthru
        _
      // Predicated region
      $region53: #{clf_forward.1} parent=11 // pred_check
        %p456 = pneg %p280
      $region54: #{clf_forward.1} parent=11 // pred_check_branch
        %458 = sbr.rel (%p456) target = $region56
      $region55: #{clf_forward.1} parent=11 // pred_region
        _
      $region56: #{clf_forward.1} parent=11 // pred_fallthru
        _
      // Predicated region
      $region57: #{clf_forward.1} parent=11 // pred_check
        %p459 = pneg %p301
      $region58: #{clf_forward.1} parent=11 // pred_check_branch
        %461 = sbr.rel (%p459) target = $region60
      $region59: #{clf_forward.1} parent=11 // pred_region
        _
      $region60: #{clf_forward.1} parent=11 // pred_fallthru
        _
      // Predicated region
      $region61: #{clf_forward.1} parent=11 // pred_check
        %p462 = pneg %p322
      $region62: #{clf_forward.1} parent=11 // pred_check_branch
        %464 = sbr.rel (%p462) target = $region64
      $region63: #{clf_forward.1} parent=11 // pred_region
        _
      $region64: #{clf_forward.1} parent=11 // pred_fallthru
        _
      // Predicated region
      $region65: #{clf_forward.1} parent=11 // pred_check
        %p465 = pneg %p343
      $region66: #{clf_forward.1} parent=11 // pred_check_branch
        %467 = sbr.rel (%p465) target = $region68
      $region67: #{clf_forward.1} parent=11 // pred_region
        _
      $region68: #{clf_forward.1} parent=11 // pred_fallthru
        _
      // Predicated region
      $region69: #{clf_forward.1} parent=11 // pred_check
        %p468 = pneg %p364
      $region70: #{clf_forward.1} parent=11 // pred_check_branch
        %470 = sbr.rel (%p468) target = $region72
      $region71: #{clf_forward.1} parent=11 // pred_region
        _
      $region72: #{clf_forward.1} parent=11 // pred_fallthru
        _
      // Predicated region
      $region73: #{clf_forward.1} parent=11 // pred_check
        %p471 = pneg %p385
      $region74: #{clf_forward.1} parent=11 // pred_check_branch
        %473 = sbr.rel (%p471) target = $region76
      $region75: #{clf_forward.1} parent=11 // pred_region
        _
      $region76: #{clf_forward.1} parent=11 // pred_fallthru
        _
    $region12: #{clf_forward.1} parent=5 // pred_fallthru
      _
    %p474 = scmp.lt.s32.totalorder %s23, 2
    // Predicated region
    $region77: #{clf_forward.1} parent=5 // pred_check
      %p475 = pneg %p474
    $region78: #{clf_forward.1} parent=5 // pred_check_branch
      %477 = sbr.rel (%p475) target = $region80
    $region79: #{clf_forward.1} parent=5 // pred_region
      // Predicated region
      $region81: #{clf_forward.1} parent=79 // pred_check
        %p478 = pneg %p43
      $region82: #{clf_forward.1} parent=79 // pred_check_branch
        %480 = sbr.rel (%p478) target = $region84
      $region83: #{clf_forward.1} parent=79 // pred_region
        %p481 = scmp.lt.s32.totalorder %s23, 1
        %s482 = scalar_select %p481, %s23, 1
        %s483 = smul.addr %s482, 2
        %s484 = smul.addr %s483, 8
        %s485 = scalar_lea.vmem %s0, %s484
      $region84: #{clf_forward.1} parent=79 // pred_fallthru
        _
    $region80: #{clf_forward.1} parent=5 // pred_fallthru
      _
    %p486 = scmp.le.s32.totalorder 1, %s23
    %p487 = scmp.lt.s32.totalorder %s23, 3
    %p488 = pnand %p486, %p487
    %p489 = pneg %p488
    // Predicated region
    $region85: #{clf_forward.1} parent=5 // pred_check
      _
    $region86: #{clf_forward.1} parent=5 // pred_check_branch
      %491 = sbr.rel (%p488) target = $region88
    $region87: #{clf_forward.1} parent=5 // pred_region
      %s492 = ssub.s32 %s23, 1
      %p493 = scmp.lt.s32.totalorder %s28, 1
      %s494 = scalar_select %p493, %s28, 1
      %s495 = smul.addr %s494, 2
      %s496 = smul.addr %s495, 8
      %s497 = scalar_lea.vmem %s0, %s496
      %p498 = pneg %p49
      %p499 = pneg %p46
      %p500 = pneg %p70
      %p501 = pneg %p67
      %p502 = pneg %p91
      %p503 = pneg %p88
      %p504 = pneg %p112
      %p505 = pneg %p109
      %p506 = pneg %p133
      %p507 = pneg %p130
      %p508 = pneg %p154
      %p509 = pneg %p151
      %p510 = pneg %p175
      %p511 = pneg %p172
      %p512 = pneg %p196
      %p513 = pneg %p193
      %p514 = pneg %p217
      %p515 = pneg %p214
      %p516 = pneg %p238
      %p517 = pneg %p235
      %p518 = pneg %p259
      %p519 = pneg %p256
      %p520 = pneg %p280
      %p521 = pneg %p277
      %p522 = pneg %p301
      %p523 = pneg %p298
      %p524 = pneg %p322
      %p525 = pneg %p319
      %p526 = pneg %p343
      %p527 = pneg %p340
      %p528 = pneg %p364
      %p529 = pneg %p361
      %p530 = pneg %p385
      %p531 = pneg %p382
      %p532 = pneg %p411
      %p533 = pneg %p408
      %p534 = scmp.lt.s32.totalorder %s28, 1
      %s535 = scalar_select %p534, %s28, 1
      %s536 = smul.addr %s535, 8
      %s537 = scalar_lea.vmem %s17, %s536
      %p538 = scmp.lt.s32.totalorder %s28, 1
      %s539 = scalar_select %p538, %s28, 1
      %s540 = smul.addr %s539, 2
      %s541 = smul.addr %s540, 8
      %s542 = scalar_lea.vmem %s0, %s541
      %p543 = scmp.lt.s32.totalorder %s28, 1
      %s544 = scalar_select %p543, %s28, 1
      %s545 = smul.addr %s544, 8
      %s546 = scalar_lea.vmem %s17, %s545
      %v548 = vld [vmem:[%s542] sm:$0xff]
      %v549 = vld [vmem:[%s542 + $0x8] sm:$0xff]
      %v550 = vpack.c.bf16 %v548, %v548
      %v551 = vpack.c.bf16 %v549, %v549
      %v552 = vld [vmem:[%s1] sm:$0xf]
      %v553 = vld [vmem:[%s1 + $0x4] sm:$0xf]
      %v554 = vld [vmem:[%s1 + $0x8] sm:$0xf]
      %v555 = vld [vmem:[%s1 + $0xc] sm:$0xf]
      %v556 = vld [vmem:[%s1 + $0x10] sm:$0xf]
      %v557 = vld [vmem:[%s1 + $0x14] sm:$0xf]
      %v558 = vld [vmem:[%s1 + $0x18] sm:$0xf]
      %v559 = vld [vmem:[%s1 + $0x1c] sm:$0xf]
      %v560 = vld [vmem:[%s1 + $0x20] sm:$0xf]
      %v561 = vld [vmem:[%s1 + $0x24] sm:$0xf]
      %v562 = vld [vmem:[%s1 + $0x28] sm:$0xf]
      %v563 = vld [vmem:[%s1 + $0x2c] sm:$0xf]
      %v564 = vld [vmem:[%s1 + $0x30] sm:$0xf]
      %v565 = vld [vmem:[%s1 + $0x34] sm:$0xf]
      %v566 = vld [vmem:[%s1 + $0x38] sm:$0xf]
      %v567 = vld [vmem:[%s1 + $0x3c] sm:$0xf]
      %v568 = vld [vmem:[%s1 + $0x40] sm:$0xf]
      %v569 = vld [vmem:[%s1 + $0x44] sm:$0xf]
      %v570 = vld [vmem:[%s1 + $0x48] sm:$0xf]
      %v571 = vld [vmem:[%s1 + $0x4c] sm:$0xf]
      %v572 = vld [vmem:[%s1 + $0x50] sm:$0xf]
      %v573 = vld [vmem:[%s1 + $0x54] sm:$0xf]
      %v574 = vld [vmem:[%s1 + $0x58] sm:$0xf]
      %v575 = vld [vmem:[%s1 + $0x5c] sm:$0xf]
      %v576 = vld [vmem:[%s1 + $0x60] sm:$0xf]
      %v577 = vld [vmem:[%s1 + $0x64] sm:$0xf]
      %v578 = vld [vmem:[%s1 + $0x68] sm:$0xf]
      %v579 = vld [vmem:[%s1 + $0x6c] sm:$0xf]
      %v580 = vld [vmem:[%s1 + $0x70] sm:$0xf]
      %v581 = vld [vmem:[%s1 + $0x74] sm:$0xf]
      %v582 = vld [vmem:[%s1 + $0x78] sm:$0xf]
      %v583 = vld [vmem:[%s1 + $0x7c] sm:$0xf]
      %v584 = vld [vmem:[%s2] sm:$0x1]
      %v586 = vlaneseq
      %v587 = vshrl.u32 %v586, 7
      %v588 = vsub.s32 0, %v587
      %v589 = vrot.slane %v584, %v588
      %v623 = vunpack.c.l.b16 %v552
      %v624 = vunpack.c.l.b16 %v553
      %v625 = vunpack.c.l.b16 %v554
      %v626 = vunpack.c.l.b16 %v555
      %v627 = vunpack.c.l.b16 %v556
      %v628 = vunpack.c.l.b16 %v557
      %v629 = vunpack.c.l.b16 %v558
      %v630 = vunpack.c.l.b16 %v559
      %v631 = vunpack.c.l.b16 %v560
      %v632 = vunpack.c.l.b16 %v561
      %v633 = vunpack.c.l.b16 %v562
      %v634 = vunpack.c.l.b16 %v563
      %v635 = vunpack.c.l.b16 %v564
      %v636 = vunpack.c.l.b16 %v565
      %v637 = vunpack.c.l.b16 %v566
      %v638 = vunpack.c.l.b16 %v567
      %v639 = vunpack.c.l.b16 %v568
      %v640 = vunpack.c.l.b16 %v569
      %v641 = vunpack.c.l.b16 %v570
      %v642 = vunpack.c.l.b16 %v571
      %v643 = vunpack.c.l.b16 %v572
      %v644 = vunpack.c.l.b16 %v573
      %v645 = vunpack.c.l.b16 %v574
      %v646 = vunpack.c.l.b16 %v575
      %v647 = vunpack.c.l.b16 %v576
      %v648 = vunpack.c.l.b16 %v577
      %v649 = vunpack.c.l.b16 %v578
      %v650 = vunpack.c.l.b16 %v579
      %v651 = vunpack.c.l.b16 %v580
      %v652 = vunpack.c.l.b16 %v581
      %v653 = vunpack.c.l.b16 %v582
      %v654 = vunpack.c.l.b16 %v583
      %v655 = vpack.c.b16 %v624, %v623
      %v656 = vpack.c.b16 %v626, %v625
      %v657 = vpack.c.b16 %v628, %v627
      %v658 = vpack.c.b16 %v630, %v629
      %v659 = vpack.c.b16 %v632, %v631
      %v660 = vpack.c.b16 %v634, %v633
      %v661 = vpack.c.b16 %v636, %v635
      %v662 = vpack.c.b16 %v638, %v637
      %v663 = vpack.c.b16 %v640, %v639
      %v664 = vpack.c.b16 %v642, %v641
      %v665 = vpack.c.b16 %v644, %v643
      %v666 = vpack.c.b16 %v646, %v645
      %v667 = vpack.c.b16 %v648, %v647
      %v668 = vpack.c.b16 %v650, %v649
      %v669 = vpack.c.b16 %v652, %v651
      %v670 = vpack.c.b16 %v654, %v653
      %687 = vmatprep.subr.bf16.mxu0 0
      %688 = vmatpush1.bf16.msra.mxu0 %v655
      %689 = vmatprep.subr.bf16.mxu0 0
      %690 = vmatpush1.bf16.msra.mxu0 %v656
      %691 = vmatprep.subr.bf16.mxu0 0
      %692 = vmatpush1.bf16.msra.mxu0 %v657
      %693 = vmatprep.subr.bf16.mxu0 0
      %694 = vmatpush1.bf16.msra.mxu0 %v658
      %695 = vmatprep.subr.bf16.mxu0 0
      %696 = vmatpush1.bf16.msra.mxu0 %v659
      %697 = vmatprep.subr.bf16.mxu0 0
      %698 = vmatpush1.bf16.msra.mxu0 %v660
      %699 = vmatprep.subr.bf16.mxu0 0
      %700 = vmatpush1.bf16.msra.mxu0 %v661
      %701 = vmatprep.subr.bf16.mxu0 0
      %702 = vmatpush1.bf16.msra.mxu0 %v662
      %703 = vmatprep.subr.bf16.mxu0 0
      %704 = vmatpush1.bf16.msra.mxu0 %v663
      %705 = vmatprep.subr.bf16.mxu0 0
      %706 = vmatpush1.bf16.msra.mxu0 %v664
      %707 = vmatprep.subr.bf16.mxu0 0
      %708 = vmatpush1.bf16.msra.mxu0 %v665
      %709 = vmatprep.subr.bf16.mxu0 0
      %710 = vmatpush1.bf16.msra.mxu0 %v666
      %711 = vmatprep.subr.bf16.mxu0 0
      %712 = vmatpush1.bf16.msra.mxu0 %v667
      %713 = vmatprep.subr.bf16.mxu0 0
      %714 = vmatpush1.bf16.msra.mxu0 %v668
      %715 = vmatprep.subr.bf16.mxu0 0
      %716 = vmatpush1.bf16.msra.mxu0 %v669
      %717 = vmatprep.subr.bf16.mxu0 0
      %718 = vmatpush1.bf16.msra.mxu0 %v670
      %719 = vmatprep.mubr.bf16.mxu0 %v551
      %720 = vmatmul.mubr.bf16.gmra.mrb[0].mxu0 %v550
      %v721 = vpop.f32.mrb[0].mxu0
      %v722 = vadd.f32 %v589, %v721
      %v723 = vpop.f32.mrb[0].mxu0
      %v724 = vpop.f32.mrb[0].mxu0
      %v725 = vpop.f32.mrb[0].mxu0
      %726 = vdwg.mxu0
      %v727 = vmul.f32 %v722, 0.5
      %v728 = vmul.f32 %v722, 0.70710677
      %v729 = verf.f32.pop %v728
      %v730 = vadd.f32 %v729, 1.0
      %v731 = vmul.f32 %v727, %v730
      %v732 = vpack.c.bf16 %v731, %v731
      %v733 = vld [vmem:[%s3] sm:$0xf]
      %v734 = vld [vmem:[%s3 + $0x4] sm:$0xf]
      %v735 = vld [vmem:[%s3 + $0x8] sm:$0xf]
      %v736 = vld [vmem:[%s3 + $0xc] sm:$0xf]
      %v737 = vld [vmem:[%s3 + $0x10] sm:$0xf]
      %v738 = vld [vmem:[%s3 + $0x14] sm:$0xf]
      %v739 = vld [vmem:[%s3 + $0x18] sm:$0xf]
      %v740 = vld [vmem:[%s3 + $0x1c] sm:$0xf]
      %v741 = vld [vmem:[%s3 + $0x20] sm:$0xf]
      %v742 = vld [vmem:[%s3 + $0x24] sm:$0xf]
      %v743 = vld [vmem:[%s3 + $0x28] sm:$0xf]
      %v744 = vld [vmem:[%s3 + $0x2c] sm:$0xf]
      %v745 = vld [vmem:[%s3 + $0x30] sm:$0xf]
      %v746 = vld [vmem:[%s3 + $0x34] sm:$0xf]
      %v747 = vld [vmem:[%s3 + $0x38] sm:$0xf]
      %v748 = vld [vmem:[%s3 + $0x3c] sm:$0xf]
      %v749 = vld [vmem:[%s4] sm:$0x1]
      %v751 = vlaneseq
      %v752 = vshrl.u32 %v751, 7
      %v753 = vsub.s32 0, %v752
      %v754 = vrot.slane %v749, %v753
      %v772 = vunpack.c.l.b16 %v733
      %v773 = vunpack.c.l.b16 %v734
      %v774 = vunpack.c.l.b16 %v735
      %v775 = vunpack.c.l.b16 %v736
      %v776 = vunpack.c.l.b16 %v737
      %v777 = vunpack.c.l.b16 %v738
      %v778 = vunpack.c.l.b16 %v739
      %v779 = vunpack.c.l.b16 %v740
      %v780 = vunpack.c.l.b16 %v741
      %v781 = vunpack.c.l.b16 %v742
      %v782 = vunpack.c.l.b16 %v743
      %v783 = vunpack.c.l.b16 %v744
      %v784 = vunpack.c.l.b16 %v745
      %v785 = vunpack.c.l.b16 %v746
      %v786 = vunpack.c.l.b16 %v747
      %v787 = vunpack.c.l.b16 %v748
      %v788 = vpack.c.b16 %v773, %v772
      %v789 = vpack.c.b16 %v775, %v774
      %v790 = vpack.c.b16 %v777, %v776
      %v791 = vpack.c.b16 %v779, %v778
      %v792 = vpack.c.b16 %v781, %v780
      %v793 = vpack.c.b16 %v783, %v782
      %v794 = vpack.c.b16 %v785, %v784
      %v795 = vpack.c.b16 %v787, %v786
      %804 = vmatprep.subr.bf16.mxu0 0
      %805 = vmatpush1.bf16.msra.mxu0 %v788
      %806 = vmatprep.subr.bf16.mxu0 0
      %807 = vmatpush1.bf16.msra.mxu0 %v789
      %808 = vmatprep.subr.bf16.mxu0 0
      %809 = vmatpush1.bf16.msra.mxu0 %v790
      %810 = vmatprep.subr.bf16.mxu0 0
      %811 = vmatpush1.bf16.msra.mxu0 %v791
      %812 = vmatprep.subr.bf16.mxu0 0
      %813 = vmatpush1.bf16.msra.mxu0 %v792
      %814 = vmatprep.subr.bf16.mxu0 0
      %815 = vmatpush1.bf16.msra.mxu0 %v793
      %816 = vmatprep.subr.bf16.mxu0 0
      %817 = vmatpush1.bf16.msra.mxu0 %v794
      %818 = vmatprep.subr.bf16.mxu0 0
      %819 = vmatpush1.bf16.msra.mxu0 %v795
      %820 = vmatprep.subr.bf16.mxu0 0
      %821 = vmatpush1.bf16.msra.mxu0 0
      %822 = vmatprep.subr.bf16.mxu0 0
      %823 = vmatpush1.bf16.msra.mxu0 0
      %824 = vmatprep.subr.bf16.mxu0 0
      %825 = vmatpush1.bf16.msra.mxu0 0
      %826 = vmatprep.subr.bf16.mxu0 0
      %827 = vmatpush1.bf16.msra.mxu0 0
      %828 = vmatprep.subr.bf16.mxu0 0
      %829 = vmatpush1.bf16.msra.mxu0 0
      %830 = vmatprep.subr.bf16.mxu0 0
      %831 = vmatpush1.bf16.msra.mxu0 0
      %832 = vmatprep.subr.bf16.mxu0 0
      %833 = vmatpush1.bf16.msra.mxu0 0
      %834 = vmatprep.subr.bf16.mxu0 0
      %835 = vmatpush1.bf16.msra.mxu0 0
      %836 = vmatprep.mubr.bf16.mxu0 0
      %837 = vmatmul.mubr.bf16.gmra.mrb[0].mxu0 %v732
      %v838 = vpop.f32.mrb[0].mxu0
      %v839 = vadd.f32 %v754, %v838
      %v840 = vpop.f32.mrb[0].mxu0
      %v841 = vpop.f32.mrb[0].mxu0
      %v842 = vpop.f32.mrb[0].mxu0
      %843 = vdwg.mxu0
      %v844 = vadd.f32 %v731, %v839
      %v845 = vld [vmem:[%s5] sm:$0x1]
      %v846 = vld [vmem:[%s6] sm:$0x1]
      %847 = vadd.xlane.f32.xlu0 %v844
      %v848 = vpop.xlane.xlu0 %847
      %v849 = vrcp.pop 128.0
      %v850 = vmul.f32 %v848, %v849
      %v851 = vsub.f32 %v844, %v850
      %v852 = vmul.f32 %v851, %v851
      %853 = vadd.xlane.f32.xlu0 %v852
      %v854 = vpop.xlane.xlu0 %853
      %v855 = vmul.f32 %v854, %v849
      %v856 = vadd.f32 %v855, 1e-05
      %v857 = vrsqrt.pop %v856
      %v858 = vmul.f32 %v851, %v857
      %v860 = vlaneseq
      %v861 = vshrl.u32 %v860, 7
      %v862 = vsub.s32 0, %v861
      %v863 = vrot.slane %v845, %v862
      %v865 = vmul.f32 %v858, %v863
      %v867 = vlaneseq
      %v868 = vshrl.u32 %v867, 7
      %v869 = vsub.s32 0, %v868
      %v870 = vrot.slane %v846, %v869
      %v872 = vadd.f32 %v865, %v870
      %v873 = vpack.c.bf16 %v872, %v872
      %v874 = vld [vmem:[%s7] sm:$0xff]
      %v875 = vld [vmem:[%s7 + $0x8] sm:$0xff]
      %v876 = vld [vmem:[%s7 + $0x10] sm:$0xff]
      %v877 = vld [vmem:[%s7 + $0x18] sm:$0xff]
      %v878 = vld [vmem:[%s7 + $0x20] sm:$0xff]
      %v879 = vld [vmem:[%s7 + $0x28] sm:$0xff]
      %v880 = vld [vmem:[%s7 + $0x30] sm:$0xff]
      %v881 = vld [vmem:[%s7 + $0x38] sm:$0xff]
      %v882 = vld [vmem:[%s7 + $0x40] sm:$0xff]
      %v883 = vld [vmem:[%s7 + $0x48] sm:$0xff]
      %v884 = vld [vmem:[%s7 + $0x50] sm:$0xff]
      %v885 = vld [vmem:[%s7 + $0x58] sm:$0xff]
      %v886 = vld [vmem:[%s7 + $0x60] sm:$0xff]
      %v887 = vld [vmem:[%s7 + $0x68] sm:$0xff]
      %v888 = vld [vmem:[%s7 + $0x70] sm:$0xff]
      %v889 = vld [vmem:[%s7 + $0x78] sm:$0xff]
      %v890 = vld [vmem:[%s7 + $0x80] sm:$0xff]
      %v891 = vld [vmem:[%s7 + $0x88] sm:$0xff]
      %v892 = vld [vmem:[%s7 + $0x90] sm:$0xff]
      %v893 = vld [vmem:[%s7 + $0x98] sm:$0xff]
      %v894 = vld [vmem:[%s7 + $0xa0] sm:$0xff]
      %v895 = vld [vmem:[%s7 + $0xa8] sm:$0xff]
      %v896 = vld [vmem:[%s7 + $0xb0] sm:$0xff]
      %v897 = vld [vmem:[%s7 + $0xb8] sm:$0xff]
      %v898 = vld [vmem:[%s7 + $0xc0] sm:$0xff]
      %v899 = vld [vmem:[%s7 + $0xc8] sm:$0xff]
      %v900 = vld [vmem:[%s7 + $0xd0] sm:$0xff]
      %v901 = vld [vmem:[%s7 + $0xd8] sm:$0xff]
      %v902 = vld [vmem:[%s7 + $0xe0] sm:$0xff]
      %v903 = vld [vmem:[%s7 + $0xe8] sm:$0xff]
      %v904 = vld [vmem:[%s7 + $0xf0] sm:$0xff]
      %v905 = vld [vmem:[%s7 + $0xf8] sm:$0xff]
      %v906 = vld [vmem:[%s7 + $0x100] sm:$0xff]
      %v907 = vld [vmem:[%s7 + $0x108] sm:$0xff]
      %v908 = vld [vmem:[%s7 + $0x110] sm:$0xff]
      %v909 = vld [vmem:[%s7 + $0x118] sm:$0xff]
      %v910 = vld [vmem:[%s7 + $0x120] sm:$0xff]
      %v911 = vld [vmem:[%s7 + $0x128] sm:$0xff]
      %v912 = vld [vmem:[%s7 + $0x130] sm:$0xff]
      %v913 = vld [vmem:[%s7 + $0x138] sm:$0xff]
      %v914 = vld [vmem:[%s7 + $0x140] sm:$0xff]
      %v915 = vld [vmem:[%s7 + $0x148] sm:$0xff]
      %v916 = vld [vmem:[%s7 + $0x150] sm:$0xff]
      %v917 = vld [vmem:[%s7 + $0x158] sm:$0xff]
      %v918 = vld [vmem:[%s7 + $0x160] sm:$0xff]
      %v919 = vld [vmem:[%s7 + $0x168] sm:$0xff]
      %v920 = vld [vmem:[%s7 + $0x170] sm:$0xff]
      %v921 = vld [vmem:[%s7 + $0x178] sm:$0xff]
      %v922 = vld [vmem:[%s7 + $0x180] sm:$0xff]
      %v923 = vld [vmem:[%s7 + $0x188] sm:$0xff]
      %v924 = vld [vmem:[%s7 + $0x190] sm:$0xff]
      %v925 = vld [vmem:[%s7 + $0x198] sm:$0xff]
      %v926 = vld [vmem:[%s7 + $0x1a0] sm:$0xff]
      %v927 = vld [vmem:[%s7 + $0x1a8] sm:$0xff]
      %v928 = vld [vmem:[%s7 + $0x1b0] sm:$0xff]
      %v929 = vld [vmem:[%s7 + $0x1b8] sm:$0xff]
      %v930 = vld [vmem:[%s7 + $0x1c0] sm:$0xff]
      %v931 = vld [vmem:[%s7 + $0x1c8] sm:$0xff]
      %v932 = vld [vmem:[%s7 + $0x1d0] sm:$0xff]
      %v933 = vld [vmem:[%s7 + $0x1d8] sm:$0xff]
      %v934 = vld [vmem:[%s7 + $0x1e0] sm:$0xff]
      %v935 = vld [vmem:[%s7 + $0x1e8] sm:$0xff]
      %v936 = vld [vmem:[%s7 + $0x1f0] sm:$0xff]
      %v937 = vld [vmem:[%s7 + $0x1f8] sm:$0xff]
      %v938 = vld [vmem:[%s7 + $0x200] sm:$0xff]
      %v939 = vld [vmem:[%s7 + $0x208] sm:$0xff]
      %v940 = vld [vmem:[%s7 + $0x210] sm:$0xff]
      %v941 = vld [vmem:[%s7 + $0x218] sm:$0xff]
      %v942 = vld [vmem:[%s7 + $0x220] sm:$0xff]
      %v943 = vld [vmem:[%s7 + $0x228] sm:$0xff]
      %v944 = vld [vmem:[%s7 + $0x230] sm:$0xff]
      %v945 = vld [vmem:[%s7 + $0x238] sm:$0xff]
      %v946 = vld [vmem:[%s7 + $0x240] sm:$0xff]
      %v947 = vld [vmem:[%s7 + $0x248] sm:$0xff]
      %v948 = vld [vmem:[%s7 + $0x250] sm:$0xff]
      %v949 = vld [vmem:[%s7 + $0x258] sm:$0xff]
      %v950 = vld [vmem:[%s7 + $0x260] sm:$0xff]
      %v951 = vld [vmem:[%s7 + $0x268] sm:$0xff]
      %v952 = vld [vmem:[%s7 + $0x270] sm:$0xff]
      %v953 = vld [vmem:[%s7 + $0x278] sm:$0xff]
      %v954 = vld [vmem:[%s7 + $0x280] sm:$0xff]
      %v955 = vld [vmem:[%s7 + $0x288] sm:$0xff]
      %v956 = vld [vmem:[%s7 + $0x290] sm:$0xff]
      %v957 = vld [vmem:[%s7 + $0x298] sm:$0xff]
      %v958 = vld [vmem:[%s7 + $0x2a0] sm:$0xff]
      %v959 = vld [vmem:[%s7 + $0x2a8] sm:$0xff]
      %v960 = vld [vmem:[%s7 + $0x2b0] sm:$0xff]
      %v961 = vld [vmem:[%s7 + $0x2b8] sm:$0xff]
      %v962 = vld [vmem:[%s7 + $0x2c0] sm:$0xff]
      %v963 = vld [vmem:[%s7 + $0x2c8] sm:$0xff]
      %v964 = vld [vmem:[%s7 + $0x2d0] sm:$0xff]
      %v965 = vld [vmem:[%s7 + $0x2d8] sm:$0xff]
      %v966 = vld [vmem:[%s7 + $0x2e0] sm:$0xff]
      %v967 = vld [vmem:[%s7 + $0x2e8] sm:$0xff]
      %v968 = vld [vmem:[%s7 + $0x2f0] sm:$0xff]
      %v969 = vld [vmem:[%s7 + $0x2f8] sm:$0xff]
      %v970 = vld [vmem:[%s7 + $0x300] sm:$0xff]
      %v971 = vld [vmem:[%s7 + $0x308] sm:$0xff]
      %v972 = vld [vmem:[%s7 + $0x310] sm:$0xff]
      %v973 = vld [vmem:[%s7 + $0x318] sm:$0xff]
      %v974 = vld [vmem:[%s7 + $0x320] sm:$0xff]
      %v975 = vld [vmem:[%s7 + $0x328] sm:$0xff]
      %v976 = vld [vmem:[%s7 + $0x330] sm:$0xff]
      %v977 = vld [vmem:[%s7 + $0x338] sm:$0xff]
      %v978 = vld [vmem:[%s7 + $0x340] sm:$0xff]
      %v979 = vld [vmem:[%s7 + $0x348] sm:$0xff]
      %v980 = vld [vmem:[%s7 + $0x350] sm:$0xff]
      %v981 = vld [vmem:[%s7 + $0x358] sm:$0xff]
      %v982 = vld [vmem:[%s7 + $0x360] sm:$0xff]
      %v983 = vld [vmem:[%s7 + $0x368] sm:$0xff]
      %v984 = vld [vmem:[%s7 + $0x370] sm:$0xff]
      %v985 = vld [vmem:[%s7 + $0x378] sm:$0xff]
      %v986 = vld [vmem:[%s7 + $0x380] sm:$0xff]
      %v987 = vld [vmem:[%s7 + $0x388] sm:$0xff]
      %v988 = vld [vmem:[%s7 + $0x390] sm:$0xff]
      %v989 = vld [vmem:[%s7 + $0x398] sm:$0xff]
      %v990 = vld [vmem:[%s7 + $0x3a0] sm:$0xff]
      %v991 = vld [vmem:[%s7 + $0x3a8] sm:$0xff]
      %v992 = vld [vmem:[%s7 + $0x3b0] sm:$0xff]
      %v993 = vld [vmem:[%s7 + $0x3b8] sm:$0xff]
      %v994 = vld [vmem:[%s7 + $0x3c0] sm:$0xff]
      %v995 = vld [vmem:[%s7 + $0x3c8] sm:$0xff]
      %v996 = vld [vmem:[%s7 + $0x3d0] sm:$0xff]
      %v997 = vld [vmem:[%s7 + $0x3d8] sm:$0xff]
      %v998 = vld [vmem:[%s7 + $0x3e0] sm:$0xff]
      %v999 = vld [vmem:[%s7 + $0x3e8] sm:$0xff]
      %v1000 = vld [vmem:[%s7 + $0x3f0] sm:$0xff]
      %v1001 = vld [vmem:[%s7 + $0x3f8] sm:$0xff]
      %v1002 = vld [vmem:[%s8] sm:$0xff]
      %v1003 = vld [vmem:[%s8 + $0x8] sm:$0xff]
      %v1006 = vlaneseq
      %v1007 = vshrl.u32 %v1006, 7
      %v1008 = vsub.s32 0, %v1007
      %v1009 = vrot.slane %v1002, %v1008
      %v1010 = vlaneseq
      %v1011 = vshrl.u32 %v1010, 7
      %v1012 = vsub.s32 1, %v1011
      %v1013 = vrot.slane %v1002, %v1012
      %v1014 = vlaneseq
      %v1015 = vshrl.u32 %v1014, 7
      %v1016 = vsub.s32 2, %v1015
      %v1017 = vrot.slane %v1002, %v1016
      %v1018 = vlaneseq
      %v1019 = vshrl.u32 %v1018, 7
      %v1020 = vsub.s32 3, %v1019
      %v1021 = vrot.slane %v1002, %v1020
      %v1022 = vlaneseq
      %v1023 = vshrl.u32 %v1022, 7
      %v1024 = vsub.s32 4, %v1023
      %v1025 = vrot.slane %v1002, %v1024
      %v1026 = vlaneseq
      %v1027 = vshrl.u32 %v1026, 7
      %v1028 = vsub.s32 5, %v1027
      %v1029 = vrot.slane %v1002, %v1028
      %v1030 = vlaneseq
      %v1031 = vshrl.u32 %v1030, 7
      %v1032 = vsub.s32 6, %v1031
      %v1033 = vrot.slane %v1002, %v1032
      %v1034 = vlaneseq
      %v1035 = vshrl.u32 %v1034, 7
      %v1036 = vsub.s32 7, %v1035
      %v1037 = vrot.slane %v1002, %v1036
      %v1038 = vlaneseq
      %v1039 = vshrl.u32 %v1038, 7
      %v1040 = vsub.s32 0, %v1039
      %v1041 = vrot.slane %v1003, %v1040
      %v1042 = vlaneseq
      %v1043 = vshrl.u32 %v1042, 7
      %v1044 = vsub.s32 1, %v1043
      %v1045 = vrot.slane %v1003, %v1044
      %v1046 = vlaneseq
      %v1047 = vshrl.u32 %v1046, 7
      %v1048 = vsub.s32 2, %v1047
      %v1049 = vrot.slane %v1003, %v1048
      %v1050 = vlaneseq
      %v1051 = vshrl.u32 %v1050, 7
      %v1052 = vsub.s32 3, %v1051
      %v1053 = vrot.slane %v1003, %v1052
      %v1054 = vlaneseq
      %v1055 = vshrl.u32 %v1054, 7
      %v1056 = vsub.s32 4, %v1055
      %v1057 = vrot.slane %v1003, %v1056
      %v1058 = vlaneseq
      %v1059 = vshrl.u32 %v1058, 7
      %v1060 = vsub.s32 5, %v1059
      %v1061 = vrot.slane %v1003, %v1060
      %v1062 = vlaneseq
      %v1063 = vshrl.u32 %v1062, 7
      %v1064 = vsub.s32 6, %v1063
      %v1065 = vrot.slane %v1003, %v1064
      %v1066 = vlaneseq
      %v1067 = vshrl.u32 %v1066, 7
      %v1068 = vsub.s32 7, %v1067
      %v1069 = vrot.slane %v1003, %v1068
      %v1214 = vunpack.c.l.b16 %v874
      %v1215 = vunpack.c.h.b16 %v874
      %v1216 = vunpack.c.l.b16 %v875
      %v1217 = vunpack.c.h.b16 %v875
      %v1218 = vunpack.c.l.b16 %v876
      %v1219 = vunpack.c.h.b16 %v876
      %v1220 = vunpack.c.l.b16 %v877
      %v1221 = vunpack.c.h.b16 %v877
      %v1222 = vunpack.c.l.b16 %v878
      %v1223 = vunpack.c.h.b16 %v878
      %v1224 = vunpack.c.l.b16 %v879
      %v1225 = vunpack.c.h.b16 %v879
      %v1226 = vunpack.c.l.b16 %v880
      %v1227 = vunpack.c.h.b16 %v880
      %v1228 = vunpack.c.l.b16 %v881
      %v1229 = vunpack.c.h.b16 %v881
      %v1230 = vunpack.c.l.b16 %v882
      %v1231 = vunpack.c.h.b16 %v882
      %v1232 = vunpack.c.l.b16 %v883
      %v1233 = vunpack.c.h.b16 %v883
      %v1234 = vunpack.c.l.b16 %v884
      %v1235 = vunpack.c.h.b16 %v884
      %v1236 = vunpack.c.l.b16 %v885
      %v1237 = vunpack.c.h.b16 %v885
      %v1238 = vunpack.c.l.b16 %v886
      %v1239 = vunpack.c.h.b16 %v886
      %v1240 = vunpack.c.l.b16 %v887
      %v1241 = vunpack.c.h.b16 %v887
      %v1242 = vunpack.c.l.b16 %v888
      %v1243 = vunpack.c.h.b16 %v888
      %v1244 = vunpack.c.l.b16 %v889
      %v1245 = vunpack.c.h.b16 %v889
      %v1246 = vunpack.c.l.b16 %v890
      %v1247 = vunpack.c.h.b16 %v890
      %v1248 = vunpack.c.l.b16 %v891
      %v1249 = vunpack.c.h.b16 %v891
      %v1250 = vunpack.c.l.b16 %v892
      %v1251 = vunpack.c.h.b16 %v892
      %v1252 = vunpack.c.l.b16 %v893
      %v1253 = vunpack.c.h.b16 %v893
      %v1254 = vunpack.c.l.b16 %v894
      %v1255 = vunpack.c.h.b16 %v894
      %v1256 = vunpack.c.l.b16 %v895
      %v1257 = vunpack.c.h.b16 %v895
      %v1258 = vunpack.c.l.b16 %v896
      %v1259 = vunpack.c.h.b16 %v896
      %v1260 = vunpack.c.l.b16 %v897
      %v1261 = vunpack.c.h.b16 %v897
      %v1262 = vunpack.c.l.b16 %v898
      %v1263 = vunpack.c.h.b16 %v898
      %v1264 = vunpack.c.l.b16 %v899
      %v1265 = vunpack.c.h.b16 %v899
      %v1266 = vunpack.c.l.b16 %v900
      %v1267 = vunpack.c.h.b16 %v900
      %v1268 = vunpack.c.l.b16 %v901
      %v1269 = vunpack.c.h.b16 %v901
      %v1270 = vunpack.c.l.b16 %v902
      %v1271 = vunpack.c.h.b16 %v902
      %v1272 = vunpack.c.l.b16 %v903
      %v1273 = vunpack.c.h.b16 %v903
      %v1274 = vunpack.c.l.b16 %v904
      %v1275 = vunpack.c.h.b16 %v904
      %v1276 = vunpack.c.l.b16 %v905
      %v1277 = vunpack.c.h.b16 %v905
      %v1278 = vunpack.c.l.b16 %v906
      %v1279 = vunpack.c.h.b16 %v906
      %v1280 = vunpack.c.l.b16 %v907
      %v1281 = vunpack.c.h.b16 %v907
      %v1282 = vunpack.c.l.b16 %v908
      %v1283 = vunpack.c.h.b16 %v908
      %v1284 = vunpack.c.l.b16 %v909
      %v1285 = vunpack.c.h.b16 %v909
      %v1286 = vunpack.c.l.b16 %v910
      %v1287 = vunpack.c.h.b16 %v910
      %v1288 = vunpack.c.l.b16 %v911
      %v1289 = vunpack.c.h.b16 %v911
      %v1290 = vunpack.c.l.b16 %v912
      %v1291 = vunpack.c.h.b16 %v912
      %v1292 = vunpack.c.l.b16 %v913
      %v1293 = vunpack.c.h.b16 %v913
      %v1294 = vunpack.c.l.b16 %v914
      %v1295 = vunpack.c.h.b16 %v914
      %v1296 = vunpack.c.l.b16 %v915
      %v1297 = vunpack.c.h.b16 %v915
      %v1298 = vunpack.c.l.b16 %v916
      %v1299 = vunpack.c.h.b16 %v916
      %v1300 = vunpack.c.l.b16 %v917
      %v1301 = vunpack.c.h.b16 %v917
      %v1302 = vunpack.c.l.b16 %v918
      %v1303 = vunpack.c.h.b16 %v918
      %v1304 = vunpack.c.l.b16 %v919
      %v1305 = vunpack.c.h.b16 %v919
      %v1306 = vunpack.c.l.b16 %v920
      %v1307 = vunpack.c.h.b16 %v920
      %v1308 = vunpack.c.l.b16 %v921
      %v1309 = vunpack.c.h.b16 %v921
      %v1310 = vunpack.c.l.b16 %v922
      %v1311 = vunpack.c.h.b16 %v922
      %v1312 = vunpack.c.l.b16 %v923
      %v1313 = vunpack.c.h.b16 %v923
      %v1314 = vunpack.c.l.b16 %v924
      %v1315 = vunpack.c.h.b16 %v924
      %v1316 = vunpack.c.l.b16 %v925
      %v1317 = vunpack.c.h.b16 %v925
      %v1318 = vunpack.c.l.b16 %v926
      %v1319 = vunpack.c.h.b16 %v926
      %v1320 = vunpack.c.l.b16 %v927
      %v1321 = vunpack.c.h.b16 %v927
      %v1322 = vunpack.c.l.b16 %v928
      %v1323 = vunpack.c.h.b16 %v928
      %v1324 = vunpack.c.l.b16 %v929
      %v1325 = vunpack.c.h.b16 %v929
      %v1326 = vunpack.c.l.b16 %v930
      %v1327 = vunpack.c.h.b16 %v930
      %v1328 = vunpack.c.l.b16 %v931
      %v1329 = vunpack.c.h.b16 %v931
      %v1330 = vunpack.c.l.b16 %v932
      %v1331 = vunpack.c.h.b16 %v932
      %v1332 = vunpack.c.l.b16 %v933
      %v1333 = vunpack.c.h.b16 %v933
      %v1334 = vunpack.c.l.b16 %v934
      %v1335 = vunpack.c.h.b16 %v934
      %v1336 = vunpack.c.l.b16 %v935
      %v1337 = vunpack.c.h.b16 %v935
      %v1338 = vunpack.c.l.b16 %v936
      %v1339 = vunpack.c.h.b16 %v936
      %v1340 = vunpack.c.l.b16 %v937
      %v1341 = vunpack.c.h.b16 %v937
      %v1342 = vunpack.c.l.b16 %v938
      %v1343 = vunpack.c.h.b16 %v938
      %v1344 = vunpack.c.l.b16 %v939
      %v1345 = vunpack.c.h.b16 %v939
      %v1346 = vunpack.c.l.b16 %v940
      %v1347 = vunpack.c.h.b16 %v940
      %v1348 = vunpack.c.l.b16 %v941
      %v1349 = vunpack.c.h.b16 %v941
      %v1350 = vunpack.c.l.b16 %v942
      %v1351 = vunpack.c.h.b16 %v942
      %v1352 = vunpack.c.l.b16 %v943
      %v1353 = vunpack.c.h.b16 %v943
      %v1354 = vunpack.c.l.b16 %v944
      %v1355 = vunpack.c.h.b16 %v944
      %v1356 = vunpack.c.l.b16 %v945
      %v1357 = vunpack.c.h.b16 %v945
      %v1358 = vunpack.c.l.b16 %v946
      %v1359 = vunpack.c.h.b16 %v946
      %v1360 = vunpack.c.l.b16 %v947
      %v1361 = vunpack.c.h.b16 %v947
      %v1362 = vunpack.c.l.b16 %v948
      %v1363 = vunpack.c.h.b16 %v948
      %v1364 = vunpack.c.l.b16 %v949
      %v1365 = vunpack.c.h.b16 %v949
      %v1366 = vunpack.c.l.b16 %v950
      %v1367 = vunpack.c.h.b16 %v950
      %v1368 = vunpack.c.l.b16 %v951
      %v1369 = vunpack.c.h.b16 %v951
      %v1370 = vunpack.c.l.b16 %v952
      %v1371 = vunpack.c.h.b16 %v952
      %v1372 = vunpack.c.l.b16 %v953
      %v1373 = vunpack.c.h.b16 %v953
      %v1374 = vunpack.c.l.b16 %v954
      %v1375 = vunpack.c.h.b16 %v954
      %v1376 = vunpack.c.l.b16 %v955
      %v1377 = vunpack.c.h.b16 %v955
      %v1378 = vunpack.c.l.b16 %v956
      %v1379 = vunpack.c.h.b16 %v956
      %v1380 = vunpack.c.l.b16 %v957
      %v1381 = vunpack.c.h.b16 %v957
      %v1382 = vunpack.c.l.b16 %v958
      %v1383 = vunpack.c.h.b16 %v958
      %v1384 = vunpack.c.l.b16 %v959
      %v1385 = vunpack.c.h.b16 %v959
      %v1386 = vunpack.c.l.b16 %v960
      %v1387 = vunpack.c.h.b16 %v960
      %v1388 = vunpack.c.l.b16 %v961
      %v1389 = vunpack.c.h.b16 %v961
      %v1390 = vunpack.c.l.b16 %v962
      %v1391 = vunpack.c.h.b16 %v962
      %v1392 = vunpack.c.l.b16 %v963
      %v1393 = vunpack.c.h.b16 %v963
      %v1394 = vunpack.c.l.b16 %v964
      %v1395 = vunpack.c.h.b16 %v964
      %v1396 = vunpack.c.l.b16 %v965
      %v1397 = vunpack.c.h.b16 %v965
      %v1398 = vunpack.c.l.b16 %v966
      %v1399 = vunpack.c.h.b16 %v966
      %v1400 = vunpack.c.l.b16 %v967
      %v1401 = vunpack.c.h.b16 %v967
      %v1402 = vunpack.c.l.b16 %v968
      %v1403 = vunpack.c.h.b16 %v968
      %v1404 = vunpack.c.l.b16 %v969
      %v1405 = vunpack.c.h.b16 %v969
      %v1406 = vunpack.c.l.b16 %v970
      %v1407 = vunpack.c.h.b16 %v970
      %v1408 = vunpack.c.l.b16 %v971
      %v1409 = vunpack.c.h.b16 %v971
      %v1410 = vunpack.c.l.b16 %v972
      %v1411 = vunpack.c.h.b16 %v972
      %v1412 = vunpack.c.l.b16 %v973
      %v1413 = vunpack.c.h.b16 %v973
      %v1414 = vunpack.c.l.b16 %v974
      %v1415 = vunpack.c.h.b16 %v974
      %v1416 = vunpack.c.l.b16 %v975
      %v1417 = vunpack.c.h.b16 %v975
      %v1418 = vunpack.c.l.b16 %v976
      %v1419 = vunpack.c.h.b16 %v976
      %v1420 = vunpack.c.l.b16 %v977
      %v1421 = vunpack.c.h.b16 %v977
      %v1422 = vunpack.c.l.b16 %v978
      %v1423 = vunpack.c.h.b16 %v978
      %v1424 = vunpack.c.l.b16 %v979
      %v1425 = vunpack.c.h.b16 %v979
      %v1426 = vunpack.c.l.b16 %v980
      %v1427 = vunpack.c.h.b16 %v980
      %v1428 = vunpack.c.l.b16 %v981
      %v1429 = vunpack.c.h.b16 %v981
      %v1430 = vunpack.c.l.b16 %v982
      %v1431 = vunpack.c.h.b16 %v982
      %v1432 = vunpack.c.l.b16 %v983
      %v1433 = vunpack.c.h.b16 %v983
      %v1434 = vunpack.c.l.b16 %v984
      %v1435 = vunpack.c.h.b16 %v984
      %v1436 = vunpack.c.l.b16 %v985
      %v1437 = vunpack.c.h.b16 %v985
      %v1438 = vunpack.c.l.b16 %v986
      %v1439 = vunpack.c.h.b16 %v986
      %v1440 = vunpack.c.l.b16 %v987
      %v1441 = vunpack.c.h.b16 %v987
      %v1442 = vunpack.c.l.b16 %v988
      %v1443 = vunpack.c.h.b16 %v988
      %v1444 = vunpack.c.l.b16 %v989
      %v1445 = vunpack.c.h.b16 %v989
      %v1446 = vunpack.c.l.b16 %v990
      %v1447 = vunpack.c.h.b16 %v990
      %v1448 = vunpack.c.l.b16 %v991
      %v1449 = vunpack.c.h.b16 %v991
      %v1450 = vunpack.c.l.b16 %v992
      %v1451 = vunpack.c.h.b16 %v992
      %v1452 = vunpack.c.l.b16 %v993
      %v1453 = vunpack.c.h.b16 %v993
      %v1454 = vunpack.c.l.b16 %v994
      %v1455 = vunpack.c.h.b16 %v994
      %v1456 = vunpack.c.l.b16 %v995
      %v1457 = vunpack.c.h.b16 %v995
      %v1458 = vunpack.c.l.b16 %v996
      %v1459 = vunpack.c.h.b16 %v996
      %v1460 = vunpack.c.l.b16 %v997
      %v1461 = vunpack.c.h.b16 %v997
      %v1462 = vunpack.c.l.b16 %v998
      %v1463 = vunpack.c.h.b16 %v998
      %v1464 = vunpack.c.l.b16 %v999
      %v1465 = vunpack.c.h.b16 %v999
      %v1466 = vunpack.c.l.b16 %v1000
      %v1467 = vunpack.c.h.b16 %v1000
      %v1468 = vunpack.c.l.b16 %v1001
      %v1469 = vunpack.c.h.b16 %v1001
      %v1470 = vpack.c.b16 %v1230, %v1214
      %v1471 = vpack.c.b16 %v1231, %v1215
      %v1472 = vpack.c.b16 %v1232, %v1216
      %v1473 = vpack.c.b16 %v1233, %v1217
      %v1474 = vpack.c.b16 %v1234, %v1218
      %v1475 = vpack.c.b16 %v1235, %v1219
      %v1476 = vpack.c.b16 %v1236, %v1220
      %v1477 = vpack.c.b16 %v1237, %v1221
      %v1478 = vpack.c.b16 %v1238, %v1222
      %v1479 = vpack.c.b16 %v1239, %v1223
      %v1480 = vpack.c.b16 %v1240, %v1224
      %v1481 = vpack.c.b16 %v1241, %v1225
      %v1482 = vpack.c.b16 %v1242, %v1226
      %v1483 = vpack.c.b16 %v1243, %v1227
      %v1484 = vpack.c.b16 %v1244, %v1228
      %v1485 = vpack.c.b16 %v1245, %v1229
      %v1486 = vpack.c.b16 %v1262, %v1246
      %v1487 = vpack.c.b16 %v1263, %v1247
      %v1488 = vpack.c.b16 %v1264, %v1248
      %v1489 = vpack.c.b16 %v1265, %v1249
      %v1490 = vpack.c.b16 %v1266, %v1250
      %v1491 = vpack.c.b16 %v1267, %v1251
      %v1492 = vpack.c.b16 %v1268, %v1252
      %v1493 = vpack.c.b16 %v1269, %v1253
      %v1494 = vpack.c.b16 %v1270, %v1254
      %v1495 = vpack.c.b16 %v1271, %v1255
      %v1496 = vpack.c.b16 %v1272, %v1256
      %v1497 = vpack.c.b16 %v1273, %v1257
      %v1498 = vpack.c.b16 %v1274, %v1258
      %v1499 = vpack.c.b16 %v1275, %v1259
      %v1500 = vpack.c.b16 %v1276, %v1260
      %v1501 = vpack.c.b16 %v1277, %v1261
      %v1502 = vpack.c.b16 %v1294, %v1278
      %v1503 = vpack.c.b16 %v1295, %v1279
      %v1504 = vpack.c.b16 %v1296, %v1280
      %v1505 = vpack.c.b16 %v1297, %v1281
      %v1506 = vpack.c.b16 %v1298, %v1282
      %v1507 = vpack.c.b16 %v1299, %v1283
      %v1508 = vpack.c.b16 %v1300, %v1284
      %v1509 = vpack.c.b16 %v1301, %v1285
      %v1510 = vpack.c.b16 %v1302, %v1286
      %v1511 = vpack.c.b16 %v1303, %v1287
      %v1512 = vpack.c.b16 %v1304, %v1288
      %v1513 = vpack.c.b16 %v1305, %v1289
      %v1514 = vpack.c.b16 %v1306, %v1290
      %v1515 = vpack.c.b16 %v1307, %v1291
      %v1516 = vpack.c.b16 %v1308, %v1292
      %v1517 = vpack.c.b16 %v1309, %v1293
      %v1518 = vpack.c.b16 %v1326, %v1310
      %v1519 = vpack.c.b16 %v1327, %v1311
      %v1520 = vpack.c.b16 %v1328, %v1312
      %v1521 = vpack.c.b16 %v1329, %v1313
      %v1522 = vpack.c.b16 %v1330, %v1314
      %v1523 = vpack.c.b16 %v1331, %v1315
      %v1524 = vpack.c.b16 %v1332, %v1316
      %v1525 = vpack.c.b16 %v1333, %v1317
      %v1526 = vpack.c.b16 %v1334, %v1318
      %v1527 = vpack.c.b16 %v1335, %v1319
      %v1528 = vpack.c.b16 %v1336, %v1320
      %v1529 = vpack.c.b16 %v1337, %v1321
      %v1530 = vpack.c.b16 %v1338, %v1322
      %v1531 = vpack.c.b16 %v1339, %v1323
      %v1532 = vpack.c.b16 %v1340, %v1324
      %v1533 = vpack.c.b16 %v1341, %v1325
      %v1534 = vpack.c.b16 %v1358, %v1342
      %v1535 = vpack.c.b16 %v1359, %v1343
      %v1536 = vpack.c.b16 %v1360, %v1344
      %v1537 = vpack.c.b16 %v1361, %v1345
      %v1538 = vpack.c.b16 %v1362, %v1346
      %v1539 = vpack.c.b16 %v1363, %v1347
      %v1540 = vpack.c.b16 %v1364, %v1348
      %v1541 = vpack.c.b16 %v1365, %v1349
      %v1542 = vpack.c.b16 %v1366, %v1350
      %v1543 = vpack.c.b16 %v1367, %v1351
      %v1544 = vpack.c.b16 %v1368, %v1352
      %v1545 = vpack.c.b16 %v1369, %v1353
      %v1546 = vpack.c.b16 %v1370, %v1354
      %v1547 = vpack.c.b16 %v1371, %v1355
      %v1548 = vpack.c.b16 %v1372, %v1356
      %v1549 = vpack.c.b16 %v1373, %v1357
      %v1550 = vpack.c.b16 %v1390, %v1374
      %v1551 = vpack.c.b16 %v1391, %v1375
      %v1552 = vpack.c.b16 %v1392, %v1376
      %v1553 = vpack.c.b16 %v1393, %v1377
      %v1554 = vpack.c.b16 %v1394, %v1378
      %v1555 = vpack.c.b16 %v1395, %v1379
      %v1556 = vpack.c.b16 %v1396, %v1380
      %v1557 = vpack.c.b16 %v1397, %v1381
      %v1558 = vpack.c.b16 %v1398, %v1382
      %v1559 = vpack.c.b16 %v1399, %v1383
      %v1560 = vpack.c.b16 %v1400, %v1384
      %v1561 = vpack.c.b16 %v1401, %v1385
      %v1562 = vpack.c.b16 %v1402, %v1386
      %v1563 = vpack.c.b16 %v1403, %v1387
      %v1564 = vpack.c.b16 %v1404, %v1388
      %v1565 = vpack.c.b16 %v1405, %v1389
      %v1566 = vpack.c.b16 %v1422, %v1406
      %v1567 = vpack.c.b16 %v1423, %v1407
      %v1568 = vpack.c.b16 %v1424, %v1408
      %v1569 = vpack.c.b16 %v1425, %v1409
      %v1570 = vpack.c.b16 %v1426, %v1410
      %v1571 = vpack.c.b16 %v1427, %v1411
      %v1572 = vpack.c.b16 %v1428, %v1412
      %v1573 = vpack.c.b16 %v1429, %v1413
      %v1574 = vpack.c.b16 %v1430, %v1414
      %v1575 = vpack.c.b16 %v1431, %v1415
      %v1576 = vpack.c.b16 %v1432, %v1416
      %v1577 = vpack.c.b16 %v1433, %v1417
      %v1578 = vpack.c.b16 %v1434, %v1418
      %v1579 = vpack.c.b16 %v1435, %v1419
      %v1580 = vpack.c.b16 %v1436, %v1420
      %v1581 = vpack.c.b16 %v1437, %v1421
      %v1582 = vpack.c.b16 %v1454, %v1438
      %v1583 = vpack.c.b16 %v1455, %v1439
      %v1584 = vpack.c.b16 %v1456, %v1440
      %v1585 = vpack.c.b16 %v1457, %v1441
      %v1586 = vpack.c.b16 %v1458, %v1442
      %v1587 = vpack.c.b16 %v1459, %v1443
      %v1588 = vpack.c.b16 %v1460, %v1444
      %v1589 = vpack.c.b16 %v1461, %v1445
      %v1590 = vpack.c.b16 %v1462, %v1446
      %v1591 = vpack.c.b16 %v1463, %v1447
      %v1592 = vpack.c.b16 %v1464, %v1448
      %v1593 = vpack.c.b16 %v1465, %v1449
      %v1594 = vpack.c.b16 %v1466, %v1450
      %v1595 = vpack.c.b16 %v1467, %v1451
      %v1596 = vpack.c.b16 %v1468, %v1452
      %v1597 = vpack.c.b16 %v1469, %v1453
      %1726 = vmatprep.subr.bf16.mxu0 %v1471
      %1727 = vmatpush1.bf16.msra.mxu0 %v1470
      %1728 = vmatprep.subr.bf16.mxu0 %v1487
      %1729 = vmatpush1.bf16.msra.mxu0 %v1486
      %1730 = vmatprep.subr.bf16.mxu0 %v1503
      %1731 = vmatpush1.bf16.msra.mxu0 %v1502
      %1732 = vmatprep.subr.bf16.mxu0 %v1519
      %1733 = vmatpush1.bf16.msra.mxu0 %v1518
      %1734 = vmatprep.subr.bf16.mxu0 %v1535
      %1735 = vmatpush1.bf16.msra.mxu0 %v1534
      %1736 = vmatprep.subr.bf16.mxu0 %v1551
      %1737 = vmatpush1.bf16.msra.mxu0 %v1550
      %1738 = vmatprep.subr.bf16.mxu0 %v1567
      %1739 = vmatpush1.bf16.msra.mxu0 %v1566
      %1740 = vmatprep.subr.bf16.mxu0 %v1583
      %1741 = vmatpush1.bf16.msra.mxu0 %v1582
      %1742 = vmatprep.subr.bf16.mxu0 0
      %1743 = vmatpush1.bf16.msra.mxu0 0
      %1744 = vmatprep.subr.bf16.mxu0 0
      %1745 = vmatpush1.bf16.msra.mxu0 0
      %1746 = vmatprep.subr.bf16.mxu0 0
      %1747 = vmatpush1.bf16.msra.mxu0 0
      %1748 = vmatprep.subr.bf16.mxu0 0
      %1749 = vmatpush1.bf16.msra.mxu0 0
      %1750 = vmatprep.subr.bf16.mxu0 0
      %1751 = vmatpush1.bf16.msra.mxu0 0
      %1752 = vmatprep.subr.bf16.mxu0 0
      %1753 = vmatpush1.bf16.msra.mxu0 0
      %1754 = vmatprep.subr.bf16.mxu0 0
      %1755 = vmatpush1.bf16.msra.mxu0 0
      %1756 = vmatprep.subr.bf16.mxu0 0
      %1757 = vmatpush1.bf16.msra.mxu0 0
      %1758 = vmatprep.mubr.bf16.mxu0 0
      %1759 = vmatmul.mubr.bf16.gmra.mrb[0].mxu0 %v873
      %v1760 = vpop.f32.mrb[0].mxu0
      %v1761 = vadd.f32 %v1009, %v1760
      %v1762 = vpop.f32.mrb[0].mxu0
      %v1763 = vadd.f32 %v1013, %v1762
      %v1764 = vpop.f32.mrb[0].mxu0
      %v1765 = vpop.f32.mrb[0].mxu0
      %1766 = vdwg.mxu0
      %1767 = vmatprep.subr.bf16.mxu0 %v1473
      %1768 = vmatpush1.bf16.msra.mxu0 %v1472
      %1769 = vmatprep.subr.bf16.mxu0 %v1489
      %1770 = vmatpush1.bf16.msra.mxu0 %v1488
      %1771 = vmatprep.subr.bf16.mxu0 %v1505
      %1772 = vmatpush1.bf16.msra.mxu0 %v1504
      %1773 = vmatprep.subr.bf16.mxu0 %v1521
      %1774 = vmatpush1.bf16.msra.mxu0 %v1520
      %1775 = vmatprep.subr.bf16.mxu0 %v1537
      %1776 = vmatpush1.bf16.msra.mxu0 %v1536
      %1777 = vmatprep.subr.bf16.mxu0 %v1553
      %1778 = vmatpush1.bf16.msra.mxu0 %v1552
      %1779 = vmatprep.subr.bf16.mxu0 %v1569
      %1780 = vmatpush1.bf16.msra.mxu0 %v1568
      %1781 = vmatprep.subr.bf16.mxu0 %v1585
      %1782 = vmatpush1.bf16.msra.mxu0 %v1584
      %1783 = vmatprep.subr.bf16.mxu0 0
      %1784 = vmatpush1.bf16.msra.mxu0 0
      %1785 = vmatprep.subr.bf16.mxu0 0
      %1786 = vmatpush1.bf16.msra.mxu0 0
      %1787 = vmatprep.subr.bf16.mxu0 0
      %1788 = vmatpush1.bf16.msra.mxu0 0
      %1789 = vmatprep.subr.bf16.mxu0 0
      %1790 = vmatpush1.bf16.msra.mxu0 0
      %1791 = vmatprep.subr.bf16.mxu0 0
      %1792 = vmatpush1.bf16.msra.mxu0 0
      %1793 = vmatprep.subr.bf16.mxu0 0
      %1794 = vmatpush1.bf16.msra.mxu0 0
      %1795 = vmatprep.subr.bf16.mxu0 0
      %1796 = vmatpush1.bf16.msra.mxu0 0
      %1797 = vmatprep.subr.bf16.mxu0 0
      %1798 = vmatpush1.bf16.msra.mxu0 0
      %1799 = vmatprep.mubr.bf16.mxu0 0
      %1800 = vmatmul.mubr.bf16.gmra.mrb[0].mxu0 %v873
      %v1801 = vpop.f32.mrb[0].mxu0
      %v1802 = vadd.f32 %v1017, %v1801
      %v1803 = vpop.f32.mrb[0].mxu0
      %v1804 = vadd.f32 %v1021, %v1803
      %v1805 = vpop.f32.mrb[0].mxu0
      %v1806 = vpop.f32.mrb[0].mxu0
      %1807 = vdwg.mxu0
      %1808 = vmatprep.subr.bf16.mxu0 %v1475
      %1809 = vmatpush1.bf16.msra.mxu0 %v1474
      %1810 = vmatprep.subr.bf16.mxu0 %v1491
      %1811 = vmatpush1.bf16.msra.mxu0 %v1490
      %1812 = vmatprep.subr.bf16.mxu0 %v1507
      %1813 = vmatpush1.bf16.msra.mxu0 %v1506
      %1814 = vmatprep.subr.bf16.mxu0 %v1523
      %1815 = vmatpush1.bf16.msra.mxu0 %v1522
      %1816 = vmatprep.subr.bf16.mxu0 %v1539
      %1817 = vmatpush1.bf16.msra.mxu0 %v1538
      %1818 = vmatprep.subr.bf16.mxu0 %v1555
      %1819 = vmatpush1.bf16.msra.mxu0 %v1554
      %1820 = vmatprep.subr.bf16.mxu0 %v1571
      %1821 = vmatpush1.bf16.msra.mxu0 %v1570
      %1822 = vmatprep.subr.bf16.mxu0 %v1587
      %1823 = vmatpush1.bf16.msra.mxu0 %v1586
      %1824 = vmatprep.subr.bf16.mxu0 0
      %1825 = vmatpush1.bf16.msra.mxu0 0
      %1826 = vmatprep.subr.bf16.mxu0 0
      %1827 = vmatpush1.bf16.msra.mxu0 0
      %1828 = vmatprep.subr.bf16.mxu0 0
      %1829 = vmatpush1.bf16.msra.mxu0 0
      %1830 = vmatprep.subr.bf16.mxu0 0
      %1831 = vmatpush1.bf16.msra.mxu0 0
      %1832 = vmatprep.subr.bf16.mxu0 0
      %1833 = vmatpush1.bf16.msra.mxu0 0
      %1834 = vmatprep.subr.bf16.mxu0 0
      %1835 = vmatpush1.bf16.msra.mxu0 0
      %1836 = vmatprep.subr.bf16.mxu0 0
      %1837 = vmatpush1.bf16.msra.mxu0 0
      %1838 = vmatprep.subr.bf16.mxu0 0
      %1839 = vmatpush1.bf16.msra.mxu0 0
      %1840 = vmatprep.mubr.bf16.mxu0 0
      %1841 = vmatmul.mubr.bf16.gmra.mrb[0].mxu0 %v873
      %v1842 = vpop.f32.mrb[0].mxu0
      %v1843 = vadd.f32 %v1025, %v1842
      %v1844 = vpop.f32.mrb[0].mxu0
      %v1845 = vadd.f32 %v1029, %v1844
      %v1846 = vpop.f32.mrb[0].mxu0
      %v1847 = vpop.f32.mrb[0].mxu0
      %1848 = vdwg.mxu0
      %1849 = vmatprep.subr.bf16.mxu0 %v1477
      %1850 = vmatpush1.bf16.msra.mxu0 %v1476
      %1851 = vmatprep.subr.bf16.mxu0 %v1493
      %1852 = vmatpush1.bf16.msra.mxu0 %v1492
      %1853 = vmatprep.subr.bf16.mxu0 %v1509
      %1854 = vmatpush1.bf16.msra.mxu0 %v1508
      %1855 = vmatprep.subr.bf16.mxu0 %v1525
      %1856 = vmatpush1.bf16.msra.mxu0 %v1524
      %1857 = vmatprep.subr.bf16.mxu0 %v1541
      %1858 = vmatpush1.bf16.msra.mxu0 %v1540
      %1859 = vmatprep.subr.bf16.mxu0 %v1557
      %1860 = vmatpush1.bf16.msra.mxu0 %v1556
      %1861 = vmatprep.subr.bf16.mxu0 %v1573
      %1862 = vmatpush1.bf16.msra.mxu0 %v1572
      %1863 = vmatprep.subr.bf16.mxu0 %v1589
      %1864 = vmatpush1.bf16.msra.mxu0 %v1588
      %1865 = vmatprep.subr.bf16.mxu0 0
      %1866 = vmatpush1.bf16.msra.mxu0 0
      %1867 = vmatprep.subr.bf16.mxu0 0
      %1868 = vmatpush1.bf16.msra.mxu0 0
      %1869 = vmatprep.subr.bf16.mxu0 0
      %1870 = vmatpush1.bf16.msra.mxu0 0
      %1871 = vmatprep.subr.bf16.mxu0 0
      %1872 = vmatpush1.bf16.msra.mxu0 0
      %1873 = vmatprep.subr.bf16.mxu0 0
      %1874 = vmatpush1.bf16.msra.mxu0 0
      %1875 = vmatprep.subr.bf16.mxu0 0
      %1876 = vmatpush1.bf16.msra.mxu0 0
      %1877 = vmatprep.subr.bf16.mxu0 0
      %1878 = vmatpush1.bf16.msra.mxu0 0
      %1879 = vmatprep.subr.bf16.mxu0 0
      %1880 = vmatpush1.bf16.msra.mxu0 0
      %1881 = vmatprep.mubr.bf16.mxu0 0
      %1882 = vmatmul.mubr.bf16.gmra.mrb[0].mxu0 %v873
      %v1883 = vpop.f32.mrb[0].mxu0
      %v1884 = vadd.f32 %v1033, %v1883
      %v1885 = vpop.f32.mrb[0].mxu0
      %v1886 = vadd.f32 %v1037, %v1885
      %v1887 = vpop.f32.mrb[0].mxu0
      %v1888 = vpop.f32.mrb[0].mxu0
      %1889 = vdwg.mxu0
      %1890 = vmatprep.subr.bf16.mxu0 %v1479
      %1891 = vmatpush1.bf16.msra.mxu0 %v1478
      %1892 = vmatprep.subr.bf16.mxu0 %v1495
      %1893 = vmatpush1.bf16.msra.mxu0 %v1494
      %1894 = vmatprep.subr.bf16.mxu0 %v1511
      %1895 = vmatpush1.bf16.msra.mxu0 %v1510
      %1896 = vmatprep.subr.bf16.mxu0 %v1527
      %1897 = vmatpush1.bf16.msra.mxu0 %v1526
      %1898 = vmatprep.subr.bf16.mxu0 %v1543
      %1899 = vmatpush1.bf16.msra.mxu0 %v1542
      %1900 = vmatprep.subr.bf16.mxu0 %v1559
      %1901 = vmatpush1.bf16.msra.mxu0 %v1558
      %1902 = vmatprep.subr.bf16.mxu0 %v1575
      %1903 = vmatpush1.bf16.msra.mxu0 %v1574
      %1904 = vmatprep.subr.bf16.mxu0 %v1591
      %1905 = vmatpush1.bf16.msra.mxu0 %v1590
      %1906 = vmatprep.subr.bf16.mxu0 0
      %1907 = vmatpush1.bf16.msra.mxu0 0
      %1908 = vmatprep.subr.bf16.mxu0 0
      %1909 = vmatpush1.bf16.msra.mxu0 0
      %1910 = vmatprep.subr.bf16.mxu0 0
      %1911 = vmatpush1.bf16.msra.mxu0 0
      %1912 = vmatprep.subr.bf16.mxu0 0
      %1913 = vmatpush1.bf16.msra.mxu0 0
      %1914 = vmatprep.subr.bf16.mxu0 0
      %1915 = vmatpush1.bf16.msra.mxu0 0
      %1916 = vmatprep.subr.bf16.mxu0 0
      %1917 = vmatpush1.bf16.msra.mxu0 0
      %1918 = vmatprep.subr.bf16.mxu0 0
      %1919 = vmatpush1.bf16.msra.mxu0 0
      %1920 = vmatprep.subr.bf16.mxu0 0
      %1921 = vmatpush1.bf16.msra.mxu0 0
      %1922 = vmatprep.mubr.bf16.mxu0 0
      %1923 = vmatmul.mubr.bf16.gmra.mrb[0].mxu0 %v873
      %v1924 = vpop.f32.mrb[0].mxu0
      %v1925 = vadd.f32 %v1041, %v1924
      %v1926 = vpop.f32.mrb[0].mxu0
      %v1927 = vadd.f32 %v1045, %v1926
      %v1928 = vpop.f32.mrb[0].mxu0
      %v1929 = vpop.f32.mrb[0].mxu0
      %1930 = vdwg.mxu0
      %1931 = vmatprep.subr.bf16.mxu0 %v1481
      %1932 = vmatpush1.bf16.msra.mxu0 %v1480
      %1933 = vmatprep.subr.bf16.mxu0 %v1497
      %1934 = vmatpush1.bf16.msra.mxu0 %v1496
      %1935 = vmatprep.subr.bf16.mxu0 %v1513
      %1936 = vmatpush1.bf16.msra.mxu0 %v1512
      %1937 = vmatprep.subr.bf16.mxu0 %v1529
      %1938 = vmatpush1.bf16.msra.mxu0 %v1528
      %1939 = vmatprep.subr.bf16.mxu0 %v1545
      %1940 = vmatpush1.bf16.msra.mxu0 %v1544
      %1941 = vmatprep.subr.bf16.mxu0 %v1561
      %1942 = vmatpush1.bf16.msra.mxu0 %v1560
      %1943 = vmatprep.subr.bf16.mxu0 %v1577
      %1944 = vmatpush1.bf16.msra.mxu0 %v1576
      %1945 = vmatprep.subr.bf16.mxu0 %v1593
      %1946 = vmatpush1.bf16.msra.mxu0 %v1592
      %1947 = vmatprep.subr.bf16.mxu0 0
      %1948 = vmatpush1.bf16.msra.mxu0 0
      %1949 = vmatprep.subr.bf16.mxu0 0
      %1950 = vmatpush1.bf16.msra.mxu0 0
      %1951 = vmatprep.subr.bf16.mxu0 0
      %1952 = vmatpush1.bf16.msra.mxu0 0
      %1953 = vmatprep.subr.bf16.mxu0 0
      %1954 = vmatpush1.bf16.msra.mxu0 0
      %1955 = vmatprep.subr.bf16.mxu0 0
      %1956 = vmatpush1.bf16.msra.mxu0 0
      %1957 = vmatprep.subr.bf16.mxu0 0
      %1958 = vmatpush1.bf16.msra.mxu0 0
      %1959 = vmatprep.subr.bf16.mxu0 0
      %1960 = vmatpush1.bf16.msra.mxu0 0
      %1961 = vmatprep.subr.bf16.mxu0 0
      %1962 = vmatpush1.bf16.msra.mxu0 0
      %1963 = vmatprep.mubr.bf16.mxu0 0
      %1964 = vmatmul.mubr.bf16.gmra.mrb[0].mxu0 %v873
      %v1965 = vpop.f32.mrb[0].mxu0
      %v1966 = vadd.f32 %v1049, %v1965
      %v1967 = vpop.f32.mrb[0].mxu0
      %v1968 = vadd.f32 %v1053, %v1967
      %v1969 = vpop.f32.mrb[0].mxu0
      %v1970 = vpop.f32.mrb[0].mxu0
      %1971 = vdwg.mxu0
      %1972 = vmatprep.subr.bf16.mxu0 %v1483
      %1973 = vmatpush1.bf16.msra.mxu0 %v1482
      %1974 = vmatprep.subr.bf16.mxu0 %v1499
      %1975 = vmatpush1.bf16.msra.mxu0 %v1498
      %1976 = vmatprep.subr.bf16.mxu0 %v1515
      %1977 = vmatpush1.bf16.msra.mxu0 %v1514
      %1978 = vmatprep.subr.bf16.mxu0 %v1531
      %1979 = vmatpush1.bf16.msra.mxu0 %v1530
      %1980 = vmatprep.subr.bf16.mxu0 %v1547
      %1981 = vmatpush1.bf16.msra.mxu0 %v1546
      %1982 = vmatprep.subr.bf16.mxu0 %v1563
      %1983 = vmatpush1.bf16.msra.mxu0 %v1562
      %1984 = vmatprep.subr.bf16.mxu0 %v1579
      %1985 = vmatpush1.bf16.msra.mxu0 %v1578
      %1986 = vmatprep.subr.bf16.mxu0 %v1595
      %1987 = vmatpush1.bf16.msra.mxu0 %v1594
      %1988 = vmatprep.subr.bf16.mxu0 0
      %1989 = vmatpush1.bf16.msra.mxu0 0
      %1990 = vmatprep.subr.bf16.mxu0 0
      %1991 = vmatpush1.bf16.msra.mxu0 0
      %1992 = vmatprep.subr.bf16.mxu0 0
      %1993 = vmatpush1.bf16.msra.mxu0 0
      %1994 = vmatprep.subr.bf16.mxu0 0
      %1995 = vmatpush1.bf16.msra.mxu0 0
      %1996 = vmatprep.subr.bf16.mxu0 0
      %1997 = vmatpush1.bf16.msra.mxu0 0
      %1998 = vmatprep.subr.bf16.mxu0 0
      %1999 = vmatpush1.bf16.msra.mxu0 0
      %2000 = vmatprep.subr.bf16.mxu0 0
      %2001 = vmatpush1.bf16.msra.mxu0 0
      %2002 = vmatprep.subr.bf16.mxu0 0
      %2003 = vmatpush1.bf16.msra.mxu0 0
      %2004 = vmatprep.mubr.bf16.mxu0 0
      %2005 = vmatmul.mubr.bf16.gmra.mrb[0].mxu0 %v873
      %v2006 = vpop.f32.mrb[0].mxu0
      %v2007 = vadd.f32 %v1057, %v2006
      %v2008 = vpop.f32.mrb[0].mxu0
      %v2009 = vadd.f32 %v1061, %v2008
      %v2010 = vpop.f32.mrb[0].mxu0
      %v2011 = vpop.f32.mrb[0].mxu0
      %2012 = vdwg.mxu0
      %2013 = vmatprep.subr.bf16.mxu0 %v1485
      %2014 = vmatpush1.bf16.msra.mxu0 %v1484
      %2015 = vmatprep.subr.bf16.mxu0 %v1501
      %2016 = vmatpush1.bf16.msra.mxu0 %v1500
      %2017 = vmatprep.subr.bf16.mxu0 %v1517
      %2018 = vmatpush1.bf16.msra.mxu0 %v1516
      %2019 = vmatprep.subr.bf16.mxu0 %v1533
      %2020 = vmatpush1.bf16.msra.mxu0 %v1532
      %2021 = vmatprep.subr.bf16.mxu0 %v1549
      %2022 = vmatpush1.bf16.msra.mxu0 %v1548
      %2023 = vmatprep.subr.bf16.mxu0 %v1565
      %2024 = vmatpush1.bf16.msra.mxu0 %v1564
      %2025 = vmatprep.subr.bf16.mxu0 %v1581
      %2026 = vmatpush1.bf16.msra.mxu0 %v1580
      %2027 = vmatprep.subr.bf16.mxu0 %v1597
      %2028 = vmatpush1.bf16.msra.mxu0 %v1596
      %2029 = vmatprep.subr.bf16.mxu0 0
      %2030 = vmatpush1.bf16.msra.mxu0 0
      %2031 = vmatprep.subr.bf16.mxu0 0
      %2032 = vmatpush1.bf16.msra.mxu0 0
      %2033 = vmatprep.subr.bf16.mxu0 0
      %2034 = vmatpush1.bf16.msra.mxu0 0
      %2035 = vmatprep.subr.bf16.mxu0 0
      %2036 = vmatpush1.bf16.msra.mxu0 0
      %2037 = vmatprep.subr.bf16.mxu0 0
      %2038 = vmatpush1.bf16.msra.mxu0 0
      %2039 = vmatprep.subr.bf16.mxu0 0
      %2040 = vmatpush1.bf16.msra.mxu0 0
      %2041 = vmatprep.subr.bf16.mxu0 0
      %2042 = vmatpush1.bf16.msra.mxu0 0
      %2043 = vmatprep.subr.bf16.mxu0 0
      %2044 = vmatpush1.bf16.msra.mxu0 0
      %2045 = vmatprep.mubr.bf16.mxu0 0
      %2046 = vmatmul.mubr.bf16.gmra.mrb[0].mxu0 %v873
      %v2047 = vpop.f32.mrb[0].mxu0
      %v2048 = vadd.f32 %v1065, %v2047
      %v2049 = vpop.f32.mrb[0].mxu0
      %v2050 = vadd.f32 %v1069, %v2049
      %v2051 = vpop.f32.mrb[0].mxu0
      %v2052 = vpop.f32.mrb[0].mxu0
      %2053 = vdwg.mxu0
      %v2054 = vmax.f32 %v1761, 0.0
      %v2055 = vmax.f32 %v1763, 0.0
      %v2056 = vmax.f32 %v1802, 0.0
      %v2057 = vmax.f32 %v1804, 0.0
      %v2058 = vmax.f32 %v1843, 0.0
      %v2059 = vmax.f32 %v1845, 0.0
      %v2060 = vmax.f32 %v1884, 0.0
      %v2061 = vmax.f32 %v1886, 0.0
      %v2062 = vmax.f32 %v1925, 0.0
      %v2063 = vmax.f32 %v1927, 0.0
      %v2064 = vmax.f32 %v1966, 0.0
      %v2065 = vmax.f32 %v1968, 0.0
      %v2066 = vmax.f32 %v2007, 0.0
      %v2067 = vmax.f32 %v2009, 0.0
      %v2068 = vmax.f32 %v2048, 0.0
      %v2069 = vmax.f32 %v2050, 0.0
      %v2070 = vpack.c.bf16 %v2054, %v2054
      %v2071 = vpack.c.bf16 %v2055, %v2055
      %v2072 = vpack.c.bf16 %v2056, %v2056
      %v2073 = vpack.c.bf16 %v2057, %v2057
      %v2074 = vpack.c.bf16 %v2058, %v2058
      %v2075 = vpack.c.bf16 %v2059, %v2059
      %v2076 = vpack.c.bf16 %v2060, %v2060
      %v2077 = vpack.c.bf16 %v2061, %v2061
      %v2078 = vpack.c.bf16 %v2062, %v2062
      %v2079 = vpack.c.bf16 %v2063, %v2063
      %v2080 = vpack.c.bf16 %v2064, %v2064
      %v2081 = vpack.c.bf16 %v2065, %v2065
      %v2082 = vpack.c.bf16 %v2066, %v2066
      %v2083 = vpack.c.bf16 %v2067, %v2067
      %v2084 = vpack.c.bf16 %v2068, %v2068
      %v2085 = vpack.c.bf16 %v2069, %v2069
      %v2086 = vld [vmem:[%s9] sm:$0xf]
      %v2087 = vld [vmem:[%s9 + $0x4] sm:$0xf]
      %v2088 = vld [vmem:[%s9 + $0x8] sm:$0xf]
      %v2089 = vld [vmem:[%s9 + $0xc] sm:$0xf]
      %v2090 = vld [vmem:[%s9 + $0x10] sm:$0xf]
      %v2091 = vld [vmem:[%s9 + $0x14] sm:$0xf]
      %v2092 = vld [vmem:[%s9 + $0x18] sm:$0xf]
      %v2093 = vld [vmem:[%s9 + $0x1c] sm:$0xf]
      %v2094 = vld [vmem:[%s9 + $0x20] sm:$0xf]
      %v2095 = vld [vmem:[%s9 + $0x24] sm:$0xf]
      %v2096 = vld [vmem:[%s9 + $0x28] sm:$0xf]
      %v2097 = vld [vmem:[%s9 + $0x2c] sm:$0xf]
      %v2098 = vld [vmem:[%s9 + $0x30] sm:$0xf]
      %v2099 = vld [vmem:[%s9 + $0x34] sm:$0xf]
      %v2100 = vld [vmem:[%s9 + $0x38] sm:$0xf]
      %v2101 = vld [vmem:[%s9 + $0x3c] sm:$0xf]
      %v2102 = vld [vmem:[%s9 + $0x40] sm:$0xf]
      %v2103 = vld [vmem:[%s9 + $0x44] sm:$0xf]
      %v2104 = vld [vmem:[%s9 + $0x48] sm:$0xf]
      %v2105 = vld [vmem:[%s9 + $0x4c] sm:$0xf]
      %v2106 = vld [vmem:[%s9 + $0x50] sm:$0xf]
      %v2107 = vld [vmem:[%s9 + $0x54] sm:$0xf]
      %v2108 = vld [vmem:[%s9 + $0x58] sm:$0xf]
      %v2109 = vld [vmem:[%s9 + $0x5c] sm:$0xf]
      %v2110 = vld [vmem:[%s9 + $0x60] sm:$0xf]
      %v2111 = vld [vmem:[%s9 + $0x64] sm:$0xf]
      %v2112 = vld [vmem:[%s9 + $0x68] sm:$0xf]
      %v2113 = vld [vmem:[%s9 + $0x6c] sm:$0xf]
      %v2114 = vld [vmem:[%s9 + $0x70] sm:$0xf]
      %v2115 = vld [vmem:[%s9 + $0x74] sm:$0xf]
      %v2116 = vld [vmem:[%s9 + $0x78] sm:$0xf]
      %v2117 = vld [vmem:[%s9 + $0x7c] sm:$0xf]
      %v2118 = vld [vmem:[%s9 + $0x80] sm:$0xf]
      %v2119 = vld [vmem:[%s9 + $0x84] sm:$0xf]
      %v2120 = vld [vmem:[%s9 + $0x88] sm:$0xf]
      %v2121 = vld [vmem:[%s9 + $0x8c] sm:$0xf]
      %v2122 = vld [vmem:[%s9 + $0x90] sm:$0xf]
      %v2123 = vld [vmem:[%s9 + $0x94] sm:$0xf]
      %v2124 = vld [vmem:[%s9 + $0x98] sm:$0xf]
      %v2125 = vld [vmem:[%s9 + $0x9c] sm:$0xf]
      %v2126 = vld [vmem:[%s9 + $0xa0] sm:$0xf]
      %v2127 = vld [vmem:[%s9 + $0xa4] sm:$0xf]
      %v2128 = vld [vmem:[%s9 + $0xa8] sm:$0xf]
      %v2129 = vld [vmem:[%s9 + $0xac] sm:$0xf]
      %v2130 = vld [vmem:[%s9 + $0xb0] sm:$0xf]
      %v2131 = vld [vmem:[%s9 + $0xb4] sm:$0xf]
      %v2132 = vld [vmem:[%s9 + $0xb8] sm:$0xf]
      %v2133 = vld [vmem:[%s9 + $0xbc] sm:$0xf]
      %v2134 = vld [vmem:[%s9 + $0xc0] sm:$0xf]
      %v2135 = vld [vmem:[%s9 + $0xc4] sm:$0xf]
      %v2136 = vld [vmem:[%s9 + $0xc8] sm:$0xf]
      %v2137 = vld [vmem:[%s9 + $0xcc] sm:$0xf]
      %v2138 = vld [vmem:[%s9 + $0xd0] sm:$0xf]
      %v2139 = vld [vmem:[%s9 + $0xd4] sm:$0xf]
      %v2140 = vld [vmem:[%s9 + $0xd8] sm:$0xf]
      %v2141 = vld [vmem:[%s9 + $0xdc] sm:$0xf]
      %v2142 = vld [vmem:[%s9 + $0xe0] sm:$0xf]
      %v2143 = vld [vmem:[%s9 + $0xe4] sm:$0xf]
      %v2144 = vld [vmem:[%s9 + $0xe8] sm:$0xf]
      %v2145 = vld [vmem:[%s9 + $0xec] sm:$0xf]
      %v2146 = vld [vmem:[%s9 + $0xf0] sm:$0xf]
      %v2147 = vld [vmem:[%s9 + $0xf4] sm:$0xf]
      %v2148 = vld [vmem:[%s9 + $0xf8] sm:$0xf]
      %v2149 = vld [vmem:[%s9 + $0xfc] sm:$0xf]
      %v2150 = vld [vmem:[%s9 + $0x100] sm:$0xf]
      %v2151 = vld [vmem:[%s9 + $0x104] sm:$0xf]
      %v2152 = vld [vmem:[%s9 + $0x108] sm:$0xf]
      %v2153 = vld [vmem:[%s9 + $0x10c] sm:$0xf]
      %v2154 = vld [vmem:[%s9 + $0x110] sm:$0xf]
      %v2155 = vld [vmem:[%s9 + $0x114] sm:$0xf]
      %v2156 = vld [vmem:[%s9 + $0x118] sm:$0xf]
      %v2157 = vld [vmem:[%s9 + $0x11c] sm:$0xf]
      %v2158 = vld [vmem:[%s9 + $0x120] sm:$0xf]
      %v2159 = vld [vmem:[%s9 + $0x124] sm:$0xf]
      %v2160 = vld [vmem:[%s9 + $0x128] sm:$0xf]
      %v2161 = vld [vmem:[%s9 + $0x12c] sm:$0xf]
      %v2162 = vld [vmem:[%s9 + $0x130] sm:$0xf]
      %v2163 = vld [vmem:[%s9 + $0x134] sm:$0xf]
      %v2164 = vld [vmem:[%s9 + $0x138] sm:$0xf]
      %v2165 = vld [vmem:[%s9 + $0x13c] sm:$0xf]
      %v2166 = vld [vmem:[%s9 + $0x140] sm:$0xf]
      %v2167 = vld [vmem:[%s9 + $0x144] sm:$0xf]
      %v2168 = vld [vmem:[%s9 + $0x148] sm:$0xf]
      %v2169 = vld [vmem:[%s9 + $0x14c] sm:$0xf]
      %v2170 = vld [vmem:[%s9 + $0x150] sm:$0xf]
      %v2171 = vld [vmem:[%s9 + $0x154] sm:$0xf]
      %v2172 = vld [vmem:[%s9 + $0x158] sm:$0xf]
      %v2173 = vld [vmem:[%s9 + $0x15c] sm:$0xf]
      %v2174 = vld [vmem:[%s9 + $0x160] sm:$0xf]
      %v2175 = vld [vmem:[%s9 + $0x164] sm:$0xf]
      %v2176 = vld [vmem:[%s9 + $0x168] sm:$0xf]
      %v2177 = vld [vmem:[%s9 + $0x16c] sm:$0xf]
      %v2178 = vld [vmem:[%s9 + $0x170] sm:$0xf]
      %v2179 = vld [vmem:[%s9 + $0x174] sm:$0xf]
      %v2180 = vld [vmem:[%s9 + $0x178] sm:$0xf]
      %v2181 = vld [vmem:[%s9 + $0x17c] sm:$0xf]
      %v2182 = vld [vmem:[%s9 + $0x180] sm:$0xf]
      %v2183 = vld [vmem:[%s9 + $0x184] sm:$0xf]
      %v2184 = vld [vmem:[%s9 + $0x188] sm:$0xf]
      %v2185 = vld [vmem:[%s9 + $0x18c] sm:$0xf]
      %v2186 = vld [vmem:[%s9 + $0x190] sm:$0xf]
      %v2187 = vld [vmem:[%s9 + $0x194] sm:$0xf]
      %v2188 = vld [vmem:[%s9 + $0x198] sm:$0xf]
      %v2189 = vld [vmem:[%s9 + $0x19c] sm:$0xf]
      %v2190 = vld [vmem:[%s9 + $0x1a0] sm:$0xf]
      %v2191 = vld [vmem:[%s9 + $0x1a4] sm:$0xf]
      %v2192 = vld [vmem:[%s9 + $0x1a8] sm:$0xf]
      %v2193 = vld [vmem:[%s9 + $0x1ac] sm:$0xf]
      %v2194 = vld [vmem:[%s9 + $0x1b0] sm:$0xf]
      %v2195 = vld [vmem:[%s9 + $0x1b4] sm:$0xf]
      %v2196 = vld [vmem:[%s9 + $0x1b8] sm:$0xf]
      %v2197 = vld [vmem:[%s9 + $0x1bc] sm:$0xf]
      %v2198 = vld [vmem:[%s9 + $0x1c0] sm:$0xf]
      %v2199 = vld [vmem:[%s9 + $0x1c4] sm:$0xf]
      %v2200 = vld [vmem:[%s9 + $0x1c8] sm:$0xf]
      %v2201 = vld [vmem:[%s9 + $0x1cc] sm:$0xf]
      %v2202 = vld [vmem:[%s9 + $0x1d0] sm:$0xf]
      %v2203 = vld [vmem:[%s9 + $0x1d4] sm:$0xf]
      %v2204 = vld [vmem:[%s9 + $0x1d8] sm:$0xf]
      %v2205 = vld [vmem:[%s9 + $0x1dc] sm:$0xf]
      %v2206 = vld [vmem:[%s9 + $0x1e0] sm:$0xf]
      %v2207 = vld [vmem:[%s9 + $0x1e4] sm:$0xf]
      %v2208 = vld [vmem:[%s9 + $0x1e8] sm:$0xf]
      %v2209 = vld [vmem:[%s9 + $0x1ec] sm:$0xf]
      %v2210 = vld [vmem:[%s9 + $0x1f0] sm:$0xf]
      %v2211 = vld [vmem:[%s9 + $0x1f4] sm:$0xf]
      %v2212 = vld [vmem:[%s9 + $0x1f8] sm:$0xf]
      %v2213 = vld [vmem:[%s9 + $0x1fc] sm:$0xf]
      %v2214 = vld [vmem:[%s9 + $0x200] sm:$0xf]
      %v2215 = vld [vmem:[%s9 + $0x204] sm:$0xf]
      %v2216 = vld [vmem:[%s9 + $0x208] sm:$0xf]
      %v2217 = vld [vmem:[%s9 + $0x20c] sm:$0xf]
      %v2218 = vld [vmem:[%s9 + $0x210] sm:$0xf]
      %v2219 = vld [vmem:[%s9 + $0x214] sm:$0xf]
      %v2220 = vld [vmem:[%s9 + $0x218] sm:$0xf]
      %v2221 = vld [vmem:[%s9 + $0x21c] sm:$0xf]
      %v2222 = vld [vmem:[%s9 + $0x220] sm:$0xf]
      %v2223 = vld [vmem:[%s9 + $0x224] sm:$0xf]
      %v2224 = vld [vmem:[%s9 + $0x228] sm:$0xf]
      %v2225 = vld [vmem:[%s9 + $0x22c] sm:$0xf]
      %v2226 = vld [vmem:[%s9 + $0x230] sm:$0xf]
      %v2227 = vld [vmem:[%s9 + $0x234] sm:$0xf]
      %v2228 = vld [vmem:[%s9 + $0x238] sm:$0xf]
      %v2229 = vld [vmem:[%s9 + $0x23c] sm:$0xf]
      %v2230 = vld [vmem:[%s9 + $0x240] sm:$0xf]
      %v2231 = vld [vmem:[%s9 + $0x244] sm:$0xf]
      %v2232 = vld [vmem:[%s9 + $0x248] sm:$0xf]
      %v2233 = vld [vmem:[%s9 + $0x24c] sm:$0xf]
      %v2234 = vld [vmem:[%s9 + $0x250] sm:$0xf]
      %v2235 = vld [vmem:[%s9 + $0x254] sm:$0xf]
      %v2236 = vld [vmem:[%s9 + $0x258] sm:$0xf]
      %v2237 = vld [vmem:[%s9 + $0x25c] sm:$0xf]
      %v2238 = vld [vmem:[%s9 + $0x260] sm:$0xf]
      %v2239 = vld [vmem:[%s9 + $0x264] sm:$0xf]
      %v2240 = vld [vmem:[%s9 + $0x268] sm:$0xf]
      %v2241 = vld [vmem:[%s9 + $0x26c] sm:$0xf]
      %v2242 = vld [vmem:[%s9 + $0x270] sm:$0xf]
      %v2243 = vld [vmem:[%s9 + $0x274] sm:$0xf]
      %v2244 = vld [vmem:[%s9 + $0x278] sm:$0xf]
      %v2245 = vld [vmem:[%s9 + $0x27c] sm:$0xf]
      %v2246 = vld [vmem:[%s9 + $0x280] sm:$0xf]
      %v2247 = vld [vmem:[%s9 + $0x284] sm:$0xf]
      %v2248 = vld [vmem:[%s9 + $0x288] sm:$0xf]
      %v2249 = vld [vmem:[%s9 + $0x28c] sm:$0xf]
      %v2250 = vld [vmem:[%s9 + $0x290] sm:$0xf]
      %v2251 = vld [vmem:[%s9 + $0x294] sm:$0xf]
      %v2252 = vld [vmem:[%s9 + $0x298] sm:$0xf]
      %v2253 = vld [vmem:[%s9 + $0x29c] sm:$0xf]
      %v2254 = vld [vmem:[%s9 + $0x2a0] sm:$0xf]
      %v2255 = vld [vmem:[%s9 + $0x2a4] sm:$0xf]
      %v2256 = vld [vmem:[%s9 + $0x2a8] sm:$0xf]
      %v2257 = vld [vmem:[%s9 + $0x2ac] sm:$0xf]
      %v2258 = vld [vmem:[%s9 + $0x2b0] sm:$0xf]
      %v2259 = vld [vmem:[%s9 + $0x2b4] sm:$0xf]
      %v2260 = vld [vmem:[%s9 + $0x2b8] sm:$0xf]
      %v2261 = vld [vmem:[%s9 + $0x2bc] sm:$0xf]
      %v2262 = vld [vmem:[%s9 + $0x2c0] sm:$0xf]
      %v2263 = vld [vmem:[%s9 + $0x2c4] sm:$0xf]
      %v2264 = vld [vmem:[%s9 + $0x2c8] sm:$0xf]
      %v2265 = vld [vmem:[%s9 + $0x2cc] sm:$0xf]
      %v2266 = vld [vmem:[%s9 + $0x2d0] sm:$0xf]
      %v2267 = vld [vmem:[%s9 + $0x2d4] sm:$0xf]
      %v2268 = vld [vmem:[%s9 + $0x2d8] sm:$0xf]
      %v2269 = vld [vmem:[%s9 + $0x2dc] sm:$0xf]
      %v2270 = vld [vmem:[%s9 + $0x2e0] sm:$0xf]
      %v2271 = vld [vmem:[%s9 + $0x2e4] sm:$0xf]
      %v2272 = vld [vmem:[%s9 + $0x2e8] sm:$0xf]
      %v2273 = vld [vmem:[%s9 + $0x2ec] sm:$0xf]
      %v2274 = vld [vmem:[%s9 + $0x2f0] sm:$0xf]
      %v2275 = vld [vmem:[%s9 + $0x2f4] sm:$0xf]
      %v2276 = vld [vmem:[%s9 + $0x2f8] sm:$0xf]
      %v2277 = vld [vmem:[%s9 + $0x2fc] sm:$0xf]
      %v2278 = vld [vmem:[%s9 + $0x300] sm:$0xf]
      %v2279 = vld [vmem:[%s9 + $0x304] sm:$0xf]
      %v2280 = vld [vmem:[%s9 + $0x308] sm:$0xf]
      %v2281 = vld [vmem:[%s9 + $0x30c] sm:$0xf]
      %v2282 = vld [vmem:[%s9 + $0x310] sm:$0xf]
      %v2283 = vld [vmem:[%s9 + $0x314] sm:$0xf]
      %v2284 = vld [vmem:[%s9 + $0x318] sm:$0xf]
      %v2285 = vld [vmem:[%s9 + $0x31c] sm:$0xf]
      %v2286 = vld [vmem:[%s9 + $0x320] sm:$0xf]
      %v2287 = vld [vmem:[%s9 + $0x324] sm:$0xf]
      %v2288 = vld [vmem:[%s9 + $0x328] sm:$0xf]
      %v2289 = vld [vmem:[%s9 + $0x32c] sm:$0xf]
      %v2290 = vld [vmem:[%s9 + $0x330] sm:$0xf]
      %v2291 = vld [vmem:[%s9 + $0x334] sm:$0xf]
      %v2292 = vld [vmem:[%s9 + $0x338] sm:$0xf]
      %v2293 = vld [vmem:[%s9 + $0x33c] sm:$0xf]
      %v2294 = vld [vmem:[%s9 + $0x340] sm:$0xf]
      %v2295 = vld [vmem:[%s9 + $0x344] sm:$0xf]
      %v2296 = vld [vmem:[%s9 + $0x348] sm:$0xf]
      %v2297 = vld [vmem:[%s9 + $0x34c] sm:$0xf]
      %v2298 = vld [vmem:[%s9 + $0x350] sm:$0xf]
      %v2299 = vld [vmem:[%s9 + $0x354] sm:$0xf]
      %v2300 = vld [vmem:[%s9 + $0x358] sm:$0xf]
      %v2301 = vld [vmem:[%s9 + $0x35c] sm:$0xf]
      %v2302 = vld [vmem:[%s9 + $0x360] sm:$0xf]
      %v2303 = vld [vmem:[%s9 + $0x364] sm:$0xf]
      %v2304 = vld [vmem:[%s9 + $0x368] sm:$0xf]
      %v2305 = vld [vmem:[%s9 + $0x36c] sm:$0xf]
      %v2306 = vld [vmem:[%s9 + $0x370] sm:$0xf]
      %v2307 = vld [vmem:[%s9 + $0x374] sm:$0xf]
      %v2308 = vld [vmem:[%s9 + $0x378] sm:$0xf]
      %v2309 = vld [vmem:[%s9 + $0x37c] sm:$0xf]
      %v2310 = vld [vmem:[%s9 + $0x380] sm:$0xf]
      %v2311 = vld [vmem:[%s9 + $0x384] sm:$0xf]
      %v2312 = vld [vmem:[%s9 + $0x388] sm:$0xf]
      %v2313 = vld [vmem:[%s9 + $0x38c] sm:$0xf]
      %v2314 = vld [vmem:[%s9 + $0x390] sm:$0xf]
      %v2315 = vld [vmem:[%s9 + $0x394] sm:$0xf]
      %v2316 = vld [vmem:[%s9 + $0x398] sm:$0xf]
      %v2317 = vld [vmem:[%s9 + $0x39c] sm:$0xf]
      %v2318 = vld [vmem:[%s9 + $0x3a0] sm:$0xf]
      %v2319 = vld [vmem:[%s9 + $0x3a4] sm:$0xf]
      %v2320 = vld [vmem:[%s9 + $0x3a8] sm:$0xf]
      %v2321 = vld [vmem:[%s9 + $0x3ac] sm:$0xf]
      %v2322 = vld [vmem:[%s9 + $0x3b0] sm:$0xf]
      %v2323 = vld [vmem:[%s9 + $0x3b4] sm:$0xf]
      %v2324 = vld [vmem:[%s9 + $0x3b8] sm:$0xf]
      %v2325 = vld [vmem:[%s9 + $0x3bc] sm:$0xf]
      %v2326 = vld [vmem:[%s9 + $0x3c0] sm:$0xf]
      %v2327 = vld [vmem:[%s9 + $0x3c4] sm:$0xf]
      %v2328 = vld [vmem:[%s9 + $0x3c8] sm:$0xf]
      %v2329 = vld [vmem:[%s9 + $0x3cc] sm:$0xf]
      %v2330 = vld [vmem:[%s9 + $0x3d0] sm:$0xf]
      %v2331 = vld [vmem:[%s9 + $0x3d4] sm:$0xf]
      %v2332 = vld [vmem:[%s9 + $0x3d8] sm:$0xf]
      %v2333 = vld [vmem:[%s9 + $0x3dc] sm:$0xf]
      %v2334 = vld [vmem:[%s9 + $0x3e0] sm:$0xf]
      %v2335 = vld [vmem:[%s9 + $0x3e4] sm:$0xf]
      %v2336 = vld [vmem:[%s9 + $0x3e8] sm:$0xf]
      %v2337 = vld [vmem:[%s9 + $0x3ec] sm:$0xf]
      %v2338 = vld [vmem:[%s9 + $0x3f0] sm:$0xf]
      %v2339 = vld [vmem:[%s9 + $0x3f4] sm:$0xf]
      %v2340 = vld [vmem:[%s9 + $0x3f8] sm:$0xf]
      %v2341 = vld [vmem:[%s9 + $0x3fc] sm:$0xf]
      %v2342 = vld [vmem:[%s10] sm:$0x1]
      %v2344 = vlaneseq
      %v2345 = vshrl.u32 %v2344, 7
      %v2346 = vsub.s32 0, %v2345
      %v2347 = vrot.slane %v2342, %v2346
      %v2605 = vunpack.c.l.b16 %v2086
      %v2606 = vunpack.c.l.b16 %v2087
      %v2607 = vunpack.c.l.b16 %v2088
      %v2608 = vunpack.c.l.b16 %v2089
      %v2609 = vunpack.c.l.b16 %v2090
      %v2610 = vunpack.c.l.b16 %v2091
      %v2611 = vunpack.c.l.b16 %v2092
      %v2612 = vunpack.c.l.b16 %v2093
      %v2613 = vunpack.c.l.b16 %v2094
      %v2614 = vunpack.c.l.b16 %v2095
      %v2615 = vunpack.c.l.b16 %v2096
      %v2616 = vunpack.c.l.b16 %v2097
      %v2617 = vunpack.c.l.b16 %v2098
      %v2618 = vunpack.c.l.b16 %v2099
      %v2619 = vunpack.c.l.b16 %v2100
      %v2620 = vunpack.c.l.b16 %v2101
      %v2621 = vunpack.c.l.b16 %v2102
      %v2622 = vunpack.c.l.b16 %v2103
      %v2623 = vunpack.c.l.b16 %v2104
      %v2624 = vunpack.c.l.b16 %v2105
      %v2625 = vunpack.c.l.b16 %v2106
      %v2626 = vunpack.c.l.b16 %v2107
      %v2627 = vunpack.c.l.b16 %v2108
      %v2628 = vunpack.c.l.b16 %v2109
      %v2629 = vunpack.c.l.b16 %v2110
      %v2630 = vunpack.c.l.b16 %v2111
      %v2631 = vunpack.c.l.b16 %v2112
      %v2632 = vunpack.c.l.b16 %v2113
      %v2633 = vunpack.c.l.b16 %v2114
      %v2634 = vunpack.c.l.b16 %v2115
      %v2635 = vunpack.c.l.b16 %v2116
      %v2636 = vunpack.c.l.b16 %v2117
      %v2637 = vunpack.c.l.b16 %v2118
      %v2638 = vunpack.c.l.b16 %v2119
      %v2639 = vunpack.c.l.b16 %v2120
      %v2640 = vunpack.c.l.b16 %v2121
      %v2641 = vunpack.c.l.b16 %v2122
      %v2642 = vunpack.c.l.b16 %v2123
      %v2643 = vunpack.c.l.b16 %v2124
      %v2644 = vunpack.c.l.b16 %v2125
      %v2645 = vunpack.c.l.b16 %v2126
      %v2646 = vunpack.c.l.b16 %v2127
      %v2647 = vunpack.c.l.b16 %v2128
      %v2648 = vunpack.c.l.b16 %v2129
      %v2649 = vunpack.c.l.b16 %v2130
      %v2650 = vunpack.c.l.b16 %v2131
      %v2651 = vunpack.c.l.b16 %v2132
      %v2652 = vunpack.c.l.b16 %v2133
      %v2653 = vunpack.c.l.b16 %v2134
      %v2654 = vunpack.c.l.b16 %v2135
      %v2655 = vunpack.c.l.b16 %v2136
      %v2656 = vunpack.c.l.b16 %v2137
      %v2657 = vunpack.c.l.b16 %v2138
      %v2658 = vunpack.c.l.b16 %v2139
      %v2659 = vunpack.c.l.b16 %v2140
      %v2660 = vunpack.c.l.b16 %v2141
      %v2661 = vunpack.c.l.b16 %v2142
      %v2662 = vunpack.c.l.b16 %v2143
      %v2663 = vunpack.c.l.b16 %v2144
      %v2664 = vunpack.c.l.b16 %v2145
      %v2665 = vunpack.c.l.b16 %v2146
      %v2666 = vunpack.c.l.b16 %v2147
      %v2667 = vunpack.c.l.b16 %v2148
      %v2668 = vunpack.c.l.b16 %v2149
      %v2669 = vunpack.c.l.b16 %v2150
      %v2670 = vunpack.c.l.b16 %v2151
      %v2671 = vunpack.c.l.b16 %v2152
      %v2672 = vunpack.c.l.b16 %v2153
      %v2673 = vunpack.c.l.b16 %v2154
      %v2674 = vunpack.c.l.b16 %v2155
      %v2675 = vunpack.c.l.b16 %v2156
      %v2676 = vunpack.c.l.b16 %v2157
      %v2677 = vunpack.c.l.b16 %v2158
      %v2678 = vunpack.c.l.b16 %v2159
      %v2679 = vunpack.c.l.b16 %v2160
      %v2680 = vunpack.c.l.b16 %v2161
      %v2681 = vunpack.c.l.b16 %v2162
      %v2682 = vunpack.c.l.b16 %v2163
      %v2683 = vunpack.c.l.b16 %v2164
      %v2684 = vunpack.c.l.b16 %v2165
      %v2685 = vunpack.c.l.b16 %v2166
      %v2686 = vunpack.c.l.b16 %v2167
      %v2687 = vunpack.c.l.b16 %v2168
      %v2688 = vunpack.c.l.b16 %v2169
      %v2689 = vunpack.c.l.b16 %v2170
      %v2690 = vunpack.c.l.b16 %v2171
      %v2691 = vunpack.c.l.b16 %v2172
      %v2692 = vunpack.c.l.b16 %v2173
      %v2693 = vunpack.c.l.b16 %v2174
      %v2694 = vunpack.c.l.b16 %v2175
      %v2695 = vunpack.c.l.b16 %v2176
      %v2696 = vunpack.c.l.b16 %v2177
      %v2697 = vunpack.c.l.b16 %v2178
      %v2698 = vunpack.c.l.b16 %v2179
      %v2699 = vunpack.c.l.b16 %v2180
      %v2700 = vunpack.c.l.b16 %v2181
      %v2701 = vunpack.c.l.b16 %v2182
      %v2702 = vunpack.c.l.b16 %v2183
      %v2703 = vunpack.c.l.b16 %v2184
      %v2704 = vunpack.c.l.b16 %v2185
      %v2705 = vunpack.c.l.b16 %v2186
      %v2706 = vunpack.c.l.b16 %v2187
      %v2707 = vunpack.c.l.b16 %v2188
      %v2708 = vunpack.c.l.b16 %v2189
      %v2709 = vunpack.c.l.b16 %v2190
      %v2710 = vunpack.c.l.b16 %v2191
      %v2711 = vunpack.c.l.b16 %v2192
      %v2712 = vunpack.c.l.b16 %v2193
      %v2713 = vunpack.c.l.b16 %v2194
      %v2714 = vunpack.c.l.b16 %v2195
      %v2715 = vunpack.c.l.b16 %v2196
      %v2716 = vunpack.c.l.b16 %v2197
      %v2717 = vunpack.c.l.b16 %v2198
      %v2718 = vunpack.c.l.b16 %v2199
      %v2719 = vunpack.c.l.b16 %v2200
      %v2720 = vunpack.c.l.b16 %v2201
      %v2721 = vunpack.c.l.b16 %v2202
      %v2722 = vunpack.c.l.b16 %v2203
      %v2723 = vunpack.c.l.b16 %v2204
      %v2724 = vunpack.c.l.b16 %v2205
      %v2725 = vunpack.c.l.b16 %v2206
      %v2726 = vunpack.c.l.b16 %v2207
      %v2727 = vunpack.c.l.b16 %v2208
      %v2728 = vunpack.c.l.b16 %v2209
      %v2729 = vunpack.c.l.b16 %v2210
      %v2730 = vunpack.c.l.b16 %v2211
      %v2731 = vunpack.c.l.b16 %v2212
      %v2732 = vunpack.c.l.b16 %v2213
      %v2733 = vunpack.c.l.b16 %v2214
      %v2734 = vunpack.c.l.b16 %v2215
      %v2735 = vunpack.c.l.b16 %v2216
      %v2736 = vunpack.c.l.b16 %v2217
      %v2737 = vunpack.c.l.b16 %v2218
      %v2738 = vunpack.c.l.b16 %v2219
      %v2739 = vunpack.c.l.b16 %v2220
      %v2740 = vunpack.c.l.b16 %v2221
      %v2741 = vunpack.c.l.b16 %v2222
      %v2742 = vunpack.c.l.b16 %v2223
      %v2743 = vunpack.c.l.b16 %v2224
      %v2744 = vunpack.c.l.b16 %v2225
      %v2745 = vunpack.c.l.b16 %v2226
      %v2746 = vunpack.c.l.b16 %v2227
      %v2747 = vunpack.c.l.b16 %v2228
      %v2748 = vunpack.c.l.b16 %v2229
      %v2749 = vunpack.c.l.b16 %v2230
      %v2750 = vunpack.c.l.b16 %v2231
      %v2751 = vunpack.c.l.b16 %v2232
      %v2752 = vunpack.c.l.b16 %v2233
      %v2753 = vunpack.c.l.b16 %v2234
      %v2754 = vunpack.c.l.b16 %v2235
      %v2755 = vunpack.c.l.b16 %v2236
      %v2756 = vunpack.c.l.b16 %v2237
      %v2757 = vunpack.c.l.b16 %v2238
      %v2758 = vunpack.c.l.b16 %v2239
      %v2759 = vunpack.c.l.b16 %v2240
      %v2760 = vunpack.c.l.b16 %v2241
      %v2761 = vunpack.c.l.b16 %v2242
      %v2762 = vunpack.c.l.b16 %v2243
      %v2763 = vunpack.c.l.b16 %v2244
      %v2764 = vunpack.c.l.b16 %v2245
      %v2765 = vunpack.c.l.b16 %v2246
      %v2766 = vunpack.c.l.b16 %v2247
      %v2767 = vunpack.c.l.b16 %v2248
      %v2768 = vunpack.c.l.b16 %v2249
      %v2769 = vunpack.c.l.b16 %v2250
      %v2770 = vunpack.c.l.b16 %v2251
      %v2771 = vunpack.c.l.b16 %v2252
      %v2772 = vunpack.c.l.b16 %v2253
      %v2773 = vunpack.c.l.b16 %v2254
      %v2774 = vunpack.c.l.b16 %v2255
      %v2775 = vunpack.c.l.b16 %v2256
      %v2776 = vunpack.c.l.b16 %v2257
      %v2777 = vunpack.c.l.b16 %v2258
      %v2778 = vunpack.c.l.b16 %v2259
      %v2779 = vunpack.c.l.b16 %v2260
      %v2780 = vunpack.c.l.b16 %v2261
      %v2781 = vunpack.c.l.b16 %v2262
      %v2782 = vunpack.c.l.b16 %v2263
      %v2783 = vunpack.c.l.b16 %v2264
      %v2784 = vunpack.c.l.b16 %v2265
      %v2785 = vunpack.c.l.b16 %v2266
      %v2786 = vunpack.c.l.b16 %v2267
      %v2787 = vunpack.c.l.b16 %v2268
      %v2788 = vunpack.c.l.b16 %v2269
      %v2789 = vunpack.c.l.b16 %v2270
      %v2790 = vunpack.c.l.b16 %v2271
      %v2791 = vunpack.c.l.b16 %v2272
      %v2792 = vunpack.c.l.b16 %v2273
      %v2793 = vunpack.c.l.b16 %v2274
      %v2794 = vunpack.c.l.b16 %v2275
      %v2795 = vunpack.c.l.b16 %v2276
      %v2796 = vunpack.c.l.b16 %v2277
      %v2797 = vunpack.c.l.b16 %v2278
      %v2798 = vunpack.c.l.b16 %v2279
      %v2799 = vunpack.c.l.b16 %v2280
      %v2800 = vunpack.c.l.b16 %v2281
      %v2801 = vunpack.c.l.b16 %v2282
      %v2802 = vunpack.c.l.b16 %v2283
      %v2803 = vunpack.c.l.b16 %v2284
      %v2804 = vunpack.c.l.b16 %v2285
      %v2805 = vunpack.c.l.b16 %v2286
      %v2806 = vunpack.c.l.b16 %v2287
      %v2807 = vunpack.c.l.b16 %v2288
      %v2808 = vunpack.c.l.b16 %v2289
      %v2809 = vunpack.c.l.b16 %v2290
      %v2810 = vunpack.c.l.b16 %v2291
      %v2811 = vunpack.c.l.b16 %v2292
      %v2812 = vunpack.c.l.b16 %v2293
      %v2813 = vunpack.c.l.b16 %v2294
      %v2814 = vunpack.c.l.b16 %v2295
      %v2815 = vunpack.c.l.b16 %v2296
      %v2816 = vunpack.c.l.b16 %v2297
      %v2817 = vunpack.c.l.b16 %v2298
      %v2818 = vunpack.c.l.b16 %v2299
      %v2819 = vunpack.c.l.b16 %v2300
      %v2820 = vunpack.c.l.b16 %v2301
      %v2821 = vunpack.c.l.b16 %v2302
      %v2822 = vunpack.c.l.b16 %v2303
      %v2823 = vunpack.c.l.b16 %v2304
      %v2824 = vunpack.c.l.b16 %v2305
      %v2825 = vunpack.c.l.b16 %v2306
      %v2826 = vunpack.c.l.b16 %v2307
      %v2827 = vunpack.c.l.b16 %v2308
      %v2828 = vunpack.c.l.b16 %v2309
      %v2829 = vunpack.c.l.b16 %v2310
      %v2830 = vunpack.c.l.b16 %v2311
      %v2831 = vunpack.c.l.b16 %v2312
      %v2832 = vunpack.c.l.b16 %v2313
      %v2833 = vunpack.c.l.b16 %v2314
      %v2834 = vunpack.c.l.b16 %v2315
      %v2835 = vunpack.c.l.b16 %v2316
      %v2836 = vunpack.c.l.b16 %v2317
      %v2837 = vunpack.c.l.b16 %v2318
      %v2838 = vunpack.c.l.b16 %v2319
      %v2839 = vunpack.c.l.b16 %v2320
      %v2840 = vunpack.c.l.b16 %v2321
      %v2841 = vunpack.c.l.b16 %v2322
      %v2842 = vunpack.c.l.b16 %v2323
      %v2843 = vunpack.c.l.b16 %v2324
      %v2844 = vunpack.c.l.b16 %v2325
      %v2845 = vunpack.c.l.b16 %v2326
      %v2846 = vunpack.c.l.b16 %v2327
      %v2847 = vunpack.c.l.b16 %v2328
      %v2848 = vunpack.c.l.b16 %v2329
      %v2849 = vunpack.c.l.b16 %v2330
      %v2850 = vunpack.c.l.b16 %v2331
      %v2851 = vunpack.c.l.b16 %v2332
      %v2852 = vunpack.c.l.b16 %v2333
      %v2853 = vunpack.c.l.b16 %v2334
      %v2854 = vunpack.c.l.b16 %v2335
      %v2855 = vunpack.c.l.b16 %v2336
      %v2856 = vunpack.c.l.b16 %v2337
      %v2857 = vunpack.c.l.b16 %v2338
      %v2858 = vunpack.c.l.b16 %v2339
      %v2859 = vunpack.c.l.b16 %v2340
      %v2860 = vunpack.c.l.b16 %v2341
      %v2861 = vpack.c.b16 %v2606, %v2605
      %v2862 = vpack.c.b16 %v2608, %v2607
      %v2863 = vpack.c.b16 %v2610, %v2609
      %v2864 = vpack.c.b16 %v2612, %v2611
      %v2865 = vpack.c.b16 %v2614, %v2613
      %v2866 = vpack.c.b16 %v2616, %v2615
      %v2867 = vpack.c.b16 %v2618, %v2617
      %v2868 = vpack.c.b16 %v2620, %v2619
      %v2869 = vpack.c.b16 %v2622, %v2621
      %v2870 = vpack.c.b16 %v2624, %v2623
      %v2871 = vpack.c.b16 %v2626, %v2625
      %v2872 = vpack.c.b16 %v2628, %v2627
      %v2873 = vpack.c.b16 %v2630, %v2629
      %v2874 = vpack.c.b16 %v2632, %v2631
      %v2875 = vpack.c.b16 %v2634, %v2633
      %v2876 = vpack.c.b16 %v2636, %v2635
      %v2877 = vpack.c.b16 %v2638, %v2637
      %v2878 = vpack.c.b16 %v2640, %v2639
      %v2879 = vpack.c.b16 %v2642, %v2641
      %v2880 = vpack.c.b16 %v2644, %v2643
      %v2881 = vpack.c.b16 %v2646, %v2645
      %v2882 = vpack.c.b16 %v2648, %v2647
      %v2883 = vpack.c.b16 %v2650, %v2649
      %v2884 = vpack.c.b16 %v2652, %v2651
      %v2885 = vpack.c.b16 %v2654, %v2653
      %v2886 = vpack.c.b16 %v2656, %v2655
      %v2887 = vpack.c.b16 %v2658, %v2657
      %v2888 = vpack.c.b16 %v2660, %v2659
      %v2889 = vpack.c.b16 %v2662, %v2661
      %v2890 = vpack.c.b16 %v2664, %v2663
      %v2891 = vpack.c.b16 %v2666, %v2665
      %v2892 = vpack.c.b16 %v2668, %v2667
      %v2893 = vpack.c.b16 %v2670, %v2669
      %v2894 = vpack.c.b16 %v2672, %v2671
      %v2895 = vpack.c.b16 %v2674, %v2673
      %v2896 = vpack.c.b16 %v2676, %v2675
      %v2897 = vpack.c.b16 %v2678, %v2677
      %v2898 = vpack.c.b16 %v2680, %v2679
      %v2899 = vpack.c.b16 %v2682, %v2681
      %v2900 = vpack.c.b16 %v2684, %v2683
      %v2901 = vpack.c.b16 %v2686, %v2685
      %v2902 = vpack.c.b16 %v2688, %v2687
      %v2903 = vpack.c.b16 %v2690, %v2689
      %v2904 = vpack.c.b16 %v2692, %v2691
      %v2905 = vpack.c.b16 %v2694, %v2693
      %v2906 = vpack.c.b16 %v2696, %v2695
      %v2907 = vpack.c.b16 %v2698, %v2697
      %v2908 = vpack.c.b16 %v2700, %v2699
      %v2909 = vpack.c.b16 %v2702, %v2701
      %v2910 = vpack.c.b16 %v2704, %v2703
      %v2911 = vpack.c.b16 %v2706, %v2705
      %v2912 = vpack.c.b16 %v2708, %v2707
      %v2913 = vpack.c.b16 %v2710, %v2709
      %v2914 = vpack.c.b16 %v2712, %v2711
      %v2915 = vpack.c.b16 %v2714, %v2713
      %v2916 = vpack.c.b16 %v2716, %v2715
      %v2917 = vpack.c.b16 %v2718, %v2717
      %v2918 = vpack.c.b16 %v2720, %v2719
      %v2919 = vpack.c.b16 %v2722, %v2721
      %v2920 = vpack.c.b16 %v2724, %v2723
      %v2921 = vpack.c.b16 %v2726, %v2725
      %v2922 = vpack.c.b16 %v2728, %v2727
      %v2923 = vpack.c.b16 %v2730, %v2729
      %v2924 = vpack.c.b16 %v2732, %v2731
      %v2925 = vpack.c.b16 %v2734, %v2733
      %v2926 = vpack.c.b16 %v2736, %v2735
      %v2927 = vpack.c.b16 %v2738, %v2737
      %v2928 = vpack.c.b16 %v2740, %v2739
      %v2929 = vpack.c.b16 %v2742, %v2741
      %v2930 = vpack.c.b16 %v2744, %v2743
      %v2931 = vpack.c.b16 %v2746, %v2745
      %v2932 = vpack.c.b16 %v2748, %v2747
      %v2933 = vpack.c.b16 %v2750, %v2749
      %v2934 = vpack.c.b16 %v2752, %v2751
      %v2935 = vpack.c.b16 %v2754, %v2753
      %v2936 = vpack.c.b16 %v2756, %v2755
      %v2937 = vpack.c.b16 %v2758, %v2757
      %v2938 = vpack.c.b16 %v2760, %v2759
      %v2939 = vpack.c.b16 %v2762, %v2761
      %v2940 = vpack.c.b16 %v2764, %v2763
      %v2941 = vpack.c.b16 %v2766, %v2765
      %v2942 = vpack.c.b16 %v2768, %v2767
      %v2943 = vpack.c.b16 %v2770, %v2769
      %v2944 = vpack.c.b16 %v2772, %v2771
      %v2945 = vpack.c.b16 %v2774, %v2773
      %v2946 = vpack.c.b16 %v2776, %v2775
      %v2947 = vpack.c.b16 %v2778, %v2777
      %v2948 = vpack.c.b16 %v2780, %v2779
      %v2949 = vpack.c.b16 %v2782, %v2781
      %v2950 = vpack.c.b16 %v2784, %v2783
      %v2951 = vpack.c.b16 %v2786, %v2785
      %v2952 = vpack.c.b16 %v2788, %v2787
      %v2953 = vpack.c.b16 %v2790, %v2789
      %v2954 = vpack.c.b16 %v2792, %v2791
      %v2955 = vpack.c.b16 %v2794, %v2793
      %v2956 = vpack.c.b16 %v2796, %v2795
      %v2957 = vpack.c.b16 %v2798, %v2797
      %v2958 = vpack.c.b16 %v2800, %v2799
      %v2959 = vpack.c.b16 %v2802, %v2801
      %v2960 = vpack.c.b16 %v2804, %v2803
      %v2961 = vpack.c.b16 %v2806, %v2805
      %v2962 = vpack.c.b16 %v2808, %v2807
      %v2963 = vpack.c.b16 %v2810, %v2809
      %v2964 = vpack.c.b16 %v2812, %v2811
      %v2965 = vpack.c.b16 %v2814, %v2813
      %v2966 = vpack.c.b16 %v2816, %v2815
      %v2967 = vpack.c.b16 %v2818, %v2817
      %v2968 = vpack.c.b16 %v2820, %v2819
      %v2969 = vpack.c.b16 %v2822, %v2821
      %v2970 = vpack.c.b16 %v2824, %v2823
      %v2971 = vpack.c.b16 %v2826, %v2825
      %v2972 = vpack.c.b16 %v2828, %v2827
      %v2973 = vpack.c.b16 %v2830, %v2829
      %v2974 = vpack.c.b16 %v2832, %v2831
      %v2975 = vpack.c.b16 %v2834, %v2833
      %v2976 = vpack.c.b16 %v2836, %v2835
      %v2977 = vpack.c.b16 %v2838, %v2837
      %v2978 = vpack.c.b16 %v2840, %v2839
      %v2979 = vpack.c.b16 %v2842, %v2841
      %v2980 = vpack.c.b16 %v2844, %v2843
      %v2981 = vpack.c.b16 %v2846, %v2845
      %v2982 = vpack.c.b16 %v2848, %v2847
      %v2983 = vpack.c.b16 %v2850, %v2849
      %v2984 = vpack.c.b16 %v2852, %v2851
      %v2985 = vpack.c.b16 %v2854, %v2853
      %v2986 = vpack.c.b16 %v2856, %v2855
      %v2987 = vpack.c.b16 %v2858, %v2857
      %v2988 = vpack.c.b16 %v2860, %v2859
      %3117 = vmatprep.subr.bf16.mxu0 0
      %3118 = vmatpush1.bf16.msra.mxu0 %v2861
      %3119 = vmatprep.subr.bf16.mxu0 0
      %3120 = vmatpush1.bf16.msra.mxu0 %v2862
      %3121 = vmatprep.subr.bf16.mxu0 0
      %3122 = vmatpush1.bf16.msra.mxu0 %v2863
      %3123 = vmatprep.subr.bf16.mxu0 0
      %3124 = vmatpush1.bf16.msra.mxu0 %v2864
      %3125 = vmatprep.subr.bf16.mxu0 0
      %3126 = vmatpush1.bf16.msra.mxu0 %v2865
      %3127 = vmatprep.subr.bf16.mxu0 0
      %3128 = vmatpush1.bf16.msra.mxu0 %v2866
      %3129 = vmatprep.subr.bf16.mxu0 0
      %3130 = vmatpush1.bf16.msra.mxu0 %v2867
      %3131 = vmatprep.subr.bf16.mxu0 0
      %3132 = vmatpush1.bf16.msra.mxu0 %v2868
      %3133 = vmatprep.subr.bf16.mxu0 0
      %3134 = vmatpush1.bf16.msra.mxu0 %v2869
      %3135 = vmatprep.subr.bf16.mxu0 0
      %3136 = vmatpush1.bf16.msra.mxu0 %v2870
      %3137 = vmatprep.subr.bf16.mxu0 0
      %3138 = vmatpush1.bf16.msra.mxu0 %v2871
      %3139 = vmatprep.subr.bf16.mxu0 0
      %3140 = vmatpush1.bf16.msra.mxu0 %v2872
      %3141 = vmatprep.subr.bf16.mxu0 0
      %3142 = vmatpush1.bf16.msra.mxu0 %v2873
      %3143 = vmatprep.subr.bf16.mxu0 0
      %3144 = vmatpush1.bf16.msra.mxu0 %v2874
      %3145 = vmatprep.subr.bf16.mxu0 0
      %3146 = vmatpush1.bf16.msra.mxu0 %v2875
      %3147 = vmatprep.subr.bf16.mxu0 0
      %3148 = vmatpush1.bf16.msra.mxu0 %v2876
      %3149 = vmatprep.mubr.bf16.mxu0 %v2071
      %3150 = vmatmul.mubr.bf16.gmra.mrb[0].mxu0 %v2070
      %v3151 = vpop.f32.mrb[0].mxu0
      %v3152 = vadd.f32 %v2347, %v3151
      %v3153 = vpop.f32.mrb[0].mxu0
      %v3154 = vpop.f32.mrb[0].mxu0
      %v3155 = vpop.f32.mrb[0].mxu0
      %3156 = vdwg.mxu0
      %3157 = vmatprep.subr.bf16.mxu0 0
      %3158 = vmatpush1.bf16.msra.mxu0 %v2877
      %3159 = vmatprep.subr.bf16.mxu0 0
      %3160 = vmatpush1.bf16.msra.mxu0 %v2878
      %3161 = vmatprep.subr.bf16.mxu0 0
      %3162 = vmatpush1.bf16.msra.mxu0 %v2879
      %3163 = vmatprep.subr.bf16.mxu0 0
      %3164 = vmatpush1.bf16.msra.mxu0 %v2880
      %3165 = vmatprep.subr.bf16.mxu0 0
      %3166 = vmatpush1.bf16.msra.mxu0 %v2881
      %3167 = vmatprep.subr.bf16.mxu0 0
      %3168 = vmatpush1.bf16.msra.mxu0 %v2882
      %3169 = vmatprep.subr.bf16.mxu0 0
      %3170 = vmatpush1.bf16.msra.mxu0 %v2883
      %3171 = vmatprep.subr.bf16.mxu0 0
      %3172 = vmatpush1.bf16.msra.mxu0 %v2884
      %3173 = vmatprep.subr.bf16.mxu0 0
      %3174 = vmatpush1.bf16.msra.mxu0 %v2885
      %3175 = vmatprep.subr.bf16.mxu0 0
      %3176 = vmatpush1.bf16.msra.mxu0 %v2886
      %3177 = vmatprep.subr.bf16.mxu0 0
      %3178 = vmatpush1.bf16.msra.mxu0 %v2887
      %3179 = vmatprep.subr.bf16.mxu0 0
      %3180 = vmatpush1.bf16.msra.mxu0 %v2888
      %3181 = vmatprep.subr.bf16.mxu0 0
      %3182 = vmatpush1.bf16.msra.mxu0 %v2889
      %3183 = vmatprep.subr.bf16.mxu0 0
      %3184 = vmatpush1.bf16.msra.mxu0 %v2890
      %3185 = vmatprep.subr.bf16.mxu0 0
      %3186 = vmatpush1.bf16.msra.mxu0 %v2891
      %3187 = vmatprep.subr.bf16.mxu0 0
      %3188 = vmatpush1.bf16.msra.mxu0 %v2892
      %3189 = vmatprep.mubr.bf16.mxu0 %v2073
      %3190 = vmatmul.mubr.bf16.gmra.mrb[0].mxu0 %v2072
      %v3191 = vpop.f32.mrb[0].mxu0
      %v3192 = vadd.f32 %v3152, %v3191
      %v3193 = vpop.f32.mrb[0].mxu0
      %v3194 = vpop.f32.mrb[0].mxu0
      %v3195 = vpop.f32.mrb[0].mxu0
      %3196 = vdwg.mxu0
      %3197 = vmatprep.subr.bf16.mxu0 0
      %3198 = vmatpush1.bf16.msra.mxu0 %v2893
      %3199 = vmatprep.subr.bf16.mxu0 0
      %3200 = vmatpush1.bf16.msra.mxu0 %v2894
      %3201 = vmatprep.subr.bf16.mxu0 0
      %3202 = vmatpush1.bf16.msra.mxu0 %v2895
      %3203 = vmatprep.subr.bf16.mxu0 0
      %3204 = vmatpush1.bf16.msra.mxu0 %v2896
      %3205 = vmatprep.subr.bf16.mxu0 0
      %3206 = vmatpush1.bf16.msra.mxu0 %v2897
      %3207 = vmatprep.subr.bf16.mxu0 0
      %3208 = vmatpush1.bf16.msra.mxu0 %v2898
      %3209 = vmatprep.subr.bf16.mxu0 0
      %3210 = vmatpush1.bf16.msra.mxu0 %v2899
      %3211 = vmatprep.subr.bf16.mxu0 0
      %3212 = vmatpush1.bf16.msra.mxu0 %v2900
      %3213 = vmatprep.subr.bf16.mxu0 0
      %3214 = vmatpush1.bf16.msra.mxu0 %v2901
      %3215 = vmatprep.subr.bf16.mxu0 0
      %3216 = vmatpush1.bf16.msra.mxu0 %v2902
      %3217 = vmatprep.subr.bf16.mxu0 0
      %3218 = vmatpush1.bf16.msra.mxu0 %v2903
      %3219 = vmatprep.subr.bf16.mxu0 0
      %3220 = vmatpush1.bf16.msra.mxu0 %v2904
      %3221 = vmatprep.subr.bf16.mxu0 0
      %3222 = vmatpush1.bf16.msra.mxu0 %v2905
      %3223 = vmatprep.subr.bf16.mxu0 0
      %3224 = vmatpush1.bf16.msra.mxu0 %v2906
      %3225 = vmatprep.subr.bf16.mxu0 0
      %3226 = vmatpush1.bf16.msra.mxu0 %v2907
      %3227 = vmatprep.subr.bf16.mxu0 0
      %3228 = vmatpush1.bf16.msra.mxu0 %v2908
      %3229 = vmatprep.mubr.bf16.mxu0 %v2075
      %3230 = vmatmul.mubr.bf16.gmra.mrb[0].mxu0 %v2074
      %v3231 = vpop.f32.mrb[0].mxu0
      %v3232 = vadd.f32 %v3192, %v3231
      %v3233 = vpop.f32.mrb[0].mxu0
      %v3234 = vpop.f32.mrb[0].mxu0
      %v3235 = vpop.f32.mrb[0].mxu0
      %3236 = vdwg.mxu0
      %3237 = vmatprep.subr.bf16.mxu0 0
      %3238 = vmatpush1.bf16.msra.mxu0 %v2909
      %3239 = vmatprep.subr.bf16.mxu0 0
      %3240 = vmatpush1.bf16.msra.mxu0 %v2910
      %3241 = vmatprep.subr.bf16.mxu0 0
      %3242 = vmatpush1.bf16.msra.mxu0 %v2911
      %3243 = vmatprep.subr.bf16.mxu0 0
      %3244 = vmatpush1.bf16.msra.mxu0 %v2912
      %3245 = vmatprep.subr.bf16.mxu0 0
      %3246 = vmatpush1.bf16.msra.mxu0 %v2913
      %3247 = vmatprep.subr.bf16.mxu0 0
      %3248 = vmatpush1.bf16.msra.mxu0 %v2914
      %3249 = vmatprep.subr.bf16.mxu0 0
      %3250 = vmatpush1.bf16.msra.mxu0 %v2915
      %3251 = vmatprep.subr.bf16.mxu0 0
      %3252 = vmatpush1.bf16.msra.mxu0 %v2916
      %3253 = vmatprep.subr.bf16.mxu0 0
      %3254 = vmatpush1.bf16.msra.mxu0 %v2917
      %3255 = vmatprep.subr.bf16.mxu0 0
      %3256 = vmatpush1.bf16.msra.mxu0 %v2918
      %3257 = vmatprep.subr.bf16.mxu0 0
      %3258 = vmatpush1.bf16.msra.mxu0 %v2919
      %3259 = vmatprep.subr.bf16.mxu0 0
      %3260 = vmatpush1.bf16.msra.mxu0 %v2920
      %3261 = vmatprep.subr.bf16.mxu0 0
      %3262 = vmatpush1.bf16.msra.mxu0 %v2921
      %3263 = vmatprep.subr.bf16.mxu0 0
      %3264 = vmatpush1.bf16.msra.mxu0 %v2922
      %3265 = vmatprep.subr.bf16.mxu0 0
      %3266 = vmatpush1.bf16.msra.mxu0 %v2923
      %3267 = vmatprep.subr.bf16.mxu0 0
      %3268 = vmatpush1.bf16.msra.mxu0 %v2924
      %3269 = vmatprep.mubr.bf16.mxu0 %v2077
      %3270 = vmatmul.mubr.bf16.gmra.mrb[0].mxu0 %v2076
      %v3271 = vpop.f32.mrb[0].mxu0
      %v3272 = vadd.f32 %v3232, %v3271
      %v3273 = vpop.f32.mrb[0].mxu0
      %v3274 = vpop.f32.mrb[0].mxu0
      %v3275 = vpop.f32.mrb[0].mxu0
      %3276 = vdwg.mxu0
      %3277 = vmatprep.subr.bf16.mxu0 0
      %3278 = vmatpush1.bf16.msra.mxu0 %v2925
      %3279 = vmatprep.subr.bf16.mxu0 0
      %3280 = vmatpush1.bf16.msra.mxu0 %v2926
      %3281 = vmatprep.subr.bf16.mxu0 0
      %3282 = vmatpush1.bf16.msra.mxu0 %v2927
      %3283 = vmatprep.subr.bf16.mxu0 0
      %3284 = vmatpush1.bf16.msra.mxu0 %v2928
      %3285 = vmatprep.subr.bf16.mxu0 0
      %3286 = vmatpush1.bf16.msra.mxu0 %v2929
      %3287 = vmatprep.subr.bf16.mxu0 0
      %3288 = vmatpush1.bf16.msra.mxu0 %v2930
      %3289 = vmatprep.subr.bf16.mxu0 0
      %3290 = vmatpush1.bf16.msra.mxu0 %v2931
      %3291 = vmatprep.subr.bf16.mxu0 0
      %3292 = vmatpush1.bf16.msra.mxu0 %v2932
      %3293 = vmatprep.subr.bf16.mxu0 0
      %3294 = vmatpush1.bf16.msra.mxu0 %v2933
      %3295 = vmatprep.subr.bf16.mxu0 0
      %3296 = vmatpush1.bf16.msra.mxu0 %v2934
      %3297 = vmatprep.subr.bf16.mxu0 0
      %3298 = vmatpush1.bf16.msra.mxu0 %v2935
      %3299 = vmatprep.subr.bf16.mxu0 0
      %3300 = vmatpush1.bf16.msra.mxu0 %v2936
      %3301 = vmatprep.subr.bf16.mxu0 0
      %3302 = vmatpush1.bf16.msra.mxu0 %v2937
      %3303 = vmatprep.subr.bf16.mxu0 0
      %3304 = vmatpush1.bf16.msra.mxu0 %v2938
      %3305 = vmatprep.subr.bf16.mxu0 0
      %3306 = vmatpush1.bf16.msra.mxu0 %v2939
      %3307 = vmatprep.subr.bf16.mxu0 0
      %3308 = vmatpush1.bf16.msra.mxu0 %v2940
      %3309 = vmatprep.mubr.bf16.mxu0 %v2079
      %3310 = vmatmul.mubr.bf16.gmra.mrb[0].mxu0 %v2078
      %v3311 = vpop.f32.mrb[0].mxu0
      %v3312 = vadd.f32 %v3272, %v3311
      %v3313 = vpop.f32.mrb[0].mxu0
      %v3314 = vpop.f32.mrb[0].mxu0
      %v3315 = vpop.f32.mrb[0].mxu0
      %3316 = vdwg.mxu0
      %3317 = vmatprep.subr.bf16.mxu0 0
      %3318 = vmatpush1.bf16.msra.mxu0 %v2941
      %3319 = vmatprep.subr.bf16.mxu0 0
      %3320 = vmatpush1.bf16.msra.mxu0 %v2942
      %3321 = vmatprep.subr.bf16.mxu0 0
      %3322 = vmatpush1.bf16.msra.mxu0 %v2943
      %3323 = vmatprep.subr.bf16.mxu0 0
      %3324 = vmatpush1.bf16.msra.mxu0 %v2944
      %3325 = vmatprep.subr.bf16.mxu0 0
      %3326 = vmatpush1.bf16.msra.mxu0 %v2945
      %3327 = vmatprep.subr.bf16.mxu0 0
      %3328 = vmatpush1.bf16.msra.mxu0 %v2946
      %3329 = vmatprep.subr.bf16.mxu0 0
      %3330 = vmatpush1.bf16.msra.mxu0 %v2947
      %3331 = vmatprep.subr.bf16.mxu0 0
      %3332 = vmatpush1.bf16.msra.mxu0 %v2948
      %3333 = vmatprep.subr.bf16.mxu0 0
      %3334 = vmatpush1.bf16.msra.mxu0 %v2949
      %3335 = vmatprep.subr.bf16.mxu0 0
      %3336 = vmatpush1.bf16.msra.mxu0 %v2950
      %3337 = vmatprep.subr.bf16.mxu0 0
      %3338 = vmatpush1.bf16.msra.mxu0 %v2951
      %3339 = vmatprep.subr.bf16.mxu0 0
      %3340 = vmatpush1.bf16.msra.mxu0 %v2952
      %3341 = vmatprep.subr.bf16.mxu0 0
      %3342 = vmatpush1.bf16.msra.mxu0 %v2953
      %3343 = vmatprep.subr.bf16.mxu0 0
      %3344 = vmatpush1.bf16.msra.mxu0 %v2954
      %3345 = vmatprep.subr.bf16.mxu0 0
      %3346 = vmatpush1.bf16.msra.mxu0 %v2955
      %3347 = vmatprep.subr.bf16.mxu0 0
      %3348 = vmatpush1.bf16.msra.mxu0 %v2956
      %3349 = vmatprep.mubr.bf16.mxu0 %v2081
      %3350 = vmatmul.mubr.bf16.gmra.mrb[0].mxu0 %v2080
      %v3351 = vpop.f32.mrb[0].mxu0
      %v3352 = vadd.f32 %v3312, %v3351
      %v3353 = vpop.f32.mrb[0].mxu0
      %v3354 = vpop.f32.mrb[0].mxu0
      %v3355 = vpop.f32.mrb[0].mxu0
      %3356 = vdwg.mxu0
      %3357 = vmatprep.subr.bf16.mxu0 0
      %3358 = vmatpush1.bf16.msra.mxu0 %v2957
      %3359 = vmatprep.subr.bf16.mxu0 0
      %3360 = vmatpush1.bf16.msra.mxu0 %v2958
      %3361 = vmatprep.subr.bf16.mxu0 0
      %3362 = vmatpush1.bf16.msra.mxu0 %v2959
      %3363 = vmatprep.subr.bf16.mxu0 0
      %3364 = vmatpush1.bf16.msra.mxu0 %v2960
      %3365 = vmatprep.subr.bf16.mxu0 0
      %3366 = vmatpush1.bf16.msra.mxu0 %v2961
      %3367 = vmatprep.subr.bf16.mxu0 0
      %3368 = vmatpush1.bf16.msra.mxu0 %v2962
      %3369 = vmatprep.subr.bf16.mxu0 0
      %3370 = vmatpush1.bf16.msra.mxu0 %v2963
      %3371 = vmatprep.subr.bf16.mxu0 0
      %3372 = vmatpush1.bf16.msra.mxu0 %v2964
      %3373 = vmatprep.subr.bf16.mxu0 0
      %3374 = vmatpush1.bf16.msra.mxu0 %v2965
      %3375 = vmatprep.subr.bf16.mxu0 0
      %3376 = vmatpush1.bf16.msra.mxu0 %v2966
      %3377 = vmatprep.subr.bf16.mxu0 0
      %3378 = vmatpush1.bf16.msra.mxu0 %v2967
      %3379 = vmatprep.subr.bf16.mxu0 0
      %3380 = vmatpush1.bf16.msra.mxu0 %v2968
      %3381 = vmatprep.subr.bf16.mxu0 0
      %3382 = vmatpush1.bf16.msra.mxu0 %v2969
      %3383 = vmatprep.subr.bf16.mxu0 0
      %3384 = vmatpush1.bf16.msra.mxu0 %v2970
      %3385 = vmatprep.subr.bf16.mxu0 0
      %3386 = vmatpush1.bf16.msra.mxu0 %v2971
      %3387 = vmatprep.subr.bf16.mxu0 0
      %3388 = vmatpush1.bf16.msra.mxu0 %v2972
      %3389 = vmatprep.mubr.bf16.mxu0 %v2083
      %3390 = vmatmul.mubr.bf16.gmra.mrb[0].mxu0 %v2082
      %v3391 = vpop.f32.mrb[0].mxu0
      %v3392 = vadd.f32 %v3352, %v3391
      %v3393 = vpop.f32.mrb[0].mxu0
      %v3394 = vpop.f32.mrb[0].mxu0
      %v3395 = vpop.f32.mrb[0].mxu0
      %3396 = vdwg.mxu0
      %3397 = vmatprep.subr.bf16.mxu0 0
      %3398 = vmatpush1.bf16.msra.mxu0 %v2973
      %3399 = vmatprep.subr.bf16.mxu0 0
      %3400 = vmatpush1.bf16.msra.mxu0 %v2974
      %3401 = vmatprep.subr.bf16.mxu0 0
      %3402 = vmatpush1.bf16.msra.mxu0 %v2975
      %3403 = vmatprep.subr.bf16.mxu0 0
      %3404 = vmatpush1.bf16.msra.mxu0 %v2976
      %3405 = vmatprep.subr.bf16.mxu0 0
      %3406 = vmatpush1.bf16.msra.mxu0 %v2977
      %3407 = vmatprep.subr.bf16.mxu0 0
      %3408 = vmatpush1.bf16.msra.mxu0 %v2978
      %3409 = vmatprep.subr.bf16.mxu0 0
      %3410 = vmatpush1.bf16.msra.mxu0 %v2979
      %3411 = vmatprep.subr.bf16.mxu0 0
      %3412 = vmatpush1.bf16.msra.mxu0 %v2980
      %3413 = vmatprep.subr.bf16.mxu0 0
      %3414 = vmatpush1.bf16.msra.mxu0 %v2981
      %3415 = vmatprep.subr.bf16.mxu0 0
      %3416 = vmatpush1.bf16.msra.mxu0 %v2982
      %3417 = vmatprep.subr.bf16.mxu0 0
      %3418 = vmatpush1.bf16.msra.mxu0 %v2983
      %3419 = vmatprep.subr.bf16.mxu0 0
      %3420 = vmatpush1.bf16.msra.mxu0 %v2984
      %3421 = vmatprep.subr.bf16.mxu0 0
      %3422 = vmatpush1.bf16.msra.mxu0 %v2985
      %3423 = vmatprep.subr.bf16.mxu0 0
      %3424 = vmatpush1.bf16.msra.mxu0 %v2986
      %3425 = vmatprep.subr.bf16.mxu0 0
      %3426 = vmatpush1.bf16.msra.mxu0 %v2987
      %3427 = vmatprep.subr.bf16.mxu0 0
      %3428 = vmatpush1.bf16.msra.mxu0 %v2988
      %3429 = vmatprep.mubr.bf16.mxu0 %v2085
      %3430 = vmatmul.mubr.bf16.gmra.mrb[0].mxu0 %v2084
      %v3431 = vpop.f32.mrb[0].mxu0
      %v3432 = vadd.f32 %v3392, %v3431
      %v3433 = vpop.f32.mrb[0].mxu0
      %v3434 = vpop.f32.mrb[0].mxu0
      %v3435 = vpop.f32.mrb[0].mxu0
      %3436 = vdwg.mxu0
      %v3437 = vadd.f32 %v872, %v3432
      %v3438 = vld [vmem:[%s11] sm:$0x1]
      %v3439 = vld [vmem:[%s12] sm:$0x1]
      %3440 = vadd.xlane.f32.xlu0 %v3437
      %v3441 = vpop.xlane.xlu0 %3440
      %v3442 = vmul.f32 %v3441, %v849
      %v3443 = vsub.f32 %v3437, %v3442
      %v3444 = vmul.f32 %v3443, %v3443
      %3445 = vadd.xlane.f32.xlu0 %v3444
      %v3446 = vpop.xlane.xlu0 %3445
      %v3447 = vmul.f32 %v3446, %v849
      %v3448 = vadd.f32 %v3447, 1e-05
      %v3449 = vrsqrt.pop %v3448
      %v3450 = vmul.f32 %v3443, %v3449
      %v3452 = vlaneseq
      %v3453 = vshrl.u32 %v3452, 7
      %v3454 = vsub.s32 0, %v3453
      %v3455 = vrot.slane %v3438, %v3454
      %v3457 = vmul.f32 %v3450, %v3455
      %v3459 = vlaneseq
      %v3460 = vshrl.u32 %v3459, 7
      %v3461 = vsub.s32 0, %v3460
      %v3462 = vrot.slane %v3439, %v3461
      %v3464 = vadd.f32 %v3457, %v3462
      %v3465 = vpack.c.bf16 %v3464, %v3464
      %3466 = vmatprep.subr.bf16.mxu0 0
      %3467 = vmatpush1.bf16.msra.mxu0 %v788
      %3468 = vmatprep.subr.bf16.mxu0 0
      %3469 = vmatpush1.bf16.msra.mxu0 %v789
      %3470 = vmatprep.subr.bf16.mxu0 0
      %3471 = vmatpush1.bf16.msra.mxu0 %v790
      %3472 = vmatprep.subr.bf16.mxu0 0
      %3473 = vmatpush1.bf16.msra.mxu0 %v791
      %3474 = vmatprep.subr.bf16.mxu0 0
      %3475 = vmatpush1.bf16.msra.mxu0 %v792
      %3476 = vmatprep.subr.bf16.mxu0 0
      %3477 = vmatpush1.bf16.msra.mxu0 %v793
      %3478 = vmatprep.subr.bf16.mxu0 0
      %3479 = vmatpush1.bf16.msra.mxu0 %v794
      %3480 = vmatprep.subr.bf16.mxu0 0
      %3481 = vmatpush1.bf16.msra.mxu0 %v795
      %3482 = vmatprep.subr.bf16.mxu0 0
      %3483 = vmatpush1.bf16.msra.mxu0 0
      %3484 = vmatprep.subr.bf16.mxu0 0
      %3485 = vmatpush1.bf16.msra.mxu0 0
      %3486 = vmatprep.subr.bf16.mxu0 0
      %3487 = vmatpush1.bf16.msra.mxu0 0
      %3488 = vmatprep.subr.bf16.mxu0 0
      %3489 = vmatpush1.bf16.msra.mxu0 0
      %3490 = vmatprep.subr.bf16.mxu0 0
      %3491 = vmatpush1.bf16.msra.mxu0 0
      %3492 = vmatprep.subr.bf16.mxu0 0
      %3493 = vmatpush1.bf16.msra.mxu0 0
      %3494 = vmatprep.subr.bf16.mxu0 0
      %3495 = vmatpush1.bf16.msra.mxu0 0
      %3496 = vmatprep.subr.bf16.mxu0 0
      %3497 = vmatpush1.bf16.msra.mxu0 0
      %3498 = vmatprep.mubr.bf16.mxu0 0
      %3499 = vmatmul.mubr.bf16.gmra.mrb[0].mxu0 %v3465
      %v3500 = vpop.f32.mrb[0].mxu0
      %v3501 = vadd.f32 %v754, %v3500
      %v3502 = vpop.f32.mrb[0].mxu0
      %v3503 = vpop.f32.mrb[0].mxu0
      %v3504 = vpop.f32.mrb[0].mxu0
      %3505 = vdwg.mxu0
      %v3506 = vadd.f32 %v3464, %v3501
      %3507 = vadd.xlane.f32.xlu0 %v3506
      %v3508 = vpop.xlane.xlu0 %3507
      %v3509 = vmul.f32 %v3508, %v849
      %v3510 = vsub.f32 %v3506, %v3509
      %v3511 = vmul.f32 %v3510, %v3510
      %3512 = vadd.xlane.f32.xlu0 %v3511
      %v3513 = vpop.xlane.xlu0 %3512
      %v3514 = vmul.f32 %v3513, %v849
      %v3515 = vadd.f32 %v3514, 1e-05
      %v3516 = vrsqrt.pop %v3515
      %v3517 = vmul.f32 %v3510, %v3516
      %v3518 = vmul.f32 %v3517, %v863
      %v3519 = vadd.f32 %v3518, %v870
      %v3520 = vpack.c.bf16 %v3519, %v3519
      %3521 = vmatprep.subr.bf16.mxu0 %v1471
      %3522 = vmatpush1.bf16.msra.mxu0 %v1470
      %3523 = vmatprep.subr.bf16.mxu0 %v1487
      %3524 = vmatpush1.bf16.msra.mxu0 %v1486
      %3525 = vmatprep.subr.bf16.mxu0 %v1503
      %3526 = vmatpush1.bf16.msra.mxu0 %v1502
      %3527 = vmatprep.subr.bf16.mxu0 %v1519
      %3528 = vmatpush1.bf16.msra.mxu0 %v1518
      %3529 = vmatprep.subr.bf16.mxu0 %v1535
      %3530 = vmatpush1.bf16.msra.mxu0 %v1534
      %3531 = vmatprep.subr.bf16.mxu0 %v1551
      %3532 = vmatpush1.bf16.msra.mxu0 %v1550
      %3533 = vmatprep.subr.bf16.mxu0 %v1567
      %3534 = vmatpush1.bf16.msra.mxu0 %v1566
      %3535 = vmatprep.subr.bf16.mxu0 %v1583
      %3536 = vmatpush1.bf16.msra.mxu0 %v1582
      %3537 = vmatprep.subr.bf16.mxu0 0
      %3538 = vmatpush1.bf16.msra.mxu0 0
      %3539 = vmatprep.subr.bf16.mxu0 0
      %3540 = vmatpush1.bf16.msra.mxu0 0
      %3541 = vmatprep.subr.bf16.mxu0 0
      %3542 = vmatpush1.bf16.msra.mxu0 0
      %3543 = vmatprep.subr.bf16.mxu0 0
      %3544 = vmatpush1.bf16.msra.mxu0 0
      %3545 = vmatprep.subr.bf16.mxu0 0
      %3546 = vmatpush1.bf16.msra.mxu0 0
      %3547 = vmatprep.subr.bf16.mxu0 0
      %3548 = vmatpush1.bf16.msra.mxu0 0
      %3549 = vmatprep.subr.bf16.mxu0 0
      %3550 = vmatpush1.bf16.msra.mxu0 0
      %3551 = vmatprep.subr.bf16.mxu0 0
      %3552 = vmatpush1.bf16.msra.mxu0 0
      %3553 = vmatprep.mubr.bf16.mxu0 0
      %3554 = vmatmul.mubr.bf16.gmra.mrb[0].mxu0 %v3520
      %v3555 = vpop.f32.mrb[0].mxu0
      %v3556 = vadd.f32 %v1009, %v3555
      %v3557 = vpop.f32.mrb[0].mxu0
      %v3558 = vadd.f32 %v1013, %v3557
      %v3559 = vpop.f32.mrb[0].mxu0
      %v3560 = vpop.f32.mrb[0].mxu0
      %3561 = vdwg.mxu0
      %3562 = vmatprep.subr.bf16.mxu0 %v1473
      %3563 = vmatpush1.bf16.msra.mxu0 %v1472
      %3564 = vmatprep.subr.bf16.mxu0 %v1489
      %3565 = vmatpush1.bf16.msra.mxu0 %v1488
      %3566 = vmatprep.subr.bf16.mxu0 %v1505
      %3567 = vmatpush1.bf16.msra.mxu0 %v1504
      %3568 = vmatprep.subr.bf16.mxu0 %v1521
      %3569 = vmatpush1.bf16.msra.mxu0 %v1520
      %3570 = vmatprep.subr.bf16.mxu0 %v1537
      %3571 = vmatpush1.bf16.msra.mxu0 %v1536
      %3572 = vmatprep.subr.bf16.mxu0 %v1553
      %3573 = vmatpush1.bf16.msra.mxu0 %v1552
      %3574 = vmatprep.subr.bf16.mxu0 %v1569
      %3575 = vmatpush1.bf16.msra.mxu0 %v1568
      %3576 = vmatprep.subr.bf16.mxu0 %v1585
      %3577 = vmatpush1.bf16.msra.mxu0 %v1584
      %3578 = vmatprep.subr.bf16.mxu0 0
      %3579 = vmatpush1.bf16.msra.mxu0 0
      %3580 = vmatprep.subr.bf16.mxu0 0
      %3581 = vmatpush1.bf16.msra.mxu0 0
      %3582 = vmatprep.subr.bf16.mxu0 0
      %3583 = vmatpush1.bf16.msra.mxu0 0
      %3584 = vmatprep.subr.bf16.mxu0 0
      %3585 = vmatpush1.bf16.msra.mxu0 0
      %3586 = vmatprep.subr.bf16.mxu0 0
      %3587 = vmatpush1.bf16.msra.mxu0 0
      %3588 = vmatprep.subr.bf16.mxu0 0
      %3589 = vmatpush1.bf16.msra.mxu0 0
      %3590 = vmatprep.subr.bf16.mxu0 0
      %3591 = vmatpush1.bf16.msra.mxu0 0
      %3592 = vmatprep.subr.bf16.mxu0 0
      %3593 = vmatpush1.bf16.msra.mxu0 0
      %3594 = vmatprep.mubr.bf16.mxu0 0
      %3595 = vmatmul.mubr.bf16.gmra.mrb[0].mxu0 %v3520
      %v3596 = vpop.f32.mrb[0].mxu0
      %v3597 = vadd.f32 %v1017, %v3596
      %v3598 = vpop.f32.mrb[0].mxu0
      %v3599 = vadd.f32 %v1021, %v3598
      %v3600 = vpop.f32.mrb[0].mxu0
      %v3601 = vpop.f32.mrb[0].mxu0
      %3602 = vdwg.mxu0
      %3603 = vmatprep.subr.bf16.mxu0 %v1475
      %3604 = vmatpush1.bf16.msra.mxu0 %v1474
      %3605 = vmatprep.subr.bf16.mxu0 %v1491
      %3606 = vmatpush1.bf16.msra.mxu0 %v1490
      %3607 = vmatprep.subr.bf16.mxu0 %v1507
      %3608 = vmatpush1.bf16.msra.mxu0 %v1506
      %3609 = vmatprep.subr.bf16.mxu0 %v1523
      %3610 = vmatpush1.bf16.msra.mxu0 %v1522
      %3611 = vmatprep.subr.bf16.mxu0 %v1539
      %3612 = vmatpush1.bf16.msra.mxu0 %v1538
      %3613 = vmatprep.subr.bf16.mxu0 %v1555
      %3614 = vmatpush1.bf16.msra.mxu0 %v1554
      %3615 = vmatprep.subr.bf16.mxu0 %v1571
      %3616 = vmatpush1.bf16.msra.mxu0 %v1570
      %3617 = vmatprep.subr.bf16.mxu0 %v1587
      %3618 = vmatpush1.bf16.msra.mxu0 %v1586
      %3619 = vmatprep.subr.bf16.mxu0 0
      %3620 = vmatpush1.bf16.msra.mxu0 0
      %3621 = vmatprep.subr.bf16.mxu0 0
      %3622 = vmatpush1.bf16.msra.mxu0 0
      %3623 = vmatprep.subr.bf16.mxu0 0
      %3624 = vmatpush1.bf16.msra.mxu0 0
      %3625 = vmatprep.subr.bf16.mxu0 0
      %3626 = vmatpush1.bf16.msra.mxu0 0
      %3627 = vmatprep.subr.bf16.mxu0 0
      %3628 = vmatpush1.bf16.msra.mxu0 0
      %3629 = vmatprep.subr.bf16.mxu0 0
      %3630 = vmatpush1.bf16.msra.mxu0 0
      %3631 = vmatprep.subr.bf16.mxu0 0
      %3632 = vmatpush1.bf16.msra.mxu0 0
      %3633 = vmatprep.subr.bf16.mxu0 0
      %3634 = vmatpush1.bf16.msra.mxu0 0
      %3635 = vmatprep.mubr.bf16.mxu0 0
      %3636 = vmatmul.mubr.bf16.gmra.mrb[0].mxu0 %v3520
      %v3637 = vpop.f32.mrb[0].mxu0
      %v3638 = vadd.f32 %v1025, %v3637
      %v3639 = vpop.f32.mrb[0].mxu0
      %v3640 = vadd.f32 %v1029, %v3639
      %v3641 = vpop.f32.mrb[0].mxu0
      %v3642 = vpop.f32.mrb[0].mxu0
      %3643 = vdwg.mxu0
      %3644 = vmatprep.subr.bf16.mxu0 %v1477
      %3645 = vmatpush1.bf16.msra.mxu0 %v1476
      %3646 = vmatprep.subr.bf16.mxu0 %v1493
      %3647 = vmatpush1.bf16.msra.mxu0 %v1492
      %3648 = vmatprep.subr.bf16.mxu0 %v1509
      %3649 = vmatpush1.bf16.msra.mxu0 %v1508
      %3650 = vmatprep.subr.bf16.mxu0 %v1525
      %3651 = vmatpush1.bf16.msra.mxu0 %v1524
      %3652 = vmatprep.subr.bf16.mxu0 %v1541
      %3653 = vmatpush1.bf16.msra.mxu0 %v1540
      %3654 = vmatprep.subr.bf16.mxu0 %v1557
      %3655 = vmatpush1.bf16.msra.mxu0 %v1556
      %3656 = vmatprep.subr.bf16.mxu0 %v1573
      %3657 = vmatpush1.bf16.msra.mxu0 %v1572
      %3658 = vmatprep.subr.bf16.mxu0 %v1589
      %3659 = vmatpush1.bf16.msra.mxu0 %v1588
      %3660 = vmatprep.subr.bf16.mxu0 0
      %3661 = vmatpush1.bf16.msra.mxu0 0
      %3662 = vmatprep.subr.bf16.mxu0 0
      %3663 = vmatpush1.bf16.msra.mxu0 0
      %3664 = vmatprep.subr.bf16.mxu0 0
      %3665 = vmatpush1.bf16.msra.mxu0 0
      %3666 = vmatprep.subr.bf16.mxu0 0
      %3667 = vmatpush1.bf16.msra.mxu0 0
      %3668 = vmatprep.subr.bf16.mxu0 0
      %3669 = vmatpush1.bf16.msra.mxu0 0
      %3670 = vmatprep.subr.bf16.mxu0 0
      %3671 = vmatpush1.bf16.msra.mxu0 0
      %3672 = vmatprep.subr.bf16.mxu0 0
      %3673 = vmatpush1.bf16.msra.mxu0 0
      %3674 = vmatprep.subr.bf16.mxu0 0
      %3675 = vmatpush1.bf16.msra.mxu0 0
      %3676 = vmatprep.mubr.bf16.mxu0 0
      %3677 = vmatmul.mubr.bf16.gmra.mrb[0].mxu0 %v3520
      %v3678 = vpop.f32.mrb[0].mxu0
      %v3679 = vadd.f32 %v1033, %v3678
      %v3680 = vpop.f32.mrb[0].mxu0
      %v3681 = vadd.f32 %v1037, %v3680
      %v3682 = vpop.f32.mrb[0].mxu0
      %v3683 = vpop.f32.mrb[0].mxu0
      %3684 = vdwg.mxu0
      %3685 = vmatprep.subr.bf16.mxu0 %v1479
      %3686 = vmatpush1.bf16.msra.mxu0 %v1478
      %3687 = vmatprep.subr.bf16.mxu0 %v1495
      %3688 = vmatpush1.bf16.msra.mxu0 %v1494
      %3689 = vmatprep.subr.bf16.mxu0 %v1511
      %3690 = vmatpush1.bf16.msra.mxu0 %v1510
      %3691 = vmatprep.subr.bf16.mxu0 %v1527
      %3692 = vmatpush1.bf16.msra.mxu0 %v1526
      %3693 = vmatprep.subr.bf16.mxu0 %v1543
      %3694 = vmatpush1.bf16.msra.mxu0 %v1542
      %3695 = vmatprep.subr.bf16.mxu0 %v1559
      %3696 = vmatpush1.bf16.msra.mxu0 %v1558
      %3697 = vmatprep.subr.bf16.mxu0 %v1575
      %3698 = vmatpush1.bf16.msra.mxu0 %v1574
      %3699 = vmatprep.subr.bf16.mxu0 %v1591
      %3700 = vmatpush1.bf16.msra.mxu0 %v1590
      %3701 = vmatprep.subr.bf16.mxu0 0
      %3702 = vmatpush1.bf16.msra.mxu0 0
      %3703 = vmatprep.subr.bf16.mxu0 0
      %3704 = vmatpush1.bf16.msra.mxu0 0
      %3705 = vmatprep.subr.bf16.mxu0 0
      %3706 = vmatpush1.bf16.msra.mxu0 0
      %3707 = vmatprep.subr.bf16.mxu0 0
      %3708 = vmatpush1.bf16.msra.mxu0 0
      %3709 = vmatprep.subr.bf16.mxu0 0
      %3710 = vmatpush1.bf16.msra.mxu0 0
      %3711 = vmatprep.subr.bf16.mxu0 0
      %3712 = vmatpush1.bf16.msra.mxu0 0
      %3713 = vmatprep.subr.bf16.mxu0 0
      %3714 = vmatpush1.bf16.msra.mxu0 0
      %3715 = vmatprep.subr.bf16.mxu0 0
      %3716 = vmatpush1.bf16.msra.mxu0 0
      %3717 = vmatprep.mubr.bf16.mxu0 0
      %3718 = vmatmul.mubr.bf16.gmra.mrb[0].mxu0 %v3520
      %v3719 = vpop.f32.mrb[0].mxu0
      %v3720 = vadd.f32 %v1041, %v3719
      %v3721 = vpop.f32.mrb[0].mxu0
      %v3722 = vadd.f32 %v1045, %v3721
      %v3723 = vpop.f32.mrb[0].mxu0
      %v3724 = vpop.f32.mrb[0].mxu0
      %3725 = vdwg.mxu0
      %3726 = vmatprep.subr.bf16.mxu0 %v1481
      %3727 = vmatpush1.bf16.msra.mxu0 %v1480
      %3728 = vmatprep.subr.bf16.mxu0 %v1497
      %3729 = vmatpush1.bf16.msra.mxu0 %v1496
      %3730 = vmatprep.subr.bf16.mxu0 %v1513
      %3731 = vmatpush1.bf16.msra.mxu0 %v1512
      %3732 = vmatprep.subr.bf16.mxu0 %v1529
      %3733 = vmatpush1.bf16.msra.mxu0 %v1528
      %3734 = vmatprep.subr.bf16.mxu0 %v1545
      %3735 = vmatpush1.bf16.msra.mxu0 %v1544
      %3736 = vmatprep.subr.bf16.mxu0 %v1561
      %3737 = vmatpush1.bf16.msra.mxu0 %v1560
      %3738 = vmatprep.subr.bf16.mxu0 %v1577
      %3739 = vmatpush1.bf16.msra.mxu0 %v1576
      %3740 = vmatprep.subr.bf16.mxu0 %v1593
      %3741 = vmatpush1.bf16.msra.mxu0 %v1592
      %3742 = vmatprep.subr.bf16.mxu0 0
      %3743 = vmatpush1.bf16.msra.mxu0 0
      %3744 = vmatprep.subr.bf16.mxu0 0
      %3745 = vmatpush1.bf16.msra.mxu0 0
      %3746 = vmatprep.subr.bf16.mxu0 0
      %3747 = vmatpush1.bf16.msra.mxu0 0
      %3748 = vmatprep.subr.bf16.mxu0 0
      %3749 = vmatpush1.bf16.msra.mxu0 0
      %3750 = vmatprep.subr.bf16.mxu0 0
      %3751 = vmatpush1.bf16.msra.mxu0 0
      %3752 = vmatprep.subr.bf16.mxu0 0
      %3753 = vmatpush1.bf16.msra.mxu0 0
      %3754 = vmatprep.subr.bf16.mxu0 0
      %3755 = vmatpush1.bf16.msra.mxu0 0
      %3756 = vmatprep.subr.bf16.mxu0 0
      %3757 = vmatpush1.bf16.msra.mxu0 0
      %3758 = vmatprep.mubr.bf16.mxu0 0
      %3759 = vmatmul.mubr.bf16.gmra.mrb[0].mxu0 %v3520
      %v3760 = vpop.f32.mrb[0].mxu0
      %v3761 = vadd.f32 %v1049, %v3760
      %v3762 = vpop.f32.mrb[0].mxu0
      %v3763 = vadd.f32 %v1053, %v3762
      %v3764 = vpop.f32.mrb[0].mxu0
      %v3765 = vpop.f32.mrb[0].mxu0
      %3766 = vdwg.mxu0
      %3767 = vmatprep.subr.bf16.mxu0 %v1483
      %3768 = vmatpush1.bf16.msra.mxu0 %v1482
      %3769 = vmatprep.subr.bf16.mxu0 %v1499
      %3770 = vmatpush1.bf16.msra.mxu0 %v1498
      %3771 = vmatprep.subr.bf16.mxu0 %v1515
      %3772 = vmatpush1.bf16.msra.mxu0 %v1514
      %3773 = vmatprep.subr.bf16.mxu0 %v1531
      %3774 = vmatpush1.bf16.msra.mxu0 %v1530
      %3775 = vmatprep.subr.bf16.mxu0 %v1547
      %3776 = vmatpush1.bf16.msra.mxu0 %v1546
      %3777 = vmatprep.subr.bf16.mxu0 %v1563
      %3778 = vmatpush1.bf16.msra.mxu0 %v1562
      %3779 = vmatprep.subr.bf16.mxu0 %v1579
      %3780 = vmatpush1.bf16.msra.mxu0 %v1578
      %3781 = vmatprep.subr.bf16.mxu0 %v1595
      %3782 = vmatpush1.bf16.msra.mxu0 %v1594
      %3783 = vmatprep.subr.bf16.mxu0 0
      %3784 = vmatpush1.bf16.msra.mxu0 0
      %3785 = vmatprep.subr.bf16.mxu0 0
      %3786 = vmatpush1.bf16.msra.mxu0 0
      %3787 = vmatprep.subr.bf16.mxu0 0
      %3788 = vmatpush1.bf16.msra.mxu0 0
      %3789 = vmatprep.subr.bf16.mxu0 0
      %3790 = vmatpush1.bf16.msra.mxu0 0
      %3791 = vmatprep.subr.bf16.mxu0 0
      %3792 = vmatpush1.bf16.msra.mxu0 0
      %3793 = vmatprep.subr.bf16.mxu0 0
      %3794 = vmatpush1.bf16.msra.mxu0 0
      %3795 = vmatprep.subr.bf16.mxu0 0
      %3796 = vmatpush1.bf16.msra.mxu0 0
      %3797 = vmatprep.subr.bf16.mxu0 0
      %3798 = vmatpush1.bf16.msra.mxu0 0
      %3799 = vmatprep.mubr.bf16.mxu0 0
      %3800 = vmatmul.mubr.bf16.gmra.mrb[0].mxu0 %v3520
      %v3801 = vpop.f32.mrb[0].mxu0
      %v3802 = vadd.f32 %v1057, %v3801
      %v3803 = vpop.f32.mrb[0].mxu0
      %v3804 = vadd.f32 %v1061, %v3803
      %v3805 = vpop.f32.mrb[0].mxu0
      %v3806 = vpop.f32.mrb[0].mxu0
      %3807 = vdwg.mxu0
      %3808 = vmatprep.subr.bf16.mxu0 %v1485
      %3809 = vmatpush1.bf16.msra.mxu0 %v1484
      %3810 = vmatprep.subr.bf16.mxu0 %v1501
      %3811 = vmatpush1.bf16.msra.mxu0 %v1500
      %3812 = vmatprep.subr.bf16.mxu0 %v1517
      %3813 = vmatpush1.bf16.msra.mxu0 %v1516
      %3814 = vmatprep.subr.bf16.mxu0 %v1533
      %3815 = vmatpush1.bf16.msra.mxu0 %v1532
      %3816 = vmatprep.subr.bf16.mxu0 %v1549
      %3817 = vmatpush1.bf16.msra.mxu0 %v1548
      %3818 = vmatprep.subr.bf16.mxu0 %v1565
      %3819 = vmatpush1.bf16.msra.mxu0 %v1564
      %3820 = vmatprep.subr.bf16.mxu0 %v1581
      %3821 = vmatpush1.bf16.msra.mxu0 %v1580
      %3822 = vmatprep.subr.bf16.mxu0 %v1597
      %3823 = vmatpush1.bf16.msra.mxu0 %v1596
      %3824 = vmatprep.subr.bf16.mxu0 0
      %3825 = vmatpush1.bf16.msra.mxu0 0
      %3826 = vmatprep.subr.bf16.mxu0 0
      %3827 = vmatpush1.bf16.msra.mxu0 0
      %3828 = vmatprep.subr.bf16.mxu0 0
      %3829 = vmatpush1.bf16.msra.mxu0 0
      %3830 = vmatprep.subr.bf16.mxu0 0
      %3831 = vmatpush1.bf16.msra.mxu0 0
      %3832 = vmatprep.subr.bf16.mxu0 0
      %3833 = vmatpush1.bf16.msra.mxu0 0
      %3834 = vmatprep.subr.bf16.mxu0 0
      %3835 = vmatpush1.bf16.msra.mxu0 0
      %3836 = vmatprep.subr.bf16.mxu0 0
      %3837 = vmatpush1.bf16.msra.mxu0 0
      %3838 = vmatprep.subr.bf16.mxu0 0
      %3839 = vmatpush1.bf16.msra.mxu0 0
      %3840 = vmatprep.mubr.bf16.mxu0 0
      %3841 = vmatmul.mubr.bf16.gmra.mrb[0].mxu0 %v3520
      %v3842 = vpop.f32.mrb[0].mxu0
      %v3843 = vadd.f32 %v1065, %v3842
      %v3844 = vpop.f32.mrb[0].mxu0
      %v3845 = vadd.f32 %v1069, %v3844
      %v3846 = vpop.f32.mrb[0].mxu0
      %v3847 = vpop.f32.mrb[0].mxu0
      %3848 = vdwg.mxu0
      %v3849 = vmax.f32 %v3556, 0.0
      %v3850 = vmax.f32 %v3558, 0.0
      %v3851 = vmax.f32 %v3597, 0.0
      %v3852 = vmax.f32 %v3599, 0.0
      %v3853 = vmax.f32 %v3638, 0.0
      %v3854 = vmax.f32 %v3640, 0.0
      %v3855 = vmax.f32 %v3679, 0.0
      %v3856 = vmax.f32 %v3681, 0.0
      %v3857 = vmax.f32 %v3720, 0.0
      %v3858 = vmax.f32 %v3722, 0.0
      %v3859 = vmax.f32 %v3761, 0.0
      %v3860 = vmax.f32 %v3763, 0.0
      %v3861 = vmax.f32 %v3802, 0.0
      %v3862 = vmax.f32 %v3804, 0.0
      %v3863 = vmax.f32 %v3843, 0.0
      %v3864 = vmax.f32 %v3845, 0.0
      %v3865 = vpack.c.bf16 %v3849, %v3849
      %v3866 = vpack.c.bf16 %v3850, %v3850
      %v3867 = vpack.c.bf16 %v3851, %v3851
      %v3868 = vpack.c.bf16 %v3852, %v3852
      %v3869 = vpack.c.bf16 %v3853, %v3853
      %v3870 = vpack.c.bf16 %v3854, %v3854
      %v3871 = vpack.c.bf16 %v3855, %v3855
      %v3872 = vpack.c.bf16 %v3856, %v3856
      %v3873 = vpack.c.bf16 %v3857, %v3857
      %v3874 = vpack.c.bf16 %v3858, %v3858
      %v3875 = vpack.c.bf16 %v3859, %v3859
      %v3876 = vpack.c.bf16 %v3860, %v3860
      %v3877 = vpack.c.bf16 %v3861, %v3861
      %v3878 = vpack.c.bf16 %v3862, %v3862
      %v3879 = vpack.c.bf16 %v3863, %v3863
      %v3880 = vpack.c.bf16 %v3864, %v3864
      %3881 = vmatprep.subr.bf16.mxu0 0
      %3882 = vmatpush1.bf16.msra.mxu0 %v2861
      %3883 = vmatprep.subr.bf16.mxu0 0
      %3884 = vmatpush1.bf16.msra.mxu0 %v2862
      %3885 = vmatprep.subr.bf16.mxu0 0
      %3886 = vmatpush1.bf16.msra.mxu0 %v2863
      %3887 = vmatprep.subr.bf16.mxu0 0
      %3888 = vmatpush1.bf16.msra.mxu0 %v2864
      %3889 = vmatprep.subr.bf16.mxu0 0
      %3890 = vmatpush1.bf16.msra.mxu0 %v2865
      %3891 = vmatprep.subr.bf16.mxu0 0
      %3892 = vmatpush1.bf16.msra.mxu0 %v2866
      %3893 = vmatprep.subr.bf16.mxu0 0
      %3894 = vmatpush1.bf16.msra.mxu0 %v2867
      %3895 = vmatprep.subr.bf16.mxu0 0
      %3896 = vmatpush1.bf16.msra.mxu0 %v2868
      %3897 = vmatprep.subr.bf16.mxu0 0
      %3898 = vmatpush1.bf16.msra.mxu0 %v2869
      %3899 = vmatprep.subr.bf16.mxu0 0
      %3900 = vmatpush1.bf16.msra.mxu0 %v2870
      %3901 = vmatprep.subr.bf16.mxu0 0
      %3902 = vmatpush1.bf16.msra.mxu0 %v2871
      %3903 = vmatprep.subr.bf16.mxu0 0
      %3904 = vmatpush1.bf16.msra.mxu0 %v2872
      %3905 = vmatprep.subr.bf16.mxu0 0
      %3906 = vmatpush1.bf16.msra.mxu0 %v2873
      %3907 = vmatprep.subr.bf16.mxu0 0
      %3908 = vmatpush1.bf16.msra.mxu0 %v2874
      %3909 = vmatprep.subr.bf16.mxu0 0
      %3910 = vmatpush1.bf16.msra.mxu0 %v2875
      %3911 = vmatprep.subr.bf16.mxu0 0
      %3912 = vmatpush1.bf16.msra.mxu0 %v2876
      %3913 = vmatprep.mubr.bf16.mxu0 %v3866
      %3914 = vmatmul.mubr.bf16.gmra.mrb[0].mxu0 %v3865
      %v3915 = vpop.f32.mrb[0].mxu0
      %v3916 = vadd.f32 %v2347, %v3915
      %v3917 = vpop.f32.mrb[0].mxu0
      %v3918 = vpop.f32.mrb[0].mxu0
      %v3919 = vpop.f32.mrb[0].mxu0
      %3920 = vdwg.mxu0
      %3921 = vmatprep.subr.bf16.mxu0 0
      %3922 = vmatpush1.bf16.msra.mxu0 %v2877
      %3923 = vmatprep.subr.bf16.mxu0 0
      %3924 = vmatpush1.bf16.msra.mxu0 %v2878
      %3925 = vmatprep.subr.bf16.mxu0 0
      %3926 = vmatpush1.bf16.msra.mxu0 %v2879
      %3927 = vmatprep.subr.bf16.mxu0 0
      %3928 = vmatpush1.bf16.msra.mxu0 %v2880
      %3929 = vmatprep.subr.bf16.mxu0 0
      %3930 = vmatpush1.bf16.msra.mxu0 %v2881
      %3931 = vmatprep.subr.bf16.mxu0 0
      %3932 = vmatpush1.bf16.msra.mxu0 %v2882
      %3933 = vmatprep.subr.bf16.mxu0 0
      %3934 = vmatpush1.bf16.msra.mxu0 %v2883
      %3935 = vmatprep.subr.bf16.mxu0 0
      %3936 = vmatpush1.bf16.msra.mxu0 %v2884
      %3937 = vmatprep.subr.bf16.mxu0 0
      %3938 = vmatpush1.bf16.msra.mxu0 %v2885
      %3939 = vmatprep.subr.bf16.mxu0 0
      %3940 = vmatpush1.bf16.msra.mxu0 %v2886
      %3941 = vmatprep.subr.bf16.mxu0 0
      %3942 = vmatpush1.bf16.msra.mxu0 %v2887
      %3943 = vmatprep.subr.bf16.mxu0 0
      %3944 = vmatpush1.bf16.msra.mxu0 %v2888
      %3945 = vmatprep.subr.bf16.mxu0 0
      %3946 = vmatpush1.bf16.msra.mxu0 %v2889
      %3947 = vmatprep.subr.bf16.mxu0 0
      %3948 = vmatpush1.bf16.msra.mxu0 %v2890
      %3949 = vmatprep.subr.bf16.mxu0 0
      %3950 = vmatpush1.bf16.msra.mxu0 %v2891
      %3951 = vmatprep.subr.bf16.mxu0 0
      %3952 = vmatpush1.bf16.msra.mxu0 %v2892
      %3953 = vmatprep.mubr.bf16.mxu0 %v3868
      %3954 = vmatmul.mubr.bf16.gmra.mrb[0].mxu0 %v3867
      %v3955 = vpop.f32.mrb[0].mxu0
      %v3956 = vadd.f32 %v3916, %v3955
      %v3957 = vpop.f32.mrb[0].mxu0
      %v3958 = vpop.f32.mrb[0].mxu0
      %v3959 = vpop.f32.mrb[0].mxu0
      %3960 = vdwg.mxu0
      %3961 = vmatprep.subr.bf16.mxu0 0
      %3962 = vmatpush1.bf16.msra.mxu0 %v2893
      %3963 = vmatprep.subr.bf16.mxu0 0
      %3964 = vmatpush1.bf16.msra.mxu0 %v2894
      %3965 = vmatprep.subr.bf16.mxu0 0
      %3966 = vmatpush1.bf16.msra.mxu0 %v2895
      %3967 = vmatprep.subr.bf16.mxu0 0
      %3968 = vmatpush1.bf16.msra.mxu0 %v2896
      %3969 = vmatprep.subr.bf16.mxu0 0
      %3970 = vmatpush1.bf16.msra.mxu0 %v2897
      %3971 = vmatprep.subr.bf16.mxu0 0
      %3972 = vmatpush1.bf16.msra.mxu0 %v2898
      %3973 = vmatprep.subr.bf16.mxu0 0
      %3974 = vmatpush1.bf16.msra.mxu0 %v2899
      %3975 = vmatprep.subr.bf16.mxu0 0
      %3976 = vmatpush1.bf16.msra.mxu0 %v2900
      %3977 = vmatprep.subr.bf16.mxu0 0
      %3978 = vmatpush1.bf16.msra.mxu0 %v2901
      %3979 = vmatprep.subr.bf16.mxu0 0
      %3980 = vmatpush1.bf16.msra.mxu0 %v2902
      %3981 = vmatprep.subr.bf16.mxu0 0
      %3982 = vmatpush1.bf16.msra.mxu0 %v2903
      %3983 = vmatprep.subr.bf16.mxu0 0
      %3984 = vmatpush1.bf16.msra.mxu0 %v2904
      %3985 = vmatprep.subr.bf16.mxu0 0
      %3986 = vmatpush1.bf16.msra.mxu0 %v2905
      %3987 = vmatprep.subr.bf16.mxu0 0
      %3988 = vmatpush1.bf16.msra.mxu0 %v2906
      %3989 = vmatprep.subr.bf16.mxu0 0
      %3990 = vmatpush1.bf16.msra.mxu0 %v2907
      %3991 = vmatprep.subr.bf16.mxu0 0
      %3992 = vmatpush1.bf16.msra.mxu0 %v2908
      %3993 = vmatprep.mubr.bf16.mxu0 %v3870
      %3994 = vmatmul.mubr.bf16.gmra.mrb[0].mxu0 %v3869
      %v3995 = vpop.f32.mrb[0].mxu0
      %v3996 = vadd.f32 %v3956, %v3995
      %v3997 = vpop.f32.mrb[0].mxu0
      %v3998 = vpop.f32.mrb[0].mxu0
      %v3999 = vpop.f32.mrb[0].mxu0
      %4000 = vdwg.mxu0
      %4001 = vmatprep.subr.bf16.mxu0 0
      %4002 = vmatpush1.bf16.msra.mxu0 %v2909
      %4003 = vmatprep.subr.bf16.mxu0 0
      %4004 = vmatpush1.bf16.msra.mxu0 %v2910
      %4005 = vmatprep.subr.bf16.mxu0 0
      %4006 = vmatpush1.bf16.msra.mxu0 %v2911
      %4007 = vmatprep.subr.bf16.mxu0 0
      %4008 = vmatpush1.bf16.msra.mxu0 %v2912
      %4009 = vmatprep.subr.bf16.mxu0 0
      %4010 = vmatpush1.bf16.msra.mxu0 %v2913
      %4011 = vmatprep.subr.bf16.mxu0 0
      %4012 = vmatpush1.bf16.msra.mxu0 %v2914
      %4013 = vmatprep.subr.bf16.mxu0 0
      %4014 = vmatpush1.bf16.msra.mxu0 %v2915
      %4015 = vmatprep.subr.bf16.mxu0 0
      %4016 = vmatpush1.bf16.msra.mxu0 %v2916
      %4017 = vmatprep.subr.bf16.mxu0 0
      %4018 = vmatpush1.bf16.msra.mxu0 %v2917
      %4019 = vmatprep.subr.bf16.mxu0 0
      %4020 = vmatpush1.bf16.msra.mxu0 %v2918
      %4021 = vmatprep.subr.bf16.mxu0 0
      %4022 = vmatpush1.bf16.msra.mxu0 %v2919
      %4023 = vmatprep.subr.bf16.mxu0 0
      %4024 = vmatpush1.bf16.msra.mxu0 %v2920
      %4025 = vmatprep.subr.bf16.mxu0 0
      %4026 = vmatpush1.bf16.msra.mxu0 %v2921
      %4027 = vmatprep.subr.bf16.mxu0 0
      %4028 = vmatpush1.bf16.msra.mxu0 %v2922
      %4029 = vmatprep.subr.bf16.mxu0 0
      %4030 = vmatpush1.bf16.msra.mxu0 %v2923
      %4031 = vmatprep.subr.bf16.mxu0 0
      %4032 = vmatpush1.bf16.msra.mxu0 %v2924
      %4033 = vmatprep.mubr.bf16.mxu0 %v3872
      %4034 = vmatmul.mubr.bf16.gmra.mrb[0].mxu0 %v3871
      %v4035 = vpop.f32.mrb[0].mxu0
      %v4036 = vadd.f32 %v3996, %v4035
      %v4037 = vpop.f32.mrb[0].mxu0
      %v4038 = vpop.f32.mrb[0].mxu0
      %v4039 = vpop.f32.mrb[0].mxu0
      %4040 = vdwg.mxu0
      %4041 = vmatprep.subr.bf16.mxu0 0
      %4042 = vmatpush1.bf16.msra.mxu0 %v2925
      %4043 = vmatprep.subr.bf16.mxu0 0
      %4044 = vmatpush1.bf16.msra.mxu0 %v2926
      %4045 = vmatprep.subr.bf16.mxu0 0
      %4046 = vmatpush1.bf16.msra.mxu0 %v2927
      %4047 = vmatprep.subr.bf16.mxu0 0
      %4048 = vmatpush1.bf16.msra.mxu0 %v2928
      %4049 = vmatprep.subr.bf16.mxu0 0
      %4050 = vmatpush1.bf16.msra.mxu0 %v2929
      %4051 = vmatprep.subr.bf16.mxu0 0
      %4052 = vmatpush1.bf16.msra.mxu0 %v2930
      %4053 = vmatprep.subr.bf16.mxu0 0
      %4054 = vmatpush1.bf16.msra.mxu0 %v2931
      %4055 = vmatprep.subr.bf16.mxu0 0
      %4056 = vmatpush1.bf16.msra.mxu0 %v2932
      %4057 = vmatprep.subr.bf16.mxu0 0
      %4058 = vmatpush1.bf16.msra.mxu0 %v2933
      %4059 = vmatprep.subr.bf16.mxu0 0
      %4060 = vmatpush1.bf16.msra.mxu0 %v2934
      %4061 = vmatprep.subr.bf16.mxu0 0
      %4062 = vmatpush1.bf16.msra.mxu0 %v2935
      %4063 = vmatprep.subr.bf16.mxu0 0
      %4064 = vmatpush1.bf16.msra.mxu0 %v2936
      %4065 = vmatprep.subr.bf16.mxu0 0
      %4066 = vmatpush1.bf16.msra.mxu0 %v2937
      %4067 = vmatprep.subr.bf16.mxu0 0
      %4068 = vmatpush1.bf16.msra.mxu0 %v2938
      %4069 = vmatprep.subr.bf16.mxu0 0
      %4070 = vmatpush1.bf16.msra.mxu0 %v2939
      %4071 = vmatprep.subr.bf16.mxu0 0
      %4072 = vmatpush1.bf16.msra.mxu0 %v2940
      %4073 = vmatprep.mubr.bf16.mxu0 %v3874
      %4074 = vmatmul.mubr.bf16.gmra.mrb[0].mxu0 %v3873
      %v4075 = vpop.f32.mrb[0].mxu0
      %v4076 = vadd.f32 %v4036, %v4075
      %v4077 = vpop.f32.mrb[0].mxu0
      %v4078 = vpop.f32.mrb[0].mxu0
      %v4079 = vpop.f32.mrb[0].mxu0
      %4080 = vdwg.mxu0
      %4081 = vmatprep.subr.bf16.mxu0 0
      %4082 = vmatpush1.bf16.msra.mxu0 %v2941
      %4083 = vmatprep.subr.bf16.mxu0 0
      %4084 = vmatpush1.bf16.msra.mxu0 %v2942
      %4085 = vmatprep.subr.bf16.mxu0 0
      %4086 = vmatpush1.bf16.msra.mxu0 %v2943
      %4087 = vmatprep.subr.bf16.mxu0 0
      %4088 = vmatpush1.bf16.msra.mxu0 %v2944
      %4089 = vmatprep.subr.bf16.mxu0 0
      %4090 = vmatpush1.bf16.msra.mxu0 %v2945
      %4091 = vmatprep.subr.bf16.mxu0 0
      %4092 = vmatpush1.bf16.msra.mxu0 %v2946
      %4093 = vmatprep.subr.bf16.mxu0 0
      %4094 = vmatpush1.bf16.msra.mxu0 %v2947
      %4095 = vmatprep.subr.bf16.mxu0 0
      %4096 = vmatpush1.bf16.msra.mxu0 %v2948
      %4097 = vmatprep.subr.bf16.mxu0 0
      %4098 = vmatpush1.bf16.msra.mxu0 %v2949
      %4099 = vmatprep.subr.bf16.mxu0 0
      %4100 = vmatpush1.bf16.msra.mxu0 %v2950
      %4101 = vmatprep.subr.bf16.mxu0 0
      %4102 = vmatpush1.bf16.msra.mxu0 %v2951
      %4103 = vmatprep.subr.bf16.mxu0 0
      %4104 = vmatpush1.bf16.msra.mxu0 %v2952
      %4105 = vmatprep.subr.bf16.mxu0 0
      %4106 = vmatpush1.bf16.msra.mxu0 %v2953
      %4107 = vmatprep.subr.bf16.mxu0 0
      %4108 = vmatpush1.bf16.msra.mxu0 %v2954
      %4109 = vmatprep.subr.bf16.mxu0 0
      %4110 = vmatpush1.bf16.msra.mxu0 %v2955
      %4111 = vmatprep.subr.bf16.mxu0 0
      %4112 = vmatpush1.bf16.msra.mxu0 %v2956
      %4113 = vmatprep.mubr.bf16.mxu0 %v3876
      %4114 = vmatmul.mubr.bf16.gmra.mrb[0].mxu0 %v3875
      %v4115 = vpop.f32.mrb[0].mxu0
      %v4116 = vadd.f32 %v4076, %v4115
      %v4117 = vpop.f32.mrb[0].mxu0
      %v4118 = vpop.f32.mrb[0].mxu0
      %v4119 = vpop.f32.mrb[0].mxu0
      %4120 = vdwg.mxu0
      %4121 = vmatprep.subr.bf16.mxu0 0
      %4122 = vmatpush1.bf16.msra.mxu0 %v2957
      %4123 = vmatprep.subr.bf16.mxu0 0
      %4124 = vmatpush1.bf16.msra.mxu0 %v2958
      %4125 = vmatprep.subr.bf16.mxu0 0
      %4126 = vmatpush1.bf16.msra.mxu0 %v2959
      %4127 = vmatprep.subr.bf16.mxu0 0
      %4128 = vmatpush1.bf16.msra.mxu0 %v2960
      %4129 = vmatprep.subr.bf16.mxu0 0
      %4130 = vmatpush1.bf16.msra.mxu0 %v2961
      %4131 = vmatprep.subr.bf16.mxu0 0
      %4132 = vmatpush1.bf16.msra.mxu0 %v2962
      %4133 = vmatprep.subr.bf16.mxu0 0
      %4134 = vmatpush1.bf16.msra.mxu0 %v2963
      %4135 = vmatprep.subr.bf16.mxu0 0
      %4136 = vmatpush1.bf16.msra.mxu0 %v2964
      %4137 = vmatprep.subr.bf16.mxu0 0
      %4138 = vmatpush1.bf16.msra.mxu0 %v2965
      %4139 = vmatprep.subr.bf16.mxu0 0
      %4140 = vmatpush1.bf16.msra.mxu0 %v2966
      %4141 = vmatprep.subr.bf16.mxu0 0
      %4142 = vmatpush1.bf16.msra.mxu0 %v2967
      %4143 = vmatprep.subr.bf16.mxu0 0
      %4144 = vmatpush1.bf16.msra.mxu0 %v2968
      %4145 = vmatprep.subr.bf16.mxu0 0
      %4146 = vmatpush1.bf16.msra.mxu0 %v2969
      %4147 = vmatprep.subr.bf16.mxu0 0
      %4148 = vmatpush1.bf16.msra.mxu0 %v2970
      %4149 = vmatprep.subr.bf16.mxu0 0
      %4150 = vmatpush1.bf16.msra.mxu0 %v2971
      %4151 = vmatprep.subr.bf16.mxu0 0
      %4152 = vmatpush1.bf16.msra.mxu0 %v2972
      %4153 = vmatprep.mubr.bf16.mxu0 %v3878
      %4154 = vmatmul.mubr.bf16.gmra.mrb[0].mxu0 %v3877
      %v4155 = vpop.f32.mrb[0].mxu0
      %v4156 = vadd.f32 %v4116, %v4155
      %v4157 = vpop.f32.mrb[0].mxu0
      %v4158 = vpop.f32.mrb[0].mxu0
      %v4159 = vpop.f32.mrb[0].mxu0
      %4160 = vdwg.mxu0
      %4161 = vmatprep.subr.bf16.mxu0 0
      %4162 = vmatpush1.bf16.msra.mxu0 %v2973
      %4163 = vmatprep.subr.bf16.mxu0 0
      %4164 = vmatpush1.bf16.msra.mxu0 %v2974
      %4165 = vmatprep.subr.bf16.mxu0 0
      %4166 = vmatpush1.bf16.msra.mxu0 %v2975
      %4167 = vmatprep.subr.bf16.mxu0 0
      %4168 = vmatpush1.bf16.msra.mxu0 %v2976
      %4169 = vmatprep.subr.bf16.mxu0 0
      %4170 = vmatpush1.bf16.msra.mxu0 %v2977
      %4171 = vmatprep.subr.bf16.mxu0 0
      %4172 = vmatpush1.bf16.msra.mxu0 %v2978
      %4173 = vmatprep.subr.bf16.mxu0 0
      %4174 = vmatpush1.bf16.msra.mxu0 %v2979
      %4175 = vmatprep.subr.bf16.mxu0 0
      %4176 = vmatpush1.bf16.msra.mxu0 %v2980
      %4177 = vmatprep.subr.bf16.mxu0 0
      %4178 = vmatpush1.bf16.msra.mxu0 %v2981
      %4179 = vmatprep.subr.bf16.mxu0 0
      %4180 = vmatpush1.bf16.msra.mxu0 %v2982
      %4181 = vmatprep.subr.bf16.mxu0 0
      %4182 = vmatpush1.bf16.msra.mxu0 %v2983
      %4183 = vmatprep.subr.bf16.mxu0 0
      %4184 = vmatpush1.bf16.msra.mxu0 %v2984
      %4185 = vmatprep.subr.bf16.mxu0 0
      %4186 = vmatpush1.bf16.msra.mxu0 %v2985
      %4187 = vmatprep.subr.bf16.mxu0 0
      %4188 = vmatpush1.bf16.msra.mxu0 %v2986
      %4189 = vmatprep.subr.bf16.mxu0 0
      %4190 = vmatpush1.bf16.msra.mxu0 %v2987
      %4191 = vmatprep.subr.bf16.mxu0 0
      %4192 = vmatpush1.bf16.msra.mxu0 %v2988
      %4193 = vmatprep.mubr.bf16.mxu0 %v3880
      %4194 = vmatmul.mubr.bf16.gmra.mrb[0].mxu0 %v3879
      %v4195 = vpop.f32.mrb[0].mxu0
      %v4196 = vadd.f32 %v4156, %v4195
      %v4197 = vpop.f32.mrb[0].mxu0
      %v4198 = vpop.f32.mrb[0].mxu0
      %v4199 = vpop.f32.mrb[0].mxu0
      %4200 = vdwg.mxu0
      %v4201 = vadd.f32 %v3519, %v4196
      %4202 = vadd.xlane.f32.xlu0 %v4201
      %v4203 = vpop.xlane.xlu0 %4202
      %v4204 = vmul.f32 %v4203, %v849
      %v4205 = vsub.f32 %v4201, %v4204
      %v4206 = vmul.f32 %v4205, %v4205
      %4207 = vadd.xlane.f32.xlu0 %v4206
      %v4208 = vpop.xlane.xlu0 %4207
      %v4209 = vmul.f32 %v4208, %v849
      %v4210 = vadd.f32 %v4209, 1e-05
      %v4211 = vrsqrt.pop %v4210
      %v4212 = vmul.f32 %v4205, %v4211
      %v4213 = vmul.f32 %v4212, %v3455
      %v4214 = vadd.f32 %v4213, %v3462
      %v4215 = vpack.c.bf16 %v4214, %v4214
      %v4216 = vld [vmem:[%s13] sm:$0xf]
      %v4217 = vld [vmem:[%s13 + $0x4] sm:$0xf]
      %v4218 = vld [vmem:[%s13 + $0x8] sm:$0xf]
      %v4219 = vld [vmem:[%s13 + $0xc] sm:$0xf]
      %v4220 = vld [vmem:[%s13 + $0x10] sm:$0xf]
      %v4221 = vld [vmem:[%s13 + $0x14] sm:$0xf]
      %v4222 = vld [vmem:[%s13 + $0x18] sm:$0xf]
      %v4223 = vld [vmem:[%s13 + $0x1c] sm:$0xf]
      %v4224 = vld [vmem:[%s13 + $0x20] sm:$0xf]
      %v4225 = vld [vmem:[%s13 + $0x24] sm:$0xf]
      %v4226 = vld [vmem:[%s13 + $0x28] sm:$0xf]
      %v4227 = vld [vmem:[%s13 + $0x2c] sm:$0xf]
      %v4228 = vld [vmem:[%s13 + $0x30] sm:$0xf]
      %v4229 = vld [vmem:[%s13 + $0x34] sm:$0xf]
      %v4230 = vld [vmem:[%s13 + $0x38] sm:$0xf]
      %v4231 = vld [vmem:[%s13 + $0x3c] sm:$0xf]
      %v4232 = vld [vmem:[%s14] sm:$0x1]
      %v4234 = vlaneseq
      %v4235 = vshrl.u32 %v4234, 7
      %v4236 = vsub.s32 0, %v4235
      %v4237 = vrot.slane %v4232, %v4236
      %v4255 = vunpack.c.l.b16 %v4216
      %v4256 = vunpack.c.l.b16 %v4217
      %v4257 = vunpack.c.l.b16 %v4218
      %v4258 = vunpack.c.l.b16 %v4219
      %v4259 = vunpack.c.l.b16 %v4220
      %v4260 = vunpack.c.l.b16 %v4221
      %v4261 = vunpack.c.l.b16 %v4222
      %v4262 = vunpack.c.l.b16 %v4223
      %v4263 = vunpack.c.l.b16 %v4224
      %v4264 = vunpack.c.l.b16 %v4225
      %v4265 = vunpack.c.l.b16 %v4226
      %v4266 = vunpack.c.l.b16 %v4227
      %v4267 = vunpack.c.l.b16 %v4228
      %v4268 = vunpack.c.l.b16 %v4229
      %v4269 = vunpack.c.l.b16 %v4230
      %v4270 = vunpack.c.l.b16 %v4231
      %v4271 = vpack.c.b16 %v4256, %v4255
      %v4272 = vpack.c.b16 %v4258, %v4257
      %v4273 = vpack.c.b16 %v4260, %v4259
      %v4274 = vpack.c.b16 %v4262, %v4261
      %v4275 = vpack.c.b16 %v4264, %v4263
      %v4276 = vpack.c.b16 %v4266, %v4265
      %v4277 = vpack.c.b16 %v4268, %v4267
      %v4278 = vpack.c.b16 %v4270, %v4269
      %4287 = vmatprep.subr.bf16.mxu0 0
      %4288 = vmatpush1.bf16.msra.mxu0 %v4271
      %4289 = vmatprep.subr.bf16.mxu0 0
      %4290 = vmatpush1.bf16.msra.mxu0 %v4272
      %4291 = vmatprep.subr.bf16.mxu0 0
      %4292 = vmatpush1.bf16.msra.mxu0 %v4273
      %4293 = vmatprep.subr.bf16.mxu0 0
      %4294 = vmatpush1.bf16.msra.mxu0 %v4274
      %4295 = vmatprep.subr.bf16.mxu0 0
      %4296 = vmatpush1.bf16.msra.mxu0 %v4275
      %4297 = vmatprep.subr.bf16.mxu0 0
      %4298 = vmatpush1.bf16.msra.mxu0 %v4276
      %4299 = vmatprep.subr.bf16.mxu0 0
      %4300 = vmatpush1.bf16.msra.mxu0 %v4277
      %4301 = vmatprep.subr.bf16.mxu0 0
      %4302 = vmatpush1.bf16.msra.mxu0 %v4278
      %4303 = vmatprep.subr.bf16.mxu0 0
      %4304 = vmatpush1.bf16.msra.mxu0 0
      %4305 = vmatprep.subr.bf16.mxu0 0
      %4306 = vmatpush1.bf16.msra.mxu0 0
      %4307 = vmatprep.subr.bf16.mxu0 0
      %4308 = vmatpush1.bf16.msra.mxu0 0
      %4309 = vmatprep.subr.bf16.mxu0 0
      %4310 = vmatpush1.bf16.msra.mxu0 0
      %4311 = vmatprep.subr.bf16.mxu0 0
      %4312 = vmatpush1.bf16.msra.mxu0 0
      %4313 = vmatprep.subr.bf16.mxu0 0
      %4314 = vmatpush1.bf16.msra.mxu0 0
      %4315 = vmatprep.subr.bf16.mxu0 0
      %4316 = vmatpush1.bf16.msra.mxu0 0
      %4317 = vmatprep.subr.bf16.mxu0 0
      %4318 = vmatpush1.bf16.msra.mxu0 0
      %4319 = vmatprep.mubr.bf16.mxu0 0
      %4320 = vmatmul.mubr.bf16.gmra.mrb[0].mxu0 %v4215
      %v4321 = vpop.f32.mrb[0].mxu0
      %v4322 = vadd.f32 %v4237, %v4321
      %v4323 = vpop.f32.mrb[0].mxu0
      %v4324 = vpop.f32.mrb[0].mxu0
      %v4325 = vpop.f32.mrb[0].mxu0
      %4326 = vdwg.mxu0
      %v4327 = vmul.f32 %v4322, 0.5
      %v4328 = vmul.f32 %v4322, 0.70710677
      %v4329 = verf.f32.pop %v4328
      %v4330 = vadd.f32 %v4329, 1.0
      %v4331 = vmul.f32 %v4327, %v4330
      %v4332 = vpack.c.bf16 %v4331, %v4331
      %v4333 = vld [vmem:[%s15] sm:$0xf]
      %v4334 = vld [vmem:[%s15 + $0x4] sm:$0xf]
      %v4335 = vld [vmem:[%s15 + $0x8] sm:$0xf]
      %v4336 = vld [vmem:[%s15 + $0xc] sm:$0xf]
      %v4337 = vld [vmem:[%s15 + $0x10] sm:$0xf]
      %v4338 = vld [vmem:[%s15 + $0x14] sm:$0xf]
      %v4339 = vld [vmem:[%s15 + $0x18] sm:$0xf]
      %v4340 = vld [vmem:[%s15 + $0x1c] sm:$0xf]
      %v4341 = vld [vmem:[%s16] sm:$0x1]
      %v4343 = vlaneseq
      %v4344 = vshrl.u32 %v4343, 7
      %v4345 = vsub.s32 0, %v4344
      %v4346 = vrot.slane %v4341, %v4345
      %v4356 = vunpack.c.l.b16 %v4333
      %v4357 = vunpack.c.l.b16 %v4334
      %v4358 = vunpack.c.l.b16 %v4335
      %v4359 = vunpack.c.l.b16 %v4336
      %v4360 = vunpack.c.l.b16 %v4337
      %v4361 = vunpack.c.l.b16 %v4338
      %v4362 = vunpack.c.l.b16 %v4339
      %v4363 = vunpack.c.l.b16 %v4340
      %v4364 = vpack.c.b16 %v4357, %v4356
      %v4365 = vpack.c.b16 %v4359, %v4358
      %v4366 = vpack.c.b16 %v4361, %v4360
      %v4367 = vpack.c.b16 %v4363, %v4362
      %vm4372 = vcmask 523264
      %v4374 = vsel %vm4372, %v4332, 0
      %4376 = vmatprep.subr.bf16.mxu0 0
      %4377 = vmatpush1.bf16.msra.mxu0 %v4364
      %4378 = vmatprep.subr.bf16.mxu0 0
      %4379 = vmatpush1.bf16.msra.mxu0 %v4365
      %4380 = vmatprep.subr.bf16.mxu0 0
      %4381 = vmatpush1.bf16.msra.mxu0 %v4366
      %4382 = vmatprep.subr.bf16.mxu0 0
      %4383 = vmatpush1.bf16.msra.mxu0 %v4367
      %4384 = vmatprep.subr.bf16.mxu0 0
      %4385 = vmatpush1.bf16.msra.mxu0 0
      %4386 = vmatprep.subr.bf16.mxu0 0
      %4387 = vmatpush1.bf16.msra.mxu0 0
      %4388 = vmatprep.subr.bf16.mxu0 0
      %4389 = vmatpush1.bf16.msra.mxu0 0
      %4390 = vmatprep.subr.bf16.mxu0 0
      %4391 = vmatpush1.bf16.msra.mxu0 0
      %4392 = vmatprep.subr.bf16.mxu0 0
      %4393 = vmatpush1.bf16.msra.mxu0 0
      %4394 = vmatprep.subr.bf16.mxu0 0
      %4395 = vmatpush1.bf16.msra.mxu0 0
      %4396 = vmatprep.subr.bf16.mxu0 0
      %4397 = vmatpush1.bf16.msra.mxu0 0
      %4398 = vmatprep.subr.bf16.mxu0 0
      %4399 = vmatpush1.bf16.msra.mxu0 0
      %4400 = vmatprep.subr.bf16.mxu0 0
      %4401 = vmatpush1.bf16.msra.mxu0 0
      %4402 = vmatprep.subr.bf16.mxu0 0
      %4403 = vmatpush1.bf16.msra.mxu0 0
      %4404 = vmatprep.subr.bf16.mxu0 0
      %4405 = vmatpush1.bf16.msra.mxu0 0
      %4406 = vmatprep.subr.bf16.mxu0 0
      %4407 = vmatpush1.bf16.msra.mxu0 0
      %4408 = vmatprep.mubr.bf16.mxu0 0
      %4409 = vmatmul.mubr.bf16.gmra.mrb[0].mxu0 %v4374
      %v4410 = vpop.f32.mrb[0].mxu0
      %v4411 = vadd.f32 %v4346, %v4410
      %v4412 = vpop.f32.mrb[0].mxu0
      %v4413 = vpop.f32.mrb[0].mxu0
      %v4414 = vpop.f32.mrb[0].mxu0
      %4415 = vdwg.mxu0
      %vm4416 = vcmask 15360
      %4417 = vst.msk [vmem:[%s546] sm:$0xff] %vm4416, %v4411
      %p4418 = scmp.lt.s32.totalorder %s28, 1
      %s4419 = scalar_select %p4418, %s28, 1
      %s4420 = smul.addr %s4419, 8
      %s4421 = scalar_lea.vmem %s17, %s4420
      // Predicated region
      $region89: #{clf_forward.1} parent=87 // pred_check
        %p4422 = pneg %p408
      $region90: #{clf_forward.1} parent=87 // pred_check_branch
        %4424 = sbr.rel (%p4422) target = $region92
      $region91: #{clf_forward.1} parent=87 // pred_region
        _
      $region92: #{clf_forward.1} parent=87 // pred_fallthru
        _
    $region88: #{clf_forward.1} parent=5 // pred_fallthru
      _
    %p4425 = scmp.le.s32.totalorder 2, %s23
    // Predicated region
    $region93: #{clf_forward.1} parent=5 // pred_check
      %p4426 = pneg %p4425
    $region94: #{clf_forward.1} parent=5 // pred_check_branch
      %4428 = sbr.rel (%p4426) target = $region96
    $region95: #{clf_forward.1} parent=5 // pred_region
      %s4429 = ssub.s32 %s23, 2
      // Predicated region
      $region97: #{clf_forward.1} parent=95 // pred_check
        %p4430 = pneg %p414
      $region98: #{clf_forward.1} parent=95 // pred_check_branch
        %4432 = sbr.rel (%p4430) target = $region100
      $region99: #{clf_forward.1} parent=95 // pred_region
        %p4433 = scmp.lt.s32.totalorder %s29, 1
        %s4434 = scalar_select %p4433, %s29, 1
        %s4435 = smul.addr %s4434, 8
        %s4436 = scalar_lea.vmem %s17, %s4435
      $region100: #{clf_forward.1} parent=95 // pred_fallthru
        _
    $region96: #{clf_forward.1} parent=5 // pred_fallthru
      _
  $region6: #{clf_forward.1} parent=0 // loop_footer
    %s27 = sadd.s32 1, %s23
  $region7: #{clf_forward.1} parent=0 // loop_footer_branch
    %22 = sbr.rel target = $region3
  $region8: #{clf_forward.1} parent=0 // loop_exit
    _

</llo_original>
